<compile_context>
chip_gen: v7x
topology: tpu7x:2x2x1
jax: 0.10.0
libtpu: 0.0.40
codegen_flags: <defaults>
</compile_context>

<pallas_src>
import functools

import jax
import jax.numpy as jnp
import numpy as np
from jax import lax
from jax.experimental import pallas as pl
from jax.experimental.pallas import tpu as pltpu

EPS = 1e-5


# ---------------------------------------------------------------------------
# Pass A: conv1 (3x3, pad=1) + optional 1x1 shortcut conv + partial BN stats.
# ---------------------------------------------------------------------------
def _conv1_kernel(xp_ref, w1_ref, *rest, H, W, Cin, Cout, conv_shortcut):
    if conv_shortcut:
        wsc_ref, y1_ref, s1_ref, rsc_ref, ssc_ref = rest
    else:
        y1_ref, s1_ref = rest

    # im2col: one (H*W, 9*Cin) patch matrix -> a single MXU matmul (K = 9*Cin)
    # instead of nine tiny K=Cin matmuls.
    pieces = [
        xp_ref[ky:ky + H, kx:kx + W, :].reshape(H * W, Cin)
        for ky in range(3) for kx in range(3)
    ]
    patches = jnp.concatenate(pieces, axis=-1)                 # (H*W, 9*Cin)
    y1 = jnp.dot(patches, w1_ref[...],
                 preferred_element_type=jnp.float32)           # (H*W, Cout)
    y1_ref[...] = y1
    # Single-traversal partial statistics (sum, sum of squares) in f32.
    s1_ref[0:1, :] = jnp.sum(y1, axis=0, keepdims=True)
    s1_ref[1:2, :] = jnp.sum(y1 * y1, axis=0, keepdims=True)

    if conv_shortcut:
        xc = xp_ref[1:H + 1, 1:W + 1, :].reshape(H * W, Cin)   # un-padded x
        rsc = jnp.dot(xc, wsc_ref[...],
                      preferred_element_type=jnp.float32)      # (H*W, Cout)
        rsc_ref[...] = rsc
        ssc_ref[0:1, :] = jnp.sum(rsc, axis=0, keepdims=True)
        ssc_ref[1:2, :] = jnp.sum(rsc * rsc, axis=0, keepdims=True)


# ---------------------------------------------------------------------------
# Pass B: BN1 (pre-folded scale/shift FMA) + ReLU + conv2 + partial BN2 stats.
# ---------------------------------------------------------------------------
def _conv2_kernel(y1_ref, sh1_ref, w2_ref, y2_ref, s2_ref, pad_ref,
                  *, H, W, Cout):
    # Fused BN1 normalize (one multiply-add) + ReLU, all in f32.
    h1 = jnp.maximum(y1_ref[...] * sh1_ref[0:1, :] + sh1_ref[1:2, :], 0.0)

    # Zero-pad for the second 3x3 conv: only the 1-pixel border is zeroed
    # (the interior is fully overwritten each grid step) -- no full-tensor
    # zeroing pass on the store slot.
    zr = jnp.zeros((1, W + 2, Cout), pad_ref.dtype)
    zc = jnp.zeros((H + 2, 1, Cout), pad_ref.dtype)
    pad_ref[0:1, :, :] = zr
    pad_ref[H + 1:H + 2, :, :] = zr
    pad_ref[:, 0:1, :] = zc
    pad_ref[:, W + 1:W + 2, :] = zc
    pad_ref[1:H + 1, 1:W + 1, :] = h1.reshape(H, W, Cout).astype(pad_ref.dtype)

    pieces = [
        pad_ref[ky:ky + H, kx:kx + W, :].reshape(H * W, Cout)
        for ky in range(3) for kx in range(3)
    ]
    patches = jnp.concatenate(pieces, axis=-1)                 # (H*W, 9*Cout)
    y2 = jnp.dot(patches, w2_ref[...],
                 preferred_element_type=jnp.float32)           # (H*W, Cout)
    y2_ref[...] = y2
    s2_ref[0:1, :] = jnp.sum(y2, axis=0, keepdims=True)
    s2_ref[1:2, :] = jnp.sum(y2 * y2, axis=0, keepdims=True)


# ---------------------------------------------------------------------------
# Pass C: BN2 + shortcut BN (or identity) + add + ReLU, lane-dense layout.
# ---------------------------------------------------------------------------
def _tail_conv_shortcut_kernel(y2_ref, rsc_ref, sh2_ref, shsc_ref, out_ref):
    h2 = y2_ref[...] * sh2_ref[0:1, :] + sh2_ref[1:2, :]
    r = rsc_ref[...] * shsc_ref[0:1, :] + shsc_ref[1:2, :]
    out_ref[...] = jnp.maximum(h2 + r, 0.0)


def _tail_identity_kernel(y2_ref, xw_ref, sh2_ref, out_ref):
    h2 = y2_ref[...] * sh2_ref[0:1, :] + sh2_ref[1:2, :]
    out_ref[...] = jnp.maximum(h2 + xw_ref[...], 0.0)


# ------------------------------- glue helpers -------------------------------
def _fold_bn(partial_stats, gamma, beta, count):
    # partial_stats: (N, 2, C) per-image [sum; sum_sq].  Returns (2, C)
    # [scale; shift]; rsqrt is evaluated once per channel, in f32.
    s = jnp.sum(partial_stats, axis=0)
    mean = s[0] / count
    var = s[1] / count - mean * mean       # biased variance (torch training BN)
    scale = gamma * lax.rsqrt(var + EPS)
    shift = beta - mean * scale
    return jnp.stack([scale, shift], axis=0)


def _widen(sh, W):
    # (2, C) per-channel -> (2, W*C) lane-dense form (index w*C + c -> c).
    return jnp.tile(sh, (1, W))


# ------------------------------ public wrapper ------------------------------
@functools.partial(jax.jit, static_argnames=("stride", "matmul_dtype"))
def basic_block_forward(x_nchw, params, *, stride=1, matmul_dtype=jnp.float32):
    if stride != 1:
        # TODO(synk): stride>1 needs strided im2col patch extraction; only the
        # stride=1 configuration of BasicBlock is implemented here.
        raise NotImplementedError("stride != 1 not implemented")

    N, Cin, H, W = x_nchw.shape
    Cout = params["w1"].shape[0]
    conv_shortcut = (Cin != Cout) or (stride != 1)
    cnt = float(N * H * W)
    f32 = jnp.float32
    mm = matmul_dtype
    itemsz = jnp.dtype(mm).itemsize
    par = pltpu.CompilerParams(dimension_semantics=("parallel",))

    # NCHW -> NHWC (channels minor) + 1-pixel zero pad for the first conv.
    x_nhwc = jnp.transpose(x_nchw.astype(f32), (0, 2, 3, 1))
    xp = jnp.pad(x_nhwc, ((0, 0), (1, 1), (1, 1), (0, 0))).astype(mm)

    # OIHW conv weights -> (9*Cin, Cout) matmul matrices; row (ky*3+kx)*Cin+ci.
    def w3x3(w):
        co, ci = w.shape[0], w.shape[1]
        return jnp.transpose(w, (2, 3, 1, 0)).reshape(9 * ci, co).astype(mm)

    w1m = w3x3(params["w1"])
    w2m = w3x3(params["w2"])

    # ------------------------------ pass A -------------------------------
    in_specs_a = [
        pl.BlockSpec((None, H + 2, W + 2, Cin), lambda n: (n, 0, 0, 0)),
        pl.BlockSpec((9 * Cin, Cout), lambda n: (0, 0)),
    ]
    operands_a = [xp, w1m]
    out_shape_a = [
        jax.ShapeDtypeStruct((N, H * W, Cout), f32),   # y1 = conv1(x)
        jax.ShapeDtypeStruct((N, 2, Cout), f32),       # partial BN1 stats
    ]
    out_specs_a = [
        pl.BlockSpec((None, H * W, Cout), lambda n: (n, 0, 0)),
        pl.BlockSpec((None, 2, Cout), lambda n: (n, 0, 0)),
    ]
    flops_a = 2 * N * H * W * 9 * Cin * Cout
    if conv_shortcut:
        wscm = jnp.transpose(params["wsc"][:, :, 0, 0], (1, 0)).astype(mm)
        in_specs_a.append(pl.BlockSpec((Cin, Cout), lambda n: (0, 0)))
        operands_a.append(wscm)
        out_shape_a += [jax.ShapeDtypeStruct((N, H * W, Cout), f32),
                        jax.ShapeDtypeStruct((N, 2, Cout), f32)]
        out_specs_a += [pl.BlockSpec((None, H * W, Cout), lambda n: (n, 0, 0)),
                        pl.BlockSpec((None, 2, Cout), lambda n: (n, 0, 0))]
        flops_a += 2 * N * H * W * Cin * Cout
    bytes_a = (xp.size + w1m.size) * itemsz + \
        sum(int(np.prod(s.shape)) * 4 for s in out_shape_a)

    outs_a = pl.pallas_call(
        functools.partial(_conv1_kernel, H=H, W=W, Cin=Cin, Cout=Cout,
                          conv_shortcut=conv_shortcut),
        grid=(N,),
        in_specs=in_specs_a,
        out_specs=tuple(out_specs_a),
        out_shape=tuple(out_shape_a),
        compiler_params=par,
        cost_estimate=pl.CostEstimate(flops=flops_a, transcendentals=0,
                                      bytes_accessed=bytes_a),
    )(*operands_a)
    if conv_shortcut:
        y1, s1, rsc, ssc = outs_a
    else:
        y1, s1 = outs_a

    # Fold global BN1 stats into per-channel scale/shift (O(Cout) math).
    sh1 = _fold_bn(s1, params["g1"], params["b1"], cnt)        # (2, Cout)

    # ------------------------------ pass B -------------------------------
    flops_b = 2 * N * H * W * 9 * Cout * Cout + 4 * N * H * W * Cout
    bytes_b = (N * H * W * Cout * 8) + w2m.size * itemsz + 2 * N * Cout * 4
    y2, s2 = pl.pallas_call(
        functools.partial(_conv2_kernel, H=H, W=W, Cout=Cout),
        grid=(N,),
        in_specs=[
            pl.BlockSpec((None, H * W, Cout), lambda n: (n, 0, 0)),
            pl.BlockSpec((2, Cout), lambda n: (0, 0)),
            pl.BlockSpec((9 * Cout, Cout), lambda n: (0, 0)),
        ],
        out_specs=(pl.BlockSpec((None, H * W, Cout), lambda n: (n, 0, 0)),
                   pl.BlockSpec((None, 2, Cout), lambda n: (n, 0, 0))),
        out_shape=(jax.ShapeDtypeStruct((N, H * W, Cout), f32),
                   jax.ShapeDtypeStruct((N, 2, Cout), f32)),
        scratch_shapes=[pltpu.VMEM((H + 2, W + 2, Cout), mm)],
        compiler_params=par,
        cost_estimate=pl.CostEstimate(flops=flops_b, transcendentals=0,
                                      bytes_accessed=bytes_b),
    )(y1, sh1, w2m)

    sh2w = _widen(_fold_bn(s2, params["g2"], params["b2"], cnt), W)

    # --------------------- pass C (lane-dense tail) -----------------------
    # (N, H*W, C) and (N, H, W*C) have identical row-major layouts, so these
    # reshapes are free; the kernel then reads/writes full-lane rows
    # (W*Cout = 128 in the test configs -> unmasked stores).
    y2w = y2.reshape(N, H, W * Cout)
    wide_spec = pl.BlockSpec((None, H, W * Cout), lambda n: (n, 0, 0))
    sh_spec = pl.BlockSpec((2, W * Cout), lambda n: (0, 0))
    out_shape_c = jax.ShapeDtypeStruct((N, H, W * Cout), f32)
    flops_c = 7 * N * H * W * Cout
    bytes_c = 4 * N * H * W * Cout * 4

    if conv_shortcut:
        shscw = _widen(_fold_bn(ssc, params["gsc"], params["bsc"], cnt), W)
        rscw = rsc.reshape(N, H, W * Cout)
        out = pl.pallas_call(
            _tail_conv_shortcut_kernel,
            grid=(N,),
            in_specs=[wide_spec, wide_spec, sh_spec, sh_spec],
            out_specs=wide_spec,
            out_shape=out_shape_c,
            compiler_params=par,
            cost_estimate=pl.CostEstimate(flops=flops_c, transcendentals=0,
                                          bytes_accessed=bytes_c),
        )(y2w, rscw, sh2w, shscw)
    else:
        xw = x_nhwc.reshape(N, H, W * Cin)      # identity residual, exact f32
        out = pl.pallas_call(
            _tail_identity_kernel,
            grid=(N,),
            in_specs=[wide_spec, wide_spec, sh_spec],
            out_specs=wide_spec,
            out_shape=out_shape_c,
            compiler_params=par,
            cost_estimate=pl.CostEstimate(flops=flops_c, transcendentals=0,
                                          bytes_accessed=bytes_c),
        )(y2w, xw, sh2w)

    # (N, H, W*C) -> NCHW to match the PyTorch module's output convention.
    return jnp.transpose(out.reshape(N, H, W, Cout), (0, 3, 1, 2))


# ----------------------------- pure-JAX reference ----------------------------
def basic_block_reference(x, params):
    def conv(x, w, pad):
        return lax.conv_general_dilated(
            x, w, window_strides=(1, 1),
            padding=((pad, pad), (pad, pad)),
            dimension_numbers=("NCHW", "OIHW", "NCHW"),
            precision=lax.Precision.HIGHEST)

    def bn(x, g, b):
        mean = jnp.mean(x, axis=(0, 2, 3), keepdims=True)
        var = jnp.mean((x - mean) ** 2, axis=(0, 2, 3), keepdims=True)
        return (x - mean) * lax.rsqrt(var + EPS) * g.reshape(1, -1, 1, 1) \
            + b.reshape(1, -1, 1, 1)

    h = jax.nn.relu(bn(conv(x, params["w1"], 1), params["g1"], params["b1"]))
    h = bn(conv(h, params["w2"], 1), params["g2"], params["b2"])
    if "wsc" in params:
        r = bn(conv(x, params["wsc"], 0), params["gsc"], params["bsc"])
    else:
        r = x
    return jax.nn.relu(h + r)


def _make_params(key, Cin, Cout, conv_shortcut):
    ks = jax.random.split(key, 9)
    p = {
        "w1": 0.1 * jax.random.normal(ks[0], (Cout, Cin, 3, 3), jnp.float32),
        "g1": 1.0 + 0.1 * jax.random.normal(ks[1], (Cout,), jnp.float32),
        "b1": 0.1 * jax.random.normal(ks[2], (Cout,), jnp.float32),
        "w2": 0.1 * jax.random.normal(ks[3], (Cout, Cout, 3, 3), jnp.float32),
        "g2": 1.0 + 0.1 * jax.random.normal(ks[4], (Cout,), jnp.float32),
        "b2": 0.1 * jax.random.normal(ks[5], (Cout,), jnp.float32),
    }
    if conv_shortcut:
        p["wsc"] = 0.1 * jax.random.normal(ks[6], (Cout, Cin, 1, 1), jnp.float32)
        p["gsc"] = 1.0 + 0.1 * jax.random.normal(ks[7], (Cout,), jnp.float32)
        p["bsc"] = 0.1 * jax.random.normal(ks[8], (Cout,), jnp.float32)
    return p


# ------------------------------------ main ------------------------------------
if __name__ == "__main__":
    key = jax.random.PRNGKey(0)
    kx1, kp1, kx2, kp2 = jax.random.split(key, 4)

    # Case 1: in_channels != out_channels -> 1x1-conv + BN shortcut.
    N, Cin, Cout, H, W = 2, 4, 8, 16, 16            # W*Cout = 128 (lane-dense)
    x1 = jax.random.normal(kx1, (N, Cin, H, W), jnp.float32)
    p1 = _make_params(kp1, Cin, Cout, conv_shortcut=True)
    out1 = jax.block_until_ready(basic_block_forward(x1, p1))
    ref1 = basic_block_reference(x1, p1)
    np.testing.assert_allclose(np.asarray(out1), np.asarray(ref1),
                               rtol=1e-4, atol=1e-4)

    # Case 2: in_channels == out_channels -> identity shortcut variant
    # (no dummy shortcut operands are passed to pallas_call).
    x2 = jax.random.normal(kx2, (N, Cout, H, W), jnp.float32)
    p2 = _make_params(kp2, Cout, Cout, conv_shortcut=False)
    out2 = jax.block_until_ready(basic_block_forward(x2, p2))
    ref2 = basic_block_reference(x2, p2)
    np.testing.assert_allclose(np.asarray(out2), np.asarray(ref2),
                               rtol=1e-4, atol=1e-4)

    # Case 3: bf16 MXU operands (v5e/v6e/v7x throughput path); BN statistics
    # and all element-wise math stay in f32, only matmul rounding differs.
    out3 = jax.block_until_ready(
        basic_block_forward(x1, p1, matmul_dtype=jnp.bfloat16))
    np.testing.assert_allclose(np.asarray(out3), np.asarray(ref1),
                               rtol=0.15, atol=0.15)

    print("KERNEL_OK")
</pallas_src>

<mosaic_0001>
module attributes {stable_mosaic.version = 11 : i64} {
  func.func @_conv1_kernel(%arg0: i32, %arg1: memref<1x18x18x4xf32, #tpu.memory_space<vmem>>, %arg2: memref<36x8xf32, #tpu.memory_space<vmem>>, %arg3: memref<4x8xf32, #tpu.memory_space<vmem>>, %arg4: memref<1x256x8xf32, #tpu.memory_space<vmem>>, %arg5: memref<1x2x8xf32, #tpu.memory_space<vmem>>, %arg6: memref<1x256x8xf32, #tpu.memory_space<vmem>>, %arg7: memref<1x2x8xf32, #tpu.memory_space<vmem>>) attributes {dimension_semantics = [#tpu.dimension_semantics<parallel>], iteration_bounds = array<i64: 2>, scalar_prefetch = 0 : i64, scratch_operands = 0 : i64, tpu.core_type = #tpu.core_type<tc>, window_params = [{transform_indices = @transform_0, window_bounds = array<i64: 1, 18, 18, 4>}, {pipeline_mode = #tpu.pipeline_mode<synchronous>, transform_indices = @transform_1, window_bounds = array<i64: 36, 8>}, {pipeline_mode = #tpu.pipeline_mode<synchronous>, transform_indices = @transform_2, window_bounds = array<i64: 4, 8>}, {transform_indices = @transform_3, window_bounds = array<i64: 1, 256, 8>}, {transform_indices = @transform_4, window_bounds = array<i64: 1, 2, 8>}, {transform_indices = @transform_5, window_bounds = array<i64: 1, 256, 8>}, {transform_indices = @transform_6, window_bounds = array<i64: 1, 2, 8>}]} {
    %c0 = arith.constant 0 : index
    %c0_0 = arith.constant 0 : index
    %c0_1 = arith.constant 0 : index
    %c0_2 = arith.constant 0 : index
    %0 = vector.load %arg1[%c0, %c0_0, %c0_1, %c0_2] : memref<1x18x18x4xf32, #tpu.memory_space<vmem>>, vector<1x16x16x4xf32>
    %1 = vector.shape_cast %0 : vector<1x16x16x4xf32> to vector<16x16x4xf32>
    %2 = vector.shape_cast %1 : vector<16x16x4xf32> to vector<256x4xf32>
    %c0_3 = arith.constant 0 : index
    %c0_4 = arith.constant 0 : index
    %c1 = arith.constant 1 : index
    %c0_5 = arith.constant 0 : index
    %3 = vector.load %arg1[%c0_3, %c0_4, %c1, %c0_5] : memref<1x18x18x4xf32, #tpu.memory_space<vmem>>, vector<1x16x16x4xf32>
    %4 = vector.shape_cast %3 : vector<1x16x16x4xf32> to vector<16x16x4xf32>
    %5 = vector.shape_cast %4 : vector<16x16x4xf32> to vector<256x4xf32>
    %c0_6 = arith.constant 0 : index
    %c0_7 = arith.constant 0 : index
    %c2 = arith.constant 2 : index
    %c0_8 = arith.constant 0 : index
    %6 = vector.load %arg1[%c0_6, %c0_7, %c2, %c0_8] : memref<1x18x18x4xf32, #tpu.memory_space<vmem>>, vector<1x16x16x4xf32>
    %7 = vector.shape_cast %6 : vector<1x16x16x4xf32> to vector<16x16x4xf32>
    %8 = vector.shape_cast %7 : vector<16x16x4xf32> to vector<256x4xf32>
    %c0_9 = arith.constant 0 : index
    %c1_10 = arith.constant 1 : index
    %c0_11 = arith.constant 0 : index
    %c0_12 = arith.constant 0 : index
    %9 = vector.load %arg1[%c0_9, %c1_10, %c0_11, %c0_12] : memref<1x18x18x4xf32, #tpu.memory_space<vmem>>, vector<1x16x16x4xf32>
    %10 = vector.shape_cast %9 : vector<1x16x16x4xf32> to vector<16x16x4xf32>
    %11 = vector.shape_cast %10 : vector<16x16x4xf32> to vector<256x4xf32>
    %c0_13 = arith.constant 0 : index
    %c1_14 = arith.constant 1 : index
    %c1_15 = arith.constant 1 : index
    %c0_16 = arith.constant 0 : index
    %12 = vector.load %arg1[%c0_13, %c1_14, %c1_15, %c0_16] : memref<1x18x18x4xf32, #tpu.memory_space<vmem>>, vector<1x16x16x4xf32>
    %13 = vector.shape_cast %12 : vector<1x16x16x4xf32> to vector<16x16x4xf32>
    %14 = vector.shape_cast %13 : vector<16x16x4xf32> to vector<256x4xf32>
    %c0_17 = arith.constant 0 : index
    %c1_18 = arith.constant 1 : index
    %c2_19 = arith.constant 2 : index
    %c0_20 = arith.constant 0 : index
    %15 = vector.load %arg1[%c0_17, %c1_18, %c2_19, %c0_20] : memref<1x18x18x4xf32, #tpu.memory_space<vmem>>, vector<1x16x16x4xf32>
    %16 = vector.shape_cast %15 : vector<1x16x16x4xf32> to vector<16x16x4xf32>
    %17 = vector.shape_cast %16 : vector<16x16x4xf32> to vector<256x4xf32>
    %c0_21 = arith.constant 0 : index
    %c2_22 = arith.constant 2 : index
    %c0_23 = arith.constant 0 : index
    %c0_24 = arith.constant 0 : index
    %18 = vector.load %arg1[%c0_21, %c2_22, %c0_23, %c0_24] : memref<1x18x18x4xf32, #tpu.memory_space<vmem>>, vector<1x16x16x4xf32>
    %19 = vector.shape_cast %18 : vector<1x16x16x4xf32> to vector<16x16x4xf32>
    %20 = vector.shape_cast %19 : vector<16x16x4xf32> to vector<256x4xf32>
    %c0_25 = arith.constant 0 : index
    %c2_26 = arith.constant 2 : index
    %c1_27 = arith.constant 1 : index
    %c0_28 = arith.constant 0 : index
    %21 = vector.load %arg1[%c0_25, %c2_26, %c1_27, %c0_28] : memref<1x18x18x4xf32, #tpu.memory_space<vmem>>, vector<1x16x16x4xf32>
    %22 = vector.shape_cast %21 : vector<1x16x16x4xf32> to vector<16x16x4xf32>
    %23 = vector.shape_cast %22 : vector<16x16x4xf32> to vector<256x4xf32>
    %c0_29 = arith.constant 0 : index
    %c2_30 = arith.constant 2 : index
    %c2_31 = arith.constant 2 : index
    %c0_32 = arith.constant 0 : index
    %24 = vector.load %arg1[%c0_29, %c2_30, %c2_31, %c0_32] : memref<1x18x18x4xf32, #tpu.memory_space<vmem>>, vector<1x16x16x4xf32>
    %25 = vector.shape_cast %24 : vector<1x16x16x4xf32> to vector<16x16x4xf32>
    %26 = vector.shape_cast %25 : vector<16x16x4xf32> to vector<256x4xf32>
    %27 = tpu.concatenate %2, %5, %8, %11, %14, %17, %20, %23, %26 in 1 : vector<256x4xf32>, vector<256x4xf32>, vector<256x4xf32>, vector<256x4xf32>, vector<256x4xf32>, vector<256x4xf32>, vector<256x4xf32>, vector<256x4xf32>, vector<256x4xf32> -> vector<256x36xf32>
    %c0_33 = arith.constant 0 : index
    %c0_34 = arith.constant 0 : index
    %28 = vector.load %arg2[%c0_33, %c0_34] : memref<36x8xf32, #tpu.memory_space<vmem>>, vector<36x8xf32>
    %cst = arith.constant dense<0.000000e+00> : vector<256x8xf32>
    %29 = tpu.matmul %27, %28, %cst {dimension_numbers = #tpu.dot_dimension_numbers<[1], [0], [0], [1], [0, 0, 1, 1], [], []>} : vector<256x36xf32>, vector<36x8xf32>, vector<256x8xf32> -> vector<256x8xf32>
    %c0_35 = arith.constant 0 : index
    %c0_36 = arith.constant 0 : index
    %c0_37 = arith.constant 0 : index
    %30 = vector.load %arg4[%c0_35, %c0_36, %c0_37] : memref<1x256x8xf32, #tpu.memory_space<vmem>>, vector<1x256x8xf32>
    %31 = vector.shape_cast %30 : vector<1x256x8xf32> to vector<256x8xf32>
    %32 = vector.shape_cast %29 : vector<256x8xf32> to vector<1x256x8xf32>
    tpu.vector_store %arg4[%c0_35, %c0_36, %c0_37], %32 {strides = array<i32>} : memref<1x256x8xf32, #tpu.memory_space<vmem>>, vector<1x256x8xf32>,
    %cst_38 = arith.constant dense<0.000000e+00> : vector<8xf32>
    %33 = vector.multi_reduction <add>, %29, %cst_38 [0] : vector<256x8xf32> to vector<8xf32>
    %34 = vector.shape_cast %33 : vector<8xf32> to vector<1x8xf32>
    %c0_39 = arith.constant 0 : index
    %c0_40 = arith.constant 0 : index
    %c0_41 = arith.constant 0 : index
    %35 = vector.load %arg5[%c0_39, %c0_40, %c0_41] : memref<1x2x8xf32, #tpu.memory_space<vmem>>, vector<1x1x8xf32>
    %36 = vector.shape_cast %35 : vector<1x1x8xf32> to vector<1x8xf32>
    %37 = vector.shape_cast %34 : vector<1x8xf32> to vector<1x1x8xf32>
    tpu.vector_store %arg5[%c0_39, %c0_40, %c0_41], %37 {strides = array<i32>} : memref<1x2x8xf32, #tpu.memory_space<vmem>>, vector<1x1x8xf32>,
    %38 = arith.mulf %29, %29 : vector<256x8xf32>
    %cst_42 = arith.constant dense<0.000000e+00> : vector<8xf32>
    %39 = vector.multi_reduction <add>, %38, %cst_42 [0] : vector<256x8xf32> to vector<8xf32>
    %40 = vector.shape_cast %39 : vector<8xf32> to vector<1x8xf32>
    %c0_43 = arith.constant 0 : index
    %c1_44 = arith.constant 1 : index
    %c0_45 = arith.constant 0 : index
    %41 = vector.load %arg5[%c0_43, %c1_44, %c0_45] : memref<1x2x8xf32, #tpu.memory_space<vmem>>, vector<1x1x8xf32>
    %42 = vector.shape_cast %41 : vector<1x1x8xf32> to vector<1x8xf32>
    %43 = vector.shape_cast %40 : vector<1x8xf32> to vector<1x1x8xf32>
    tpu.vector_store %arg5[%c0_43, %c1_44, %c0_45], %43 {strides = array<i32>} : memref<1x2x8xf32, #tpu.memory_space<vmem>>, vector<1x1x8xf32>,
    %c0_46 = arith.constant 0 : index
    %c1_47 = arith.constant 1 : index
    %c1_48 = arith.constant 1 : index
    %c0_49 = arith.constant 0 : index
    %44 = vector.load %arg1[%c0_46, %c1_47, %c1_48, %c0_49] : memref<1x18x18x4xf32, #tpu.memory_space<vmem>>, vector<1x16x16x4xf32>
    %45 = vector.shape_cast %44 : vector<1x16x16x4xf32> to vector<16x16x4xf32>
    %46 = vector.shape_cast %45 : vector<16x16x4xf32> to vector<256x4xf32>
    %c0_50 = arith.constant 0 : index
    %c0_51 = arith.constant 0 : index
    %47 = vector.load %arg3[%c0_50, %c0_51] : memref<4x8xf32, #tpu.memory_space<vmem>>, vector<4x8xf32>
    %cst_52 = arith.constant dense<0.000000e+00> : vector<256x8xf32>
    %48 = tpu.matmul %46, %47, %cst_52 {dimension_numbers = #tpu.dot_dimension_numbers<[1], [0], [0], [1], [0, 0, 1, 1], [], []>} : vector<256x4xf32>, vector<4x8xf32>, vector<256x8xf32> -> vector<256x8xf32>
    %c0_53 = arith.constant 0 : index
    %c0_54 = arith.constant 0 : index
    %c0_55 = arith.constant 0 : index
    %49 = vector.load %arg6[%c0_53, %c0_54, %c0_55] : memref<1x256x8xf32, #tpu.memory_space<vmem>>, vector<1x256x8xf32>
    %50 = vector.shape_cast %49 : vector<1x256x8xf32> to vector<256x8xf32>
    %51 = vector.shape_cast %48 : vector<256x8xf32> to vector<1x256x8xf32>
    tpu.vector_store %arg6[%c0_53, %c0_54, %c0_55], %51 {strides = array<i32>} : memref<1x256x8xf32, #tpu.memory_space<vmem>>, vector<1x256x8xf32>,
    %cst_56 = arith.constant dense<0.000000e+00> : vector<8xf32>
    %52 = vector.multi_reduction <add>, %48, %cst_56 [0] : vector<256x8xf32> to vector<8xf32>
    %53 = vector.shape_cast %52 : vector<8xf32> to vector<1x8xf32>
    %c0_57 = arith.constant 0 : index
    %c0_58 = arith.constant 0 : index
    %c0_59 = arith.constant 0 : index
    %54 = vector.load %arg7[%c0_57, %c0_58, %c0_59] : memref<1x2x8xf32, #tpu.memory_space<vmem>>, vector<1x1x8xf32>
    %55 = vector.shape_cast %54 : vector<1x1x8xf32> to vector<1x8xf32>
    %56 = vector.shape_cast %53 : vector<1x8xf32> to vector<1x1x8xf32>
    tpu.vector_store %arg7[%c0_57, %c0_58, %c0_59], %56 {strides = array<i32>} : memref<1x2x8xf32, #tpu.memory_space<vmem>>, vector<1x1x8xf32>,
    %57 = arith.mulf %48, %48 : vector<256x8xf32>
    %cst_60 = arith.constant dense<0.000000e+00> : vector<8xf32>
    %58 = vector.multi_reduction <add>, %57, %cst_60 [0] : vector<256x8xf32> to vector<8xf32>
    %59 = vector.shape_cast %58 : vector<8xf32> to vector<1x8xf32>
    %c0_61 = arith.constant 0 : index
    %c1_62 = arith.constant 1 : index
    %c0_63 = arith.constant 0 : index
    %60 = vector.load %arg7[%c0_61, %c1_62, %c0_63] : memref<1x2x8xf32, #tpu.memory_space<vmem>>, vector<1x1x8xf32>
    %61 = vector.shape_cast %60 : vector<1x1x8xf32> to vector<1x8xf32>
    %62 = vector.shape_cast %59 : vector<1x8xf32> to vector<1x1x8xf32>
    tpu.vector_store %arg7[%c0_61, %c1_62, %c0_63], %62 {strides = array<i32>} : memref<1x2x8xf32, #tpu.memory_space<vmem>>, vector<1x1x8xf32>,
    return
  }
  func.func @transform_0(%arg0: i32) -> (i32, i32, i32, i32) {
    %c0_i32 = arith.constant 0 : i32
    %c0_i32_0 = arith.constant 0 : i32
    %c0_i32_1 = arith.constant 0 : i32
    %c0_i32_2 = arith.constant 0 : i32
    return %arg0, %c0_i32, %c0_i32_0, %c0_i32_1 : i32, i32, i32, i32
  }
  func.func @transform_1(%arg0: i32) -> (i32, i32) {
    %c0_i32 = arith.constant 0 : i32
    %c0_i32_0 = arith.constant 0 : i32
    %c0_i32_1 = arith.constant 0 : i32
    return %c0_i32, %c0_i32_0 : i32, i32
  }
  func.func @transform_2(%arg0: i32) -> (i32, i32) {
    %c0_i32 = arith.constant 0 : i32
    %c0_i32_0 = arith.constant 0 : i32
    %c0_i32_1 = arith.constant 0 : i32
    return %c0_i32, %c0_i32_0 : i32, i32
  }
  func.func @transform_3(%arg0: i32) -> (i32, i32, i32) {
    %c0_i32 = arith.constant 0 : i32
    %c0_i32_0 = arith.constant 0 : i32
    %c0_i32_1 = arith.constant 0 : i32
    return %arg0, %c0_i32, %c0_i32_0 : i32, i32, i32
  }
  func.func @transform_4(%arg0: i32) -> (i32, i32, i32) {
    %c0_i32 = arith.constant 0 : i32
    %c0_i32_0 = arith.constant 0 : i32
    %c0_i32_1 = arith.constant 0 : i32
    return %arg0, %c0_i32, %c0_i32_0 : i32, i32, i32
  }
  func.func @transform_5(%arg0: i32) -> (i32, i32, i32) {
    %c0_i32 = arith.constant 0 : i32
    %c0_i32_0 = arith.constant 0 : i32
    %c0_i32_1 = arith.constant 0 : i32
    return %arg0, %c0_i32, %c0_i32_0 : i32, i32, i32
  }
  func.func @transform_6(%arg0: i32) -> (i32, i32, i32) {
    %c0_i32 = arith.constant 0 : i32
    %c0_i32_0 = arith.constant 0 : i32
    %c0_i32_1 = arith.constant 0 : i32
    return %arg0, %c0_i32, %c0_i32_0 : i32, i32, i32
  }
}

module attributes {stable_mosaic.version = 11 : i64} {
  func.func @_conv2_kernel(%arg0: i32, %arg1: memref<1x256x8xf32, #tpu.memory_space<vmem>>, %arg2: memref<2x8xf32, #tpu.memory_space<vmem>>, %arg3: memref<72x8xf32, #tpu.memory_space<vmem>>, %arg4: memref<1x256x8xf32, #tpu.memory_space<vmem>>, %arg5: memref<1x2x8xf32, #tpu.memory_space<vmem>>, %arg6: memref<18x18x8xf32, #tpu.memory_space<vmem>>) attributes {dimension_semantics = [#tpu.dimension_semantics<parallel>], iteration_bounds = array<i64: 2>, scalar_prefetch = 0 : i64, scratch_operands = 1 : i64, tpu.core_type = #tpu.core_type<tc>, window_params = [{transform_indices = @transform_0, window_bounds = array<i64: 1, 256, 8>}, {pipeline_mode = #tpu.pipeline_mode<synchronous>, transform_indices = @transform_1, window_bounds = array<i64: 2, 8>}, {pipeline_mode = #tpu.pipeline_mode<synchronous>, transform_indices = @transform_2, window_bounds = array<i64: 72, 8>}, {transform_indices = @transform_3, window_bounds = array<i64: 1, 256, 8>}, {transform_indices = @transform_4, window_bounds = array<i64: 1, 2, 8>}]} {
    %c0 = arith.constant 0 : index
    %c0_0 = arith.constant 0 : index
    %c0_1 = arith.constant 0 : index
    %0 = vector.load %arg1[%c0, %c0_0, %c0_1] : memref<1x256x8xf32, #tpu.memory_space<vmem>>, vector<1x256x8xf32>
    %1 = vector.shape_cast %0 : vector<1x256x8xf32> to vector<256x8xf32>
    %c0_2 = arith.constant 0 : index
    %c0_3 = arith.constant 0 : index
    %2 = vector.load %arg2[%c0_2, %c0_3] : memref<2x8xf32, #tpu.memory_space<vmem>>, vector<1x8xf32>
    %3 = vector.broadcast %2 : vector<1x8xf32> to vector<256x8xf32>
    %4 = arith.mulf %1, %3 : vector<256x8xf32>
    %c1 = arith.constant 1 : index
    %c0_4 = arith.constant 0 : index
    %5 = vector.load %arg2[%c1, %c0_4] : memref<2x8xf32, #tpu.memory_space<vmem>>, vector<1x8xf32>
    %6 = vector.broadcast %5 : vector<1x8xf32> to vector<256x8xf32>
    %7 = arith.addf %4, %6 : vector<256x8xf32>
    %cst = arith.constant 0.000000e+00 : f32
    %8 = vector.broadcast %cst : f32 to vector<256x8xf32>
    %9 = arith.maximumf %7, %8 : vector<256x8xf32>
    %cst_5 = arith.constant 0.000000e+00 : f32
    %10 = vector.broadcast %cst_5 : f32 to vector<1x18x8xf32>
    %cst_6 = arith.constant 0.000000e+00 : f32
    %11 = vector.broadcast %cst_6 : f32 to vector<18x1x8xf32>
    %c0_7 = arith.constant 0 : index
    %c0_8 = arith.constant 0 : index
    %c0_9 = arith.constant 0 : index
    %12 = vector.load %arg6[%c0_7, %c0_8, %c0_9] : memref<18x18x8xf32, #tpu.memory_space<vmem>>, vector<1x18x8xf32>
    tpu.vector_store %arg6[%c0_7, %c0_8, %c0_9], %10 {strides = array<i32>} : memref<18x18x8xf32, #tpu.memory_space<vmem>>, vector<1x18x8xf32>,
    %c17 = arith.constant 17 : index
    %c0_10 = arith.constant 0 : index
    %c0_11 = arith.constant 0 : index
    %13 = vector.load %arg6[%c17, %c0_10, %c0_11] : memref<18x18x8xf32, #tpu.memory_space<vmem>>, vector<1x18x8xf32>
    tpu.vector_store %arg6[%c17, %c0_10, %c0_11], %10 {strides = array<i32>} : memref<18x18x8xf32, #tpu.memory_space<vmem>>, vector<1x18x8xf32>,
    %c0_12 = arith.constant 0 : index
    %c0_13 = arith.constant 0 : index
    %c0_14 = arith.constant 0 : index
    %14 = vector.load %arg6[%c0_12, %c0_13, %c0_14] : memref<18x18x8xf32, #tpu.memory_space<vmem>>, vector<18x1x8xf32>
    tpu.vector_store %arg6[%c0_12, %c0_13, %c0_14], %11 {strides = array<i32>} : memref<18x18x8xf32, #tpu.memory_space<vmem>>, vector<18x1x8xf32>,
    %c0_15 = arith.constant 0 : index
    %c17_16 = arith.constant 17 : index
    %c0_17 = arith.constant 0 : index
    %15 = vector.load %arg6[%c0_15, %c17_16, %c0_17] : memref<18x18x8xf32, #tpu.memory_space<vmem>>, vector<18x1x8xf32>
    tpu.vector_store %arg6[%c0_15, %c17_16, %c0_17], %11 {strides = array<i32>} : memref<18x18x8xf32, #tpu.memory_space<vmem>>, vector<18x1x8xf32>,
    %16 = vector.shape_cast %9 : vector<256x8xf32> to vector<16x16x8xf32>
    %c1_18 = arith.constant 1 : index
    %c1_19 = arith.constant 1 : index
    %c0_20 = arith.constant 0 : index
    %17 = vector.load %arg6[%c1_18, %c1_19, %c0_20] : memref<18x18x8xf32, #tpu.memory_space<vmem>>, vector<16x16x8xf32>
    tpu.vector_store %arg6[%c1_18, %c1_19, %c0_20], %16 {strides = array<i32>} : memref<18x18x8xf32, #tpu.memory_space<vmem>>, vector<16x16x8xf32>,
    %c0_21 = arith.constant 0 : index
    %c0_22 = arith.constant 0 : index
    %c0_23 = arith.constant 0 : index
    %18 = vector.load %arg6[%c0_21, %c0_22, %c0_23] : memref<18x18x8xf32, #tpu.memory_space<vmem>>, vector<16x16x8xf32>
    %19 = vector.shape_cast %18 : vector<16x16x8xf32> to vector<256x8xf32>
    %c0_24 = arith.constant 0 : index
    %c1_25 = arith.constant 1 : index
    %c0_26 = arith.constant 0 : index
    %20 = vector.load %arg6[%c0_24, %c1_25, %c0_26] : memref<18x18x8xf32, #tpu.memory_space<vmem>>, vector<16x16x8xf32>
    %21 = vector.shape_cast %20 : vector<16x16x8xf32> to vector<256x8xf32>
    %c0_27 = arith.constant 0 : index
    %c2 = arith.constant 2 : index
    %c0_28 = arith.constant 0 : index
    %22 = vector.load %arg6[%c0_27, %c2, %c0_28] : memref<18x18x8xf32, #tpu.memory_space<vmem>>, vector<16x16x8xf32>
    %23 = vector.shape_cast %22 : vector<16x16x8xf32> to vector<256x8xf32>
    %c1_29 = arith.constant 1 : index
    %c0_30 = arith.constant 0 : index
    %c0_31 = arith.constant 0 : index
    %24 = vector.load %arg6[%c1_29, %c0_30, %c0_31] : memref<18x18x8xf32, #tpu.memory_space<vmem>>, vector<16x16x8xf32>
    %25 = vector.shape_cast %24 : vector<16x16x8xf32> to vector<256x8xf32>
    %c1_32 = arith.constant 1 : index
    %c1_33 = arith.constant 1 : index
    %c0_34 = arith.constant 0 : index
    %26 = vector.load %arg6[%c1_32, %c1_33, %c0_34] : memref<18x18x8xf32, #tpu.memory_space<vmem>>, vector<16x16x8xf32>
    %27 = vector.shape_cast %26 : vector<16x16x8xf32> to vector<256x8xf32>
    %c1_35 = arith.constant 1 : index
    %c2_36 = arith.constant 2 : index
    %c0_37 = arith.constant 0 : index
    %28 = vector.load %arg6[%c1_35, %c2_36, %c0_37] : memref<18x18x8xf32, #tpu.memory_space<vmem>>, vector<16x16x8xf32>
    %29 = vector.shape_cast %28 : vector<16x16x8xf32> to vector<256x8xf32>
    %c2_38 = arith.constant 2 : index
    %c0_39 = arith.constant 0 : index
    %c0_40 = arith.constant 0 : index
    %30 = vector.load %arg6[%c2_38, %c0_39, %c0_40] : memref<18x18x8xf32, #tpu.memory_space<vmem>>, vector<16x16x8xf32>
    %31 = vector.shape_cast %30 : vector<16x16x8xf32> to vector<256x8xf32>
    %c2_41 = arith.constant 2 : index
    %c1_42 = arith.constant 1 : index
    %c0_43 = arith.constant 0 : index
    %32 = vector.load %arg6[%c2_41, %c1_42, %c0_43] : memref<18x18x8xf32, #tpu.memory_space<vmem>>, vector<16x16x8xf32>
    %33 = vector.shape_cast %32 : vector<16x16x8xf32> to vector<256x8xf32>
    %c2_44 = arith.constant 2 : index
    %c2_45 = arith.constant 2 : index
    %c0_46 = arith.constant 0 : index
    %34 = vector.load %arg6[%c2_44, %c2_45, %c0_46] : memref<18x18x8xf32, #tpu.memory_space<vmem>>, vector<16x16x8xf32>
    %35 = vector.shape_cast %34 : vector<16x16x8xf32> to vector<256x8xf32>
    %36 = tpu.concatenate %19, %21, %23, %25, %27, %29, %31, %33, %35 in 1 : vector<256x8xf32>, vector<256x8xf32>, vector<256x8xf32>, vector<256x8xf32>, vector<256x8xf32>, vector<256x8xf32>, vector<256x8xf32>, vector<256x8xf32>, vector<256x8xf32> -> vector<256x72xf32>
    %c0_47 = arith.constant 0 : index
    %c0_48 = arith.constant 0 : index
    %37 = vector.load %arg3[%c0_47, %c0_48] : memref<72x8xf32, #tpu.memory_space<vmem>>, vector<72x8xf32>
    %cst_49 = arith.constant dense<0.000000e+00> : vector<256x8xf32>
    %38 = tpu.matmul %36, %37, %cst_49 {dimension_numbers = #tpu.dot_dimension_numbers<[1], [0], [0], [1], [0, 0, 1, 1], [], []>} : vector<256x72xf32>, vector<72x8xf32>, vector<256x8xf32> -> vector<256x8xf32>
    %c0_50 = arith.constant 0 : index
    %c0_51 = arith.constant 0 : index
    %c0_52 = arith.constant 0 : index
    %39 = vector.load %arg4[%c0_50, %c0_51, %c0_52] : memref<1x256x8xf32, #tpu.memory_space<vmem>>, vector<1x256x8xf32>
    %40 = vector.shape_cast %39 : vector<1x256x8xf32> to vector<256x8xf32>
    %41 = vector.shape_cast %38 : vector<256x8xf32> to vector<1x256x8xf32>
    tpu.vector_store %arg4[%c0_50, %c0_51, %c0_52], %41 {strides = array<i32>} : memref<1x256x8xf32, #tpu.memory_space<vmem>>, vector<1x256x8xf32>,
    %cst_53 = arith.constant dense<0.000000e+00> : vector<8xf32>
    %42 = vector.multi_reduction <add>, %38, %cst_53 [0] : vector<256x8xf32> to vector<8xf32>
    %43 = vector.shape_cast %42 : vector<8xf32> to vector<1x8xf32>
    %c0_54 = arith.constant 0 : index
    %c0_55 = arith.constant 0 : index
    %c0_56 = arith.constant 0 : index
    %44 = vector.load %arg5[%c0_54, %c0_55, %c0_56] : memref<1x2x8xf32, #tpu.memory_space<vmem>>, vector<1x1x8xf32>
    %45 = vector.shape_cast %44 : vector<1x1x8xf32> to vector<1x8xf32>
    %46 = vector.shape_cast %43 : vector<1x8xf32> to vector<1x1x8xf32>
    tpu.vector_store %arg5[%c0_54, %c0_55, %c0_56], %46 {strides = array<i32>} : memref<1x2x8xf32, #tpu.memory_space<vmem>>, vector<1x1x8xf32>,
    %47 = arith.mulf %38, %38 : vector<256x8xf32>
    %cst_57 = arith.constant dense<0.000000e+00> : vector<8xf32>
    %48 = vector.multi_reduction <add>, %47, %cst_57 [0] : vector<256x8xf32> to vector<8xf32>
    %49 = vector.shape_cast %48 : vector<8xf32> to vector<1x8xf32>
    %c0_58 = arith.constant 0 : index
    %c1_59 = arith.constant 1 : index
    %c0_60 = arith.constant 0 : index
    %50 = vector.load %arg5[%c0_58, %c1_59, %c0_60] : memref<1x2x8xf32, #tpu.memory_space<vmem>>, vector<1x1x8xf32>
    %51 = vector.shape_cast %50 : vector<1x1x8xf32> to vector<1x8xf32>
    %52 = vector.shape_cast %49 : vector<1x8xf32> to vector<1x1x8xf32>
    tpu.vector_store %arg5[%c0_58, %c1_59, %c0_60], %52 {strides = array<i32>} : memref<1x2x8xf32, #tpu.memory_space<vmem>>, vector<1x1x8xf32>,
    return
  }
  func.func @transform_0(%arg0: i32) -> (i32, i32, i32) {
    %c0_i32 = arith.constant 0 : i32
    %c0_i32_0 = arith.constant 0 : i32
    %c0_i32_1 = arith.constant 0 : i32
    return %arg0, %c0_i32, %c0_i32_0 : i32, i32, i32
  }
  func.func @transform_1(%arg0: i32) -> (i32, i32) {
    %c0_i32 = arith.constant 0 : i32
    %c0_i32_0 = arith.constant 0 : i32
    %c0_i32_1 = arith.constant 0 : i32
    return %c0_i32, %c0_i32_0 : i32, i32
  }
  func.func @transform_2(%arg0: i32) -> (i32, i32) {
    %c0_i32 = arith.constant 0 : i32
    %c0_i32_0 = arith.constant 0 : i32
    %c0_i32_1 = arith.constant 0 : i32
    return %c0_i32, %c0_i32_0 : i32, i32
  }
  func.func @transform_3(%arg0: i32) -> (i32, i32, i32) {
    %c0_i32 = arith.constant 0 : i32
    %c0_i32_0 = arith.constant 0 : i32
    %c0_i32_1 = arith.constant 0 : i32
    return %arg0, %c0_i32, %c0_i32_0 : i32, i32, i32
  }
  func.func @transform_4(%arg0: i32) -> (i32, i32, i32) {
    %c0_i32 = arith.constant 0 : i32
    %c0_i32_0 = arith.constant 0 : i32
    %c0_i32_1 = arith.constant 0 : i32
    return %arg0, %c0_i32, %c0_i32_0 : i32, i32, i32
  }
}

module attributes {stable_mosaic.version = 11 : i64} {
  func.func @_tail_conv_shortcut_kernel(%arg0: i32, %arg1: memref<1x16x128xf32, #tpu.memory_space<vmem>>, %arg2: memref<1x16x128xf32, #tpu.memory_space<vmem>>, %arg3: memref<2x128xf32, #tpu.memory_space<vmem>>, %arg4: memref<2x128xf32, #tpu.memory_space<vmem>>, %arg5: memref<1x16x128xf32, #tpu.memory_space<vmem>>) attributes {dimension_semantics = [#tpu.dimension_semantics<parallel>], iteration_bounds = array<i64: 2>, scalar_prefetch = 0 : i64, scratch_operands = 0 : i64, tpu.core_type = #tpu.core_type<tc>, window_params = [{transform_indices = @transform_0, window_bounds = array<i64: 1, 16, 128>}, {transform_indices = @transform_1, window_bounds = array<i64: 1, 16, 128>}, {pipeline_mode = #tpu.pipeline_mode<synchronous>, transform_indices = @transform_2, window_bounds = array<i64: 2, 128>}, {pipeline_mode = #tpu.pipeline_mode<synchronous>, transform_indices = @transform_3, window_bounds = array<i64: 2, 128>}, {transform_indices = @transform_4, window_bounds = array<i64: 1, 16, 128>}]} {
    %c0 = arith.constant 0 : index
    %c0_0 = arith.constant 0 : index
    %c0_1 = arith.constant 0 : index
    %0 = vector.load %arg1[%c0, %c0_0, %c0_1] : memref<1x16x128xf32, #tpu.memory_space<vmem>>, vector<1x16x128xf32>
    %1 = vector.shape_cast %0 : vector<1x16x128xf32> to vector<16x128xf32>
    %c0_2 = arith.constant 0 : index
    %c0_3 = arith.constant 0 : index
    %2 = vector.load %arg3[%c0_2, %c0_3] : memref<2x128xf32, #tpu.memory_space<vmem>>, vector<1x128xf32>
    %3 = vector.broadcast %2 : vector<1x128xf32> to vector<16x128xf32>
    %4 = arith.mulf %1, %3 : vector<16x128xf32>
    %c1 = arith.constant 1 : index
    %c0_4 = arith.constant 0 : index
    %5 = vector.load %arg3[%c1, %c0_4] : memref<2x128xf32, #tpu.memory_space<vmem>>, vector<1x128xf32>
    %6 = vector.broadcast %5 : vector<1x128xf32> to vector<16x128xf32>
    %7 = arith.addf %4, %6 : vector<16x128xf32>
    %c0_5 = arith.constant 0 : index
    %c0_6 = arith.constant 0 : index
    %c0_7 = arith.constant 0 : index
    %8 = vector.load %arg2[%c0_5, %c0_6, %c0_7] : memref<1x16x128xf32, #tpu.memory_space<vmem>>, vector<1x16x128xf32>
    %9 = vector.shape_cast %8 : vector<1x16x128xf32> to vector<16x128xf32>
    %c0_8 = arith.constant 0 : index
    %c0_9 = arith.constant 0 : index
    %10 = vector.load %arg4[%c0_8, %c0_9] : memref<2x128xf32, #tpu.memory_space<vmem>>, vector<1x128xf32>
    %11 = vector.broadcast %10 : vector<1x128xf32> to vector<16x128xf32>
    %12 = arith.mulf %9, %11 : vector<16x128xf32>
    %c1_10 = arith.constant 1 : index
    %c0_11 = arith.constant 0 : index
    %13 = vector.load %arg4[%c1_10, %c0_11] : memref<2x128xf32, #tpu.memory_space<vmem>>, vector<1x128xf32>
    %14 = vector.broadcast %13 : vector<1x128xf32> to vector<16x128xf32>
    %15 = arith.addf %12, %14 : vector<16x128xf32>
    %16 = arith.addf %7, %15 : vector<16x128xf32>
    %cst = arith.constant 0.000000e+00 : f32
    %17 = vector.broadcast %cst : f32 to vector<16x128xf32>
    %18 = arith.maximumf %16, %17 : vector<16x128xf32>
    %c0_12 = arith.constant 0 : index
    %c0_13 = arith.constant 0 : index
    %c0_14 = arith.constant 0 : index
    %19 = vector.load %arg5[%c0_12, %c0_13, %c0_14] : memref<1x16x128xf32, #tpu.memory_space<vmem>>, vector<1x16x128xf32>
    %20 = vector.shape_cast %19 : vector<1x16x128xf32> to vector<16x128xf32>
    %21 = vector.shape_cast %18 : vector<16x128xf32> to vector<1x16x128xf32>
    tpu.vector_store %arg5[%c0_12, %c0_13, %c0_14], %21 {strides = array<i32>} : memref<1x16x128xf32, #tpu.memory_space<vmem>>, vector<1x16x128xf32>,
    return
  }
  func.func @transform_0(%arg0: i32) -> (i32, i32, i32) {
    %c0_i32 = arith.constant 0 : i32
    %c0_i32_0 = arith.constant 0 : i32
    %c0_i32_1 = arith.constant 0 : i32
    return %arg0, %c0_i32, %c0_i32_0 : i32, i32, i32
  }
  func.func @transform_1(%arg0: i32) -> (i32, i32, i32) {
    %c0_i32 = arith.constant 0 : i32
    %c0_i32_0 = arith.constant 0 : i32
    %c0_i32_1 = arith.constant 0 : i32
    return %arg0, %c0_i32, %c0_i32_0 : i32, i32, i32
  }
  func.func @transform_2(%arg0: i32) -> (i32, i32) {
    %c0_i32 = arith.constant 0 : i32
    %c0_i32_0 = arith.constant 0 : i32
    %c0_i32_1 = arith.constant 0 : i32
    return %c0_i32, %c0_i32_0 : i32, i32
  }
  func.func @transform_3(%arg0: i32) -> (i32, i32) {
    %c0_i32 = arith.constant 0 : i32
    %c0_i32_0 = arith.constant 0 : i32
    %c0_i32_1 = arith.constant 0 : i32
    return %c0_i32, %c0_i32_0 : i32, i32
  }
  func.func @transform_4(%arg0: i32) -> (i32, i32, i32) {
    %c0_i32 = arith.constant 0 : i32
    %c0_i32_0 = arith.constant 0 : i32
    %c0_i32_1 = arith.constant 0 : i32
    return %arg0, %c0_i32, %c0_i32_0 : i32, i32, i32
  }
}

</mosaic_0001>

<llo_original>
// kernel: tile.14
$region0: #{tile.14}
  %s0 = inlined_call_operand.vmem [shape: f32[2,16,8], index: 0, kind: input, shape index: {}]
  %s1 = inlined_call_operand.vmem [shape: f32[2,128], index: 1, kind: output, shape index: {}]
  $region1: #{tile.14} parent=0
    #allocation0 [shape = 'u8[4096]{0}', space=vmem, size = 0x1000, scoped, tag = 'scoped mem for output reshape']
    %s2 = smov 3
    %v3 = vld [vmem:[%s0] ss:$16 sm:%s2]
    %vm4 = vcmask 64512
    %5 = vst.msk [vmem:[#allocation0] sm:$0x3] %vm4, %v3
    %s6 = scalar_lea.vmem %s0, 15
    %s7 = smov 3
    %v8 = vld [vmem:[%s6] ss:$16 sm:%s7]
    %9 = vrot.lane.b32.xlu0 %v8, 120
    %v10 = vpop.permute.xlu0 %9
    %vm11 = vcmask 1048512
    %12 = vst.msk [vmem:[#allocation0] sm:$0x3] %vm11, %v10
    %s13 = scalar_lea.vmem %s0, 14
    %s14 = smov 3
    %v15 = vld [vmem:[%s13] ss:$16 sm:%s14]
    %16 = vrot.lane.b32.xlu0 %v15, 112
    %v17 = vpop.permute.xlu0 %16
    %vm18 = vcmask 982912
    %19 = vst.msk [vmem:[#allocation0] sm:$0x3] %vm18, %v17
    %s20 = scalar_lea.vmem %s0, 13
    %s21 = smov 3
    %v22 = vld [vmem:[%s20] ss:$16 sm:%s21]
    %23 = vrot.lane.b32.xlu0 %v22, 104
    %v24 = vpop.permute.xlu0 %23
    %vm25 = vcmask 917312
    %26 = vst.msk [vmem:[#allocation0] sm:$0x3] %vm25, %v24
    %s27 = scalar_lea.vmem %s0, 12
    %s28 = smov 3
    %v29 = vld [vmem:[%s27] ss:$16 sm:%s28]
    %30 = vrot.lane.b32.xlu0 %v29, 96
    %v31 = vpop.permute.xlu0 %30
    %vm32 = vcmask 851712
    %33 = vst.msk [vmem:[#allocation0] sm:$0x3] %vm32, %v31
    %s34 = scalar_lea.vmem %s0, 11
    %s35 = smov 3
    %v36 = vld [vmem:[%s34] ss:$16 sm:%s35]
    %37 = vrot.lane.b32.xlu0 %v36, 88
    %v38 = vpop.permute.xlu0 %37
    %vm39 = vcmask 786112
    %40 = vst.msk [vmem:[#allocation0] sm:$0x3] %vm39, %v38
    %s41 = scalar_lea.vmem %s0, 10
    %s42 = smov 3
    %v43 = vld [vmem:[%s41] ss:$16 sm:%s42]
    %44 = vrot.lane.b32.xlu0 %v43, 80
    %v45 = vpop.permute.xlu0 %44
    %vm46 = vcmask 720512
    %47 = vst.msk [vmem:[#allocation0] sm:$0x3] %vm46, %v45
    %s48 = scalar_lea.vmem %s0, 9
    %s49 = smov 3
    %v50 = vld [vmem:[%s48] ss:$16 sm:%s49]
    %51 = vrot.lane.b32.xlu0 %v50, 72
    %v52 = vpop.permute.xlu0 %51
    %vm53 = vcmask 654912
    %54 = vst.msk [vmem:[#allocation0] sm:$0x3] %vm53, %v52
    %s55 = scalar_lea.vmem %s0, 8
    %s56 = smov 3
    %v57 = vld [vmem:[%s55] ss:$16 sm:%s56]
    %58 = vrot.lane.b32.xlu0 %v57, 64
    %v59 = vpop.permute.xlu0 %58
    %vm60 = vcmask 589312
    %61 = vst.msk [vmem:[#allocation0] sm:$0x3] %vm60, %v59
    %s62 = scalar_lea.vmem %s0, 7
    %s63 = smov 3
    %v64 = vld [vmem:[%s62] ss:$16 sm:%s63]
    %65 = vrot.lane.b32.xlu0 %v64, 56
    %v66 = vpop.permute.xlu0 %65
    %vm67 = vcmask 523712
    %68 = vst.msk [vmem:[#allocation0] sm:$0x3] %vm67, %v66
    %s69 = scalar_lea.vmem %s0, 6
    %s70 = smov 3
    %v71 = vld [vmem:[%s69] ss:$16 sm:%s70]
    %72 = vrot.lane.b32.xlu0 %v71, 48
    %v73 = vpop.permute.xlu0 %72
    %vm74 = vcmask 458112
    %75 = vst.msk [vmem:[#allocation0] sm:$0x3] %vm74, %v73
    %s76 = scalar_lea.vmem %s0, 5
    %s77 = smov 3
    %v78 = vld [vmem:[%s76] ss:$16 sm:%s77]
    %79 = vrot.lane.b32.xlu0 %v78, 40
    %v80 = vpop.permute.xlu0 %79
    %vm81 = vcmask 392512
    %82 = vst.msk [vmem:[#allocation0] sm:$0x3] %vm81, %v80
    %s83 = scalar_lea.vmem %s0, 4
    %s84 = smov 3
    %v85 = vld [vmem:[%s83] ss:$16 sm:%s84]
    %86 = vrot.lane.b32.xlu0 %v85, 32
    %v87 = vpop.permute.xlu0 %86
    %vm88 = vcmask 326912
    %89 = vst.msk [vmem:[#allocation0] sm:$0x3] %vm88, %v87
    %s90 = scalar_lea.vmem %s0, 3
    %s91 = smov 3
    %v92 = vld [vmem:[%s90] ss:$16 sm:%s91]
    %93 = vrot.lane.b32.xlu0 %v92, 24
    %v94 = vpop.permute.xlu0 %93
    %vm95 = vcmask 261312
    %96 = vst.msk [vmem:[#allocation0] sm:$0x3] %vm95, %v94
    %s97 = scalar_lea.vmem %s0, 2
    %s98 = smov 3
    %v99 = vld [vmem:[%s97] ss:$16 sm:%s98]
    %100 = vrot.lane.b32.xlu0 %v99, 16
    %v101 = vpop.permute.xlu0 %100
    %vm102 = vcmask 195712
    %103 = vst.msk [vmem:[#allocation0] sm:$0x3] %vm102, %v101
    %s104 = scalar_lea.vmem %s0, 1
    %s105 = smov 3
    %v106 = vld [vmem:[%s104] ss:$16 sm:%s105]
    %107 = vrot.lane.b32.xlu0 %v106, 8
    %v108 = vpop.permute.xlu0 %107
    %vm109 = vcmask 130112
    %110 = vst.msk [vmem:[#allocation0] sm:$0x3] %vm109, %v108
    %s112 = sshllo.u32 0, 2
    %v114 = vld [vmem:[#allocation0] sm:%s112]
    %s115 = sshllo.u32 0, 2
    %116 = vst [vmem:[%s1] sm:%s115] %v114

// kernel: basic_block_forward.5
$region0: #{basic_block_forward.5}
  #allocation0 [shape = 'u32[]', space=smem, size = 0x4, offset = 0x4, fixed_abs, tag = 'smem constant byte address 0x4 - core index']
  #allocation1 [shape = 'u32[144,128]{1,0:T(1,128)}', space=vmem, size = 0x12000, scoped, tag = 'internal scratch']
  %s0 = inlined_call_operand.vmem [shape: f32[2,16,128], index: 0, kind: input, shape index: {}]
  %s1 = inlined_call_operand.vmem [shape: f32[2,16,128], index: 1, kind: input, shape index: {}]
  %s2 = inlined_call_operand.vmem [shape: f32[2,128], index: 2, kind: input, shape index: {}]
  %s3 = inlined_call_operand.vmem [shape: f32[2,128], index: 3, kind: input, shape index: {}]
  %s4 = inlined_call_operand.vmem [shape: f32[2,16,128], index: 4, kind: output, shape index: {}]
  %s5 = sld [smem:[#allocation0]]
  $region49: #{basic_block_forward.5} parent=0
    _
  %s7 = ssub.s32 1, %s5
  %s8 = scalar_select 0, %s7, %s5
  loop: start=0, step=1, limit=4
  $region2: #{basic_block_forward.5} parent=0 // loop_pre_header
    _
  $region3: #{basic_block_forward.5} parent=0 // loop_header
    %s10 = sphi 0, %s14
    %p11 = scmp.ge.s32.totalorder %s10, 4
    %s20 = sphi 0, %s22
    %s23 = sphi 0, %s20
    %s24 = sphi 0, %s23
    %s40 = sphi 0, %s24
    %s46 = sphi 0, %s48
    %s49 = sphi 0, %s46
    %s50 = sphi 0, %s49
    %s66 = sphi 0, %s50
    %s70 = sphi 0, %s70
    %s72 = sphi 0, %s70
    %s73 = sphi 0, %s72
    %s87 = sphi 0, %s73
    %s91 = sphi 0, %s91
    %s93 = sphi 0, %s91
    %s94 = sphi 0, %s93
    %s108 = sphi 0, %s94
    %s114 = sphi 0, %s116
    %s117 = sphi 0, %s114
    %s118 = sphi 0, %s117
    %s134 = sphi 0, %s118
  $region4: #{basic_block_forward.5} parent=0 // loop_header_branch
    %13 = sbr.rel (%p11) target = $region8
  $region5: #{basic_block_forward.5} parent=0 // loop_body
    %s15 = ssub.s32 %s10, 1
    %s16 = ssub.s32 %s10, 2
    %s17 = sadd.s32 %s10, 1
    %s18 = ssub.s32 %s10, %s17
    %p19 = scmp.eq.s32.totalorder %s18, 0
    %s21 = sadd.s32 %s20, 1
    %s22 = scalar_select %p19, %s20, %s21
    %p25 = pneg %p19
    %p26 = scmp.eq.s32.totalorder %s10, 1
    %p27 = por %p25, %p26
    %p28 = scmp.ne.s32.totalorder %s20, %s23
    %p29 = scmp.eq.s32.totalorder %s10, 0
    %p30 = por %p28, %p29
    %p31 = scmp.ne.s32.totalorder %s20, %s23
    %p32 = scmp.eq.s32.totalorder %s15, 1
    %p33 = por %p31, %p32
    %p34 = scmp.ne.s32.totalorder %s23, %s24
    %p35 = scmp.eq.s32.totalorder %s15, 0
    %p36 = por %p34, %p35
    %p37 = scmp.ne.s32.totalorder %s23, %s24
    %p38 = scmp.eq.s32.totalorder %s16, 1
    %p39 = por %p37, %p38
    %p41 = scmp.ne.s32.totalorder %s24, %s40
    %p42 = scmp.eq.s32.totalorder %s16, 0
    %p43 = por %p41, %p42
    %s44 = ssub.s32 %s10, %s17
    %p45 = scmp.eq.s32.totalorder %s44, 0
    %s47 = sadd.s32 %s46, 1
    %s48 = scalar_select %p45, %s46, %s47
    %p51 = pneg %p45
    %p52 = scmp.eq.s32.totalorder %s10, 1
    %p53 = por %p51, %p52
    %p54 = scmp.ne.s32.totalorder %s46, %s49
    %p55 = scmp.eq.s32.totalorder %s10, 0
    %p56 = por %p54, %p55
    %p57 = scmp.ne.s32.totalorder %s46, %s49
    %p58 = scmp.eq.s32.totalorder %s15, 1
    %p59 = por %p57, %p58
    %p60 = scmp.ne.s32.totalorder %s49, %s50
    %p61 = scmp.eq.s32.totalorder %s15, 0
    %p62 = por %p60, %p61
    %p63 = scmp.ne.s32.totalorder %s49, %s50
    %p64 = scmp.eq.s32.totalorder %s16, 1
    %p65 = por %p63, %p64
    %p67 = scmp.ne.s32.totalorder %s50, %s66
    %p68 = scmp.eq.s32.totalorder %s16, 0
    %p69 = por %p67, %p68
    %s71 = sadd.s32 %s70, 1
    %p74 = scmp.eq.s32.totalorder %s10, 1
    %p75 = scmp.ne.s32.totalorder %s70, %s72
    %p76 = scmp.eq.s32.totalorder %s10, 0
    %p77 = por %p75, %p76
    %p78 = scmp.ne.s32.totalorder %s70, %s72
    %p79 = scmp.eq.s32.totalorder %s15, 1
    %p80 = por %p78, %p79
    %p81 = scmp.ne.s32.totalorder %s72, %s73
    %p82 = scmp.eq.s32.totalorder %s15, 0
    %p83 = por %p81, %p82
    %p84 = scmp.ne.s32.totalorder %s72, %s73
    %p85 = scmp.eq.s32.totalorder %s16, 1
    %p86 = por %p84, %p85
    %p88 = scmp.ne.s32.totalorder %s73, %s87
    %p89 = scmp.eq.s32.totalorder %s16, 0
    %p90 = por %p88, %p89
    %s92 = sadd.s32 %s91, 1
    %p95 = scmp.eq.s32.totalorder %s10, 1
    %p96 = scmp.ne.s32.totalorder %s91, %s93
    %p97 = scmp.eq.s32.totalorder %s10, 0
    %p98 = por %p96, %p97
    %p99 = scmp.ne.s32.totalorder %s91, %s93
    %p100 = scmp.eq.s32.totalorder %s15, 1
    %p101 = por %p99, %p100
    %p102 = scmp.ne.s32.totalorder %s93, %s94
    %p103 = scmp.eq.s32.totalorder %s15, 0
    %p104 = por %p102, %p103
    %p105 = scmp.ne.s32.totalorder %s93, %s94
    %p106 = scmp.eq.s32.totalorder %s16, 1
    %p107 = por %p105, %p106
    %p109 = scmp.ne.s32.totalorder %s94, %s108
    %p110 = scmp.eq.s32.totalorder %s16, 0
    %p111 = por %p109, %p110
    %s112 = ssub.s32 %s10, %s17
    %p113 = scmp.eq.s32.totalorder %s112, 0
    %s115 = sadd.s32 %s114, 1
    %s116 = scalar_select %p113, %s114, %s115
    %p119 = pneg %p113
    %p120 = scmp.eq.s32.totalorder %s10, 1
    %p121 = por %p119, %p120
    %p122 = scmp.ne.s32.totalorder %s114, %s117
    %p123 = scmp.eq.s32.totalorder %s10, 0
    %p124 = por %p122, %p123
    %p125 = scmp.ne.s32.totalorder %s114, %s117
    %p126 = scmp.eq.s32.totalorder %s15, 1
    %p127 = por %p125, %p126
    %p128 = scmp.ne.s32.totalorder %s117, %s118
    %p129 = scmp.eq.s32.totalorder %s15, 0
    %p130 = por %p128, %p129
    %p131 = scmp.ne.s32.totalorder %s117, %s118
    %p132 = scmp.eq.s32.totalorder %s16, 1
    %p133 = por %p131, %p132
    %p135 = scmp.ne.s32.totalorder %s118, %s134
    %p136 = scmp.eq.s32.totalorder %s16, 0
    %p137 = por %p135, %p136
    %p138 = scmp.le.s32.totalorder 1, %s10
    %p139 = scmp.lt.s32.totalorder %s10, 3
    %p140 = pnand %p138, %p139
    %p141 = pneg %p140
    // Predicated region
    $region9: #{basic_block_forward.5} parent=5 // pred_check
      _
    $region10: #{basic_block_forward.5} parent=5 // pred_check_branch
      %143 = sbr.rel (%p140) target = $region12
    $region11: #{basic_block_forward.5} parent=5 // pred_region
      %s144 = ssub.s32 %s10, 1
      // Predicated region
      $region13: #{basic_block_forward.5} parent=11 // pred_check
        %p145 = pneg %p83
      $region14: #{basic_block_forward.5} parent=11 // pred_check_branch
        %147 = sbr.rel (%p145) target = $region16
      $region15: #{basic_block_forward.5} parent=11 // pred_region
        _
      $region16: #{basic_block_forward.5} parent=11 // pred_fallthru
        _
      // Predicated region
      $region17: #{basic_block_forward.5} parent=11 // pred_check
        %p148 = pneg %p104
      $region18: #{basic_block_forward.5} parent=11 // pred_check_branch
        %150 = sbr.rel (%p148) target = $region20
      $region19: #{basic_block_forward.5} parent=11 // pred_region
        _
      $region20: #{basic_block_forward.5} parent=11 // pred_fallthru
        _
    $region12: #{basic_block_forward.5} parent=5 // pred_fallthru
      _
    %p151 = scmp.lt.s32.totalorder %s10, 2
    // Predicated region
    $region21: #{basic_block_forward.5} parent=5 // pred_check
      %p152 = pneg %p151
    $region22: #{basic_block_forward.5} parent=5 // pred_check_branch
      %154 = sbr.rel (%p152) target = $region24
    $region23: #{basic_block_forward.5} parent=5 // pred_region
      // Predicated region
      $region25: #{basic_block_forward.5} parent=23 // pred_check
        %p155 = pneg %p30
      $region26: #{basic_block_forward.5} parent=23 // pred_check_branch
        %157 = sbr.rel (%p155) target = $region28
      $region27: #{basic_block_forward.5} parent=23 // pred_region
        %p158 = scmp.lt.s32.totalorder %s10, 1
        %s159 = scalar_select %p158, %s10, 1
        %s160 = smul.addr %s159, 2
        %s161 = smul.addr %s160, 8
        %s162 = scalar_lea.vmem %s0, %s161
      $region28: #{basic_block_forward.5} parent=23 // pred_fallthru
        _
      // Predicated region
      $region29: #{basic_block_forward.5} parent=23 // pred_check
        %p163 = pneg %p56
      $region30: #{basic_block_forward.5} parent=23 // pred_check_branch
        %165 = sbr.rel (%p163) target = $region32
      $region31: #{basic_block_forward.5} parent=23 // pred_region
        %p166 = scmp.lt.s32.totalorder %s10, 1
        %s167 = scalar_select %p166, %s10, 1
        %s168 = smul.addr %s167, 2
        %s169 = smul.addr %s168, 8
        %s170 = scalar_lea.vmem %s1, %s169
      $region32: #{basic_block_forward.5} parent=23 // pred_fallthru
        _
    $region24: #{basic_block_forward.5} parent=5 // pred_fallthru
      _
    %p171 = scmp.le.s32.totalorder 1, %s10
    %p172 = scmp.lt.s32.totalorder %s10, 3
    %p173 = pnand %p171, %p172
    %p174 = pneg %p173
    // Predicated region
    $region33: #{basic_block_forward.5} parent=5 // pred_check
      _
    $region34: #{basic_block_forward.5} parent=5 // pred_check_branch
      %176 = sbr.rel (%p173) target = $region36
    $region35: #{basic_block_forward.5} parent=5 // pred_region
      %s177 = ssub.s32 %s10, 1
      %p178 = scmp.lt.s32.totalorder %s15, 1
      %s179 = scalar_select %p178, %s15, 1
      %s180 = smul.addr %s179, 2
      %s181 = smul.addr %s180, 8
      %s182 = scalar_lea.vmem %s0, %s181
      %p183 = pneg %p36
      %p184 = pneg %p33
      %p185 = scmp.lt.s32.totalorder %s15, 1
      %s186 = scalar_select %p185, %s15, 1
      %s187 = smul.addr %s186, 2
      %s188 = smul.addr %s187, 8
      %s189 = scalar_lea.vmem %s1, %s188
      %p190 = pneg %p62
      %p191 = pneg %p59
      %p192 = pneg %p83
      %p193 = pneg %p80
      %p194 = pneg %p104
      %p195 = pneg %p101
      %p196 = pneg %p130
      %p197 = pneg %p127
      %p198 = scmp.lt.s32.totalorder %s15, 1
      %s199 = scalar_select %p198, %s15, 1
      %s200 = smul.addr %s199, 2
      %s201 = smul.addr %s200, 8
      %s202 = scalar_lea.vmem %s4, %s201
      %p203 = scmp.lt.s32.totalorder %s15, 1
      %s204 = scalar_select %p203, %s15, 1
      %s205 = smul.addr %s204, 2
      %s206 = smul.addr %s205, 8
      %s207 = scalar_lea.vmem %s0, %s206
      %p208 = scmp.lt.s32.totalorder %s15, 1
      %s209 = scalar_select %p208, %s15, 1
      %s210 = smul.addr %s209, 2
      %s211 = smul.addr %s210, 8
      %s212 = scalar_lea.vmem %s1, %s211
      %p213 = scmp.lt.s32.totalorder %s15, 1
      %s214 = scalar_select %p213, %s15, 1
      %s215 = smul.addr %s214, 2
      %s216 = smul.addr %s215, 8
      %s217 = scalar_lea.vmem %s4, %s216
      %v218 = vld [vmem:[%s207] sm:$0xff]
      %v219 = vld [vmem:[%s207 + $0x8] sm:$0xff]
      %v220 = vld [vmem:[%s2] sm:$0x1]
      %v221 = vlaneseq
      %v222 = vshrl.u32 %v221, 7
      %v223 = vsub.s32 0, %v222
      %v224 = vrot.slane %v220, %v223
      %v225 = vmul.f32 %v218, %v224
      %v226 = vmul.f32 %v219, %v224
      %v227 = vld [vmem:[%s2 + $0x1] sm:$0x1]
      %v228 = vlaneseq
      %v229 = vshrl.u32 %v228, 7
      %v230 = vsub.s32 0, %v229
      %v231 = vrot.slane %v227, %v230
      %v232 = vadd.f32 %v225, %v231
      %v233 = vadd.f32 %v226, %v231
      %v234 = vld [vmem:[%s212] sm:$0xff]
      %v235 = vld [vmem:[%s212 + $0x8] sm:$0xff]
      %v236 = vld [vmem:[%s3] sm:$0x1]
      %v237 = vlaneseq
      %v238 = vshrl.u32 %v237, 7
      %v239 = vsub.s32 0, %v238
      %v240 = vrot.slane %v236, %v239
      %v241 = vmul.f32 %v234, %v240
      %v242 = vmul.f32 %v235, %v240
      %v243 = vld [vmem:[%s3 + $0x1] sm:$0x1]
      %v244 = vlaneseq
      %v245 = vshrl.u32 %v244, 7
      %v246 = vsub.s32 0, %v245
      %v247 = vrot.slane %v243, %v246
      %v248 = vadd.f32 %v241, %v247
      %v249 = vadd.f32 %v242, %v247
      %v250 = vadd.f32 %v232, %v248
      %v251 = vadd.f32 %v233, %v249
      %v252 = vmax.f32 %v250, 0.0
      %v253 = vmax.f32 %v251, 0.0
      %254 = vst [vmem:[%s217] sm:$0xff] %v252
      %255 = vst [vmem:[%s217 + $0x8] sm:$0xff] %v253
      %p256 = scmp.lt.s32.totalorder %s15, 1
      %s257 = scalar_select %p256, %s15, 1
      %s258 = smul.addr %s257, 2
      %s259 = smul.addr %s258, 8
      %s260 = scalar_lea.vmem %s4, %s259
      // Predicated region
      $region37: #{basic_block_forward.5} parent=35 // pred_check
        %p261 = pneg %p127
      $region38: #{basic_block_forward.5} parent=35 // pred_check_branch
        %263 = sbr.rel (%p261) target = $region40
      $region39: #{basic_block_forward.5} parent=35 // pred_region
        _
      $region40: #{basic_block_forward.5} parent=35 // pred_fallthru
        _
    $region36: #{basic_block_forward.5} parent=5 // pred_fallthru
      _
    %p264 = scmp.le.s32.totalorder 2, %s10
    // Predicated region
    $region41: #{basic_block_forward.5} parent=5 // pred_check
      %p265 = pneg %p264
    $region42: #{basic_block_forward.5} parent=5 // pred_check_branch
      %267 = sbr.rel (%p265) target = $region44
    $region43: #{basic_block_forward.5} parent=5 // pred_region
      %s268 = ssub.s32 %s10, 2
      // Predicated region
      $region45: #{basic_block_forward.5} parent=43 // pred_check
        %p269 = pneg %p133
      $region46: #{basic_block_forward.5} parent=43 // pred_check_branch
        %271 = sbr.rel (%p269) target = $region48
      $region47: #{basic_block_forward.5} parent=43 // pred_region
        %p272 = scmp.lt.s32.totalorder %s16, 1
        %s273 = scalar_select %p272, %s16, 1
        %s274 = smul.addr %s273, 2
        %s275 = smul.addr %s274, 8
        %s276 = scalar_lea.vmem %s4, %s275
      $region48: #{basic_block_forward.5} parent=43 // pred_fallthru
        _
    $region44: #{basic_block_forward.5} parent=5 // pred_fallthru
      _
  $region6: #{basic_block_forward.5} parent=0 // loop_footer
    %s14 = sadd.s32 1, %s10
  $region7: #{basic_block_forward.5} parent=0 // loop_footer_branch
    %9 = sbr.rel target = $region3
  $region8: #{basic_block_forward.5} parent=0 // loop_exit
    _

// kernel: basic_block_forward.3
$region0: #{basic_block_forward.3}
  #allocation0 [shape = 'u32[]', space=smem, size = 0x4, offset = 0x4, fixed_abs, tag = 'smem constant byte address 0x4 - core index']
  #allocation1 [shape = 'u32[144,128]{1,0:T(1,128)}', space=vmem, size = 0x12000, scoped, tag = 'internal scratch']
  %s0 = inlined_call_operand.vmem [shape: f32[2,18,18,4], index: 0, kind: input, shape index: {}]
  %s1 = inlined_call_operand.vmem [shape: f32[36,8], index: 1, kind: input, shape index: {}]
  %s2 = inlined_call_operand.vmem [shape: f32[4,8], index: 2, kind: input, shape index: {}]
  %s3 = inlined_call_operand.vmem [shape: f32[2,256,8], index: 3, kind: output, shape index: {0}]
  %s4 = inlined_call_operand.vmem [shape: f32[2,2,8], index: 4, kind: output, shape index: {1}]
  %s5 = inlined_call_operand.vmem [shape: f32[2,256,8], index: 5, kind: output, shape index: {2}]
  %s6 = inlined_call_operand.vmem [shape: f32[2,2,8], index: 6, kind: output, shape index: {3}]
  %7 = xla_tuple %s3, %s4, %s5, %s6
  %s8 = sld [smem:[#allocation0]]
  $region69: #{basic_block_forward.3} parent=0
    _
  %s10 = ssub.s32 1, %s8
  %s11 = scalar_select 0, %s10, %s8
  loop: start=0, step=1, limit=4
  $region2: #{basic_block_forward.3} parent=0 // loop_pre_header
    _
  $region3: #{basic_block_forward.3} parent=0 // loop_header
    %s13 = sphi 0, %s17
    %p14 = scmp.ge.s32.totalorder %s13, 4
    %s23 = sphi 0, %s25
    %s26 = sphi 0, %s23
    %s27 = sphi 0, %s26
    %s43 = sphi 0, %s27
    %s47 = sphi 0, %s47
    %s49 = sphi 0, %s47
    %s50 = sphi 0, %s49
    %s64 = sphi 0, %s50
    %s68 = sphi 0, %s68
    %s70 = sphi 0, %s68
    %s71 = sphi 0, %s70
    %s85 = sphi 0, %s71
    %s91 = sphi 0, %s93
    %s94 = sphi 0, %s91
    %s95 = sphi 0, %s94
    %s111 = sphi 0, %s95
    %s117 = sphi 0, %s119
    %s120 = sphi 0, %s117
    %s121 = sphi 0, %s120
    %s137 = sphi 0, %s121
    %s143 = sphi 0, %s145
    %s146 = sphi 0, %s143
    %s147 = sphi 0, %s146
    %s163 = sphi 0, %s147
    %s169 = sphi 0, %s171
    %s172 = sphi 0, %s169
    %s173 = sphi 0, %s172
    %s189 = sphi 0, %s173
  $region4: #{basic_block_forward.3} parent=0 // loop_header_branch
    %16 = sbr.rel (%p14) target = $region8
  $region5: #{basic_block_forward.3} parent=0 // loop_body
    %s18 = ssub.s32 %s13, 1
    %s19 = ssub.s32 %s13, 2
    %s20 = sadd.s32 %s13, 1
    %s21 = ssub.s32 %s13, %s20
    %p22 = scmp.eq.s32.totalorder %s21, 0
    %s24 = sadd.s32 %s23, 1
    %s25 = scalar_select %p22, %s23, %s24
    %p28 = pneg %p22
    %p29 = scmp.eq.s32.totalorder %s13, 1
    %p30 = por %p28, %p29
    %p31 = scmp.ne.s32.totalorder %s23, %s26
    %p32 = scmp.eq.s32.totalorder %s13, 0
    %p33 = por %p31, %p32
    %p34 = scmp.ne.s32.totalorder %s23, %s26
    %p35 = scmp.eq.s32.totalorder %s18, 1
    %p36 = por %p34, %p35
    %p37 = scmp.ne.s32.totalorder %s26, %s27
    %p38 = scmp.eq.s32.totalorder %s18, 0
    %p39 = por %p37, %p38
    %p40 = scmp.ne.s32.totalorder %s26, %s27
    %p41 = scmp.eq.s32.totalorder %s19, 1
    %p42 = por %p40, %p41
    %p44 = scmp.ne.s32.totalorder %s27, %s43
    %p45 = scmp.eq.s32.totalorder %s19, 0
    %p46 = por %p44, %p45
    %s48 = sadd.s32 %s47, 1
    %p51 = scmp.eq.s32.totalorder %s13, 1
    %p52 = scmp.ne.s32.totalorder %s47, %s49
    %p53 = scmp.eq.s32.totalorder %s13, 0
    %p54 = por %p52, %p53
    %p55 = scmp.ne.s32.totalorder %s47, %s49
    %p56 = scmp.eq.s32.totalorder %s18, 1
    %p57 = por %p55, %p56
    %p58 = scmp.ne.s32.totalorder %s49, %s50
    %p59 = scmp.eq.s32.totalorder %s18, 0
    %p60 = por %p58, %p59
    %p61 = scmp.ne.s32.totalorder %s49, %s50
    %p62 = scmp.eq.s32.totalorder %s19, 1
    %p63 = por %p61, %p62
    %p65 = scmp.ne.s32.totalorder %s50, %s64
    %p66 = scmp.eq.s32.totalorder %s19, 0
    %p67 = por %p65, %p66
    %s69 = sadd.s32 %s68, 1
    %p72 = scmp.eq.s32.totalorder %s13, 1
    %p73 = scmp.ne.s32.totalorder %s68, %s70
    %p74 = scmp.eq.s32.totalorder %s13, 0
    %p75 = por %p73, %p74
    %p76 = scmp.ne.s32.totalorder %s68, %s70
    %p77 = scmp.eq.s32.totalorder %s18, 1
    %p78 = por %p76, %p77
    %p79 = scmp.ne.s32.totalorder %s70, %s71
    %p80 = scmp.eq.s32.totalorder %s18, 0
    %p81 = por %p79, %p80
    %p82 = scmp.ne.s32.totalorder %s70, %s71
    %p83 = scmp.eq.s32.totalorder %s19, 1
    %p84 = por %p82, %p83
    %p86 = scmp.ne.s32.totalorder %s71, %s85
    %p87 = scmp.eq.s32.totalorder %s19, 0
    %p88 = por %p86, %p87
    %s89 = ssub.s32 %s13, %s20
    %p90 = scmp.eq.s32.totalorder %s89, 0
    %s92 = sadd.s32 %s91, 1
    %s93 = scalar_select %p90, %s91, %s92
    %p96 = pneg %p90
    %p97 = scmp.eq.s32.totalorder %s13, 1
    %p98 = por %p96, %p97
    %p99 = scmp.ne.s32.totalorder %s91, %s94
    %p100 = scmp.eq.s32.totalorder %s13, 0
    %p101 = por %p99, %p100
    %p102 = scmp.ne.s32.totalorder %s91, %s94
    %p103 = scmp.eq.s32.totalorder %s18, 1
    %p104 = por %p102, %p103
    %p105 = scmp.ne.s32.totalorder %s94, %s95
    %p106 = scmp.eq.s32.totalorder %s18, 0
    %p107 = por %p105, %p106
    %p108 = scmp.ne.s32.totalorder %s94, %s95
    %p109 = scmp.eq.s32.totalorder %s19, 1
    %p110 = por %p108, %p109
    %p112 = scmp.ne.s32.totalorder %s95, %s111
    %p113 = scmp.eq.s32.totalorder %s19, 0
    %p114 = por %p112, %p113
    %s115 = ssub.s32 %s13, %s20
    %p116 = scmp.eq.s32.totalorder %s115, 0
    %s118 = sadd.s32 %s117, 1
    %s119 = scalar_select %p116, %s117, %s118
    %p122 = pneg %p116
    %p123 = scmp.eq.s32.totalorder %s13, 1
    %p124 = por %p122, %p123
    %p125 = scmp.ne.s32.totalorder %s117, %s120
    %p126 = scmp.eq.s32.totalorder %s13, 0
    %p127 = por %p125, %p126
    %p128 = scmp.ne.s32.totalorder %s117, %s120
    %p129 = scmp.eq.s32.totalorder %s18, 1
    %p130 = por %p128, %p129
    %p131 = scmp.ne.s32.totalorder %s120, %s121
    %p132 = scmp.eq.s32.totalorder %s18, 0
    %p133 = por %p131, %p132
    %p134 = scmp.ne.s32.totalorder %s120, %s121
    %p135 = scmp.eq.s32.totalorder %s19, 1
    %p136 = por %p134, %p135
    %p138 = scmp.ne.s32.totalorder %s121, %s137
    %p139 = scmp.eq.s32.totalorder %s19, 0
    %p140 = por %p138, %p139
    %s141 = ssub.s32 %s13, %s20
    %p142 = scmp.eq.s32.totalorder %s141, 0
    %s144 = sadd.s32 %s143, 1
    %s145 = scalar_select %p142, %s143, %s144
    %p148 = pneg %p142
    %p149 = scmp.eq.s32.totalorder %s13, 1
    %p150 = por %p148, %p149
    %p151 = scmp.ne.s32.totalorder %s143, %s146
    %p152 = scmp.eq.s32.totalorder %s13, 0
    %p153 = por %p151, %p152
    %p154 = scmp.ne.s32.totalorder %s143, %s146
    %p155 = scmp.eq.s32.totalorder %s18, 1
    %p156 = por %p154, %p155
    %p157 = scmp.ne.s32.totalorder %s146, %s147
    %p158 = scmp.eq.s32.totalorder %s18, 0
    %p159 = por %p157, %p158
    %p160 = scmp.ne.s32.totalorder %s146, %s147
    %p161 = scmp.eq.s32.totalorder %s19, 1
    %p162 = por %p160, %p161
    %p164 = scmp.ne.s32.totalorder %s147, %s163
    %p165 = scmp.eq.s32.totalorder %s19, 0
    %p166 = por %p164, %p165
    %s167 = ssub.s32 %s13, %s20
    %p168 = scmp.eq.s32.totalorder %s167, 0
    %s170 = sadd.s32 %s169, 1
    %s171 = scalar_select %p168, %s169, %s170
    %p174 = pneg %p168
    %p175 = scmp.eq.s32.totalorder %s13, 1
    %p176 = por %p174, %p175
    %p177 = scmp.ne.s32.totalorder %s169, %s172
    %p178 = scmp.eq.s32.totalorder %s13, 0
    %p179 = por %p177, %p178
    %p180 = scmp.ne.s32.totalorder %s169, %s172
    %p181 = scmp.eq.s32.totalorder %s18, 1
    %p182 = por %p180, %p181
    %p183 = scmp.ne.s32.totalorder %s172, %s173
    %p184 = scmp.eq.s32.totalorder %s18, 0
    %p185 = por %p183, %p184
    %p186 = scmp.ne.s32.totalorder %s172, %s173
    %p187 = scmp.eq.s32.totalorder %s19, 1
    %p188 = por %p186, %p187
    %p190 = scmp.ne.s32.totalorder %s173, %s189
    %p191 = scmp.eq.s32.totalorder %s19, 0
    %p192 = por %p190, %p191
    %p193 = scmp.le.s32.totalorder 1, %s13
    %p194 = scmp.lt.s32.totalorder %s13, 3
    %p195 = pnand %p193, %p194
    %p196 = pneg %p195
    // Predicated region
    $region9: #{basic_block_forward.3} parent=5 // pred_check
      _
    $region10: #{basic_block_forward.3} parent=5 // pred_check_branch
      %198 = sbr.rel (%p195) target = $region12
    $region11: #{basic_block_forward.3} parent=5 // pred_region
      %s199 = ssub.s32 %s13, 1
      // Predicated region
      $region13: #{basic_block_forward.3} parent=11 // pred_check
        %p200 = pneg %p60
      $region14: #{basic_block_forward.3} parent=11 // pred_check_branch
        %202 = sbr.rel (%p200) target = $region16
      $region15: #{basic_block_forward.3} parent=11 // pred_region
        _
      $region16: #{basic_block_forward.3} parent=11 // pred_fallthru
        _
      // Predicated region
      $region17: #{basic_block_forward.3} parent=11 // pred_check
        %p203 = pneg %p81
      $region18: #{basic_block_forward.3} parent=11 // pred_check_branch
        %205 = sbr.rel (%p203) target = $region20
      $region19: #{basic_block_forward.3} parent=11 // pred_region
        _
      $region20: #{basic_block_forward.3} parent=11 // pred_fallthru
        _
    $region12: #{basic_block_forward.3} parent=5 // pred_fallthru
      _
    %p206 = scmp.lt.s32.totalorder %s13, 2
    // Predicated region
    $region21: #{basic_block_forward.3} parent=5 // pred_check
      %p207 = pneg %p206
    $region22: #{basic_block_forward.3} parent=5 // pred_check_branch
      %209 = sbr.rel (%p207) target = $region24
    $region23: #{basic_block_forward.3} parent=5 // pred_region
      // Predicated region
      $region25: #{basic_block_forward.3} parent=23 // pred_check
        %p210 = pneg %p33
      $region26: #{basic_block_forward.3} parent=23 // pred_check_branch
        %212 = sbr.rel (%p210) target = $region28
      $region27: #{basic_block_forward.3} parent=23 // pred_region
        %p213 = scmp.lt.s32.totalorder %s13, 1
        %s214 = scalar_select %p213, %s13, 1
        %s215 = smul.addr %s214, 54
        %s216 = smul.addr %s215, 8
        %s217 = scalar_lea.vmem %s0, %s216
      $region28: #{basic_block_forward.3} parent=23 // pred_fallthru
        _
    $region24: #{basic_block_forward.3} parent=5 // pred_fallthru
      _
    %p218 = scmp.le.s32.totalorder 1, %s13
    %p219 = scmp.lt.s32.totalorder %s13, 3
    %p220 = pnand %p218, %p219
    %p221 = pneg %p220
    // Predicated region
    $region29: #{basic_block_forward.3} parent=5 // pred_check
      _
    $region30: #{basic_block_forward.3} parent=5 // pred_check_branch
      %223 = sbr.rel (%p220) target = $region32
    $region31: #{basic_block_forward.3} parent=5 // pred_region
      %s224 = ssub.s32 %s13, 1
      %p225 = scmp.lt.s32.totalorder %s18, 1
      %s226 = scalar_select %p225, %s18, 1
      %s227 = smul.addr %s226, 54
      %s228 = smul.addr %s227, 8
      %s229 = scalar_lea.vmem %s0, %s228
      %p230 = pneg %p39
      %p231 = pneg %p36
      %p232 = pneg %p60
      %p233 = pneg %p57
      %p234 = pneg %p81
      %p235 = pneg %p78
      %p236 = pneg %p107
      %p237 = pneg %p104
      %p238 = scmp.lt.s32.totalorder %s18, 1
      %s239 = scalar_select %p238, %s18, 1
      %s240 = smul.addr %s239, 32
      %s241 = smul.addr %s240, 8
      %s242 = scalar_lea.vmem %s3, %s241
      %p243 = pneg %p133
      %p244 = pneg %p130
      %p245 = scmp.lt.s32.totalorder %s18, 1
      %s246 = scalar_select %p245, %s18, 1
      %s247 = smul.addr %s246, 2
      %s248 = scalar_lea.vmem %s4, %s247
      %p249 = pneg %p159
      %p250 = pneg %p156
      %p251 = scmp.lt.s32.totalorder %s18, 1
      %s252 = scalar_select %p251, %s18, 1
      %s253 = smul.addr %s252, 32
      %s254 = smul.addr %s253, 8
      %s255 = scalar_lea.vmem %s5, %s254
      %p256 = pneg %p185
      %p257 = pneg %p182
      %p258 = scmp.lt.s32.totalorder %s18, 1
      %s259 = scalar_select %p258, %s18, 1
      %s260 = smul.addr %s259, 2
      %s261 = scalar_lea.vmem %s6, %s260
      %p262 = scmp.lt.s32.totalorder %s18, 1
      %s263 = scalar_select %p262, %s18, 1
      %s264 = smul.addr %s263, 54
      %s265 = smul.addr %s264, 8
      %s266 = scalar_lea.vmem %s0, %s265
      %p267 = scmp.lt.s32.totalorder %s18, 1
      %s268 = scalar_select %p267, %s18, 1
      %s269 = smul.addr %s268, 32
      %s270 = smul.addr %s269, 8
      %s271 = scalar_lea.vmem %s3, %s270
      %p272 = scmp.lt.s32.totalorder %s18, 1
      %s273 = scalar_select %p272, %s18, 1
      %s274 = smul.addr %s273, 2
      %s275 = scalar_lea.vmem %s4, %s274
      %p276 = scmp.lt.s32.totalorder %s18, 1
      %s277 = scalar_select %p276, %s18, 1
      %s278 = smul.addr %s277, 32
      %s279 = smul.addr %s278, 8
      %s280 = scalar_lea.vmem %s5, %s279
      %p281 = scmp.lt.s32.totalorder %s18, 1
      %s282 = scalar_select %p281, %s18, 1
      %s283 = smul.addr %s282, 2
      %s284 = scalar_lea.vmem %s6, %s283
      %v285 = vld [vmem:[%s266] sm:$0xff]
      %v286 = vld [vmem:[%s266 + $0x8] sm:$0xff]
      %v287 = vld [vmem:[%s266 + $0x18] sm:$0xff]
      %v288 = vld [vmem:[%s266 + $0x20] sm:$0xff]
      %v289 = vld [vmem:[%s266 + $0x30] sm:$0xff]
      %v290 = vld [vmem:[%s266 + $0x38] sm:$0xff]
      %v291 = vld [vmem:[%s266 + $0x48] sm:$0xff]
      %v292 = vld [vmem:[%s266 + $0x50] sm:$0xff]
      %v293 = vld [vmem:[%s266 + $0x60] sm:$0xff]
      %v294 = vld [vmem:[%s266 + $0x68] sm:$0xff]
      %v295 = vld [vmem:[%s266 + $0x78] sm:$0xff]
      %v296 = vld [vmem:[%s266 + $0x80] sm:$0xff]
      %v297 = vld [vmem:[%s266 + $0x90] sm:$0xff]
      %v298 = vld [vmem:[%s266 + $0x98] sm:$0xff]
      %v299 = vld [vmem:[%s266 + $0xa8] sm:$0xff]
      %v300 = vld [vmem:[%s266 + $0xb0] sm:$0xff]
      %v301 = vld [vmem:[%s266 + $0xc0] sm:$0xff]
      %v302 = vld [vmem:[%s266 + $0xc8] sm:$0xff]
      %v303 = vld [vmem:[%s266 + $0xd8] sm:$0xff]
      %v304 = vld [vmem:[%s266 + $0xe0] sm:$0xff]
      %v305 = vld [vmem:[%s266 + $0xf0] sm:$0xff]
      %v306 = vld [vmem:[%s266 + $0xf8] sm:$0xff]
      %v307 = vld [vmem:[%s266 + $0x108] sm:$0xff]
      %v308 = vld [vmem:[%s266 + $0x110] sm:$0xff]
      %v309 = vld [vmem:[%s266 + $0x120] sm:$0xff]
      %v310 = vld [vmem:[%s266 + $0x128] sm:$0xff]
      %v311 = vld [vmem:[%s266 + $0x138] sm:$0xff]
      %v312 = vld [vmem:[%s266 + $0x140] sm:$0xff]
      %v313 = vld [vmem:[%s266 + $0x150] sm:$0xff]
      %v314 = vld [vmem:[%s266 + $0x158] sm:$0xff]
      %v315 = vld [vmem:[%s266 + $0x168] sm:$0xff]
      %v316 = vld [vmem:[%s266 + $0x170] sm:$0xff]
      %v317 = vld [vmem:[%s266 + $0x1] sm:$0xff]
      %v318 = vld [vmem:[%s266 + $0x9] sm:$0xff]
      %v319 = vld [vmem:[%s266 + $0x19] sm:$0xff]
      %v320 = vld [vmem:[%s266 + $0x21] sm:$0xff]
      %v321 = vld [vmem:[%s266 + $0x31] sm:$0xff]
      %v322 = vld [vmem:[%s266 + $0x39] sm:$0xff]
      %v323 = vld [vmem:[%s266 + $0x49] sm:$0xff]
      %v324 = vld [vmem:[%s266 + $0x51] sm:$0xff]
      %v325 = vld [vmem:[%s266 + $0x61] sm:$0xff]
      %v326 = vld [vmem:[%s266 + $0x69] sm:$0xff]
      %v327 = vld [vmem:[%s266 + $0x79] sm:$0xff]
      %v328 = vld [vmem:[%s266 + $0x81] sm:$0xff]
      %v329 = vld [vmem:[%s266 + $0x91] sm:$0xff]
      %v330 = vld [vmem:[%s266 + $0x99] sm:$0xff]
      %v331 = vld [vmem:[%s266 + $0xa9] sm:$0xff]
      %v332 = vld [vmem:[%s266 + $0xb1] sm:$0xff]
      %v333 = vld [vmem:[%s266 + $0xc1] sm:$0xff]
      %v334 = vld [vmem:[%s266 + $0xc9] sm:$0xff]
      %v335 = vld [vmem:[%s266 + $0xd9] sm:$0xff]
      %v336 = vld [vmem:[%s266 + $0xe1] sm:$0xff]
      %v337 = vld [vmem:[%s266 + $0xf1] sm:$0xff]
      %v338 = vld [vmem:[%s266 + $0xf9] sm:$0xff]
      %v339 = vld [vmem:[%s266 + $0x109] sm:$0xff]
      %v340 = vld [vmem:[%s266 + $0x111] sm:$0xff]
      %v341 = vld [vmem:[%s266 + $0x121] sm:$0xff]
      %v342 = vld [vmem:[%s266 + $0x129] sm:$0xff]
      %v343 = vld [vmem:[%s266 + $0x139] sm:$0xff]
      %v344 = vld [vmem:[%s266 + $0x141] sm:$0xff]
      %v345 = vld [vmem:[%s266 + $0x151] sm:$0xff]
      %v346 = vld [vmem:[%s266 + $0x159] sm:$0xff]
      %v347 = vld [vmem:[%s266 + $0x169] sm:$0xff]
      %v348 = vld [vmem:[%s266 + $0x171] sm:$0xff]
      %v349 = vld [vmem:[%s266 + $0x2] sm:$0xff]
      %v350 = vld [vmem:[%s266 + $0xa] sm:$0xff]
      %v351 = vld [vmem:[%s266 + $0x1a] sm:$0xff]
      %v352 = vld [vmem:[%s266 + $0x22] sm:$0xff]
      %v353 = vld [vmem:[%s266 + $0x32] sm:$0xff]
      %v354 = vld [vmem:[%s266 + $0x3a] sm:$0xff]
      %v355 = vld [vmem:[%s266 + $0x4a] sm:$0xff]
      %v356 = vld [vmem:[%s266 + $0x52] sm:$0xff]
      %v357 = vld [vmem:[%s266 + $0x62] sm:$0xff]
      %v358 = vld [vmem:[%s266 + $0x6a] sm:$0xff]
      %v359 = vld [vmem:[%s266 + $0x7a] sm:$0xff]
      %v360 = vld [vmem:[%s266 + $0x82] sm:$0xff]
      %v361 = vld [vmem:[%s266 + $0x92] sm:$0xff]
      %v362 = vld [vmem:[%s266 + $0x9a] sm:$0xff]
      %v363 = vld [vmem:[%s266 + $0xaa] sm:$0xff]
      %v364 = vld [vmem:[%s266 + $0xb2] sm:$0xff]
      %v365 = vld [vmem:[%s266 + $0xc2] sm:$0xff]
      %v366 = vld [vmem:[%s266 + $0xca] sm:$0xff]
      %v367 = vld [vmem:[%s266 + $0xda] sm:$0xff]
      %v368 = vld [vmem:[%s266 + $0xe2] sm:$0xff]
      %v369 = vld [vmem:[%s266 + $0xf2] sm:$0xff]
      %v370 = vld [vmem:[%s266 + $0xfa] sm:$0xff]
      %v371 = vld [vmem:[%s266 + $0x10a] sm:$0xff]
      %v372 = vld [vmem:[%s266 + $0x112] sm:$0xff]
      %v373 = vld [vmem:[%s266 + $0x122] sm:$0xff]
      %v374 = vld [vmem:[%s266 + $0x12a] sm:$0xff]
      %v375 = vld [vmem:[%s266 + $0x13a] sm:$0xff]
      %v376 = vld [vmem:[%s266 + $0x142] sm:$0xff]
      %v377 = vld [vmem:[%s266 + $0x152] sm:$0xff]
      %v378 = vld [vmem:[%s266 + $0x15a] sm:$0xff]
      %v379 = vld [vmem:[%s266 + $0x16a] sm:$0xff]
      %v380 = vld [vmem:[%s266 + $0x172] sm:$0xff]
      %s381 = scalar_lea.vmem %s266, 24
      %v382 = vld [vmem:[%s381] sm:$0xff]
      %v383 = vld [vmem:[%s381 + $0x8] sm:$0xff]
      %v384 = vld [vmem:[%s381 + $0x18] sm:$0xff]
      %v385 = vld [vmem:[%s381 + $0x20] sm:$0xff]
      %v386 = vld [vmem:[%s381 + $0x30] sm:$0xff]
      %v387 = vld [vmem:[%s381 + $0x38] sm:$0xff]
      %v388 = vld [vmem:[%s381 + $0x48] sm:$0xff]
      %v389 = vld [vmem:[%s381 + $0x50] sm:$0xff]
      %v390 = vld [vmem:[%s381 + $0x60] sm:$0xff]
      %v391 = vld [vmem:[%s381 + $0x68] sm:$0xff]
      %v392 = vld [vmem:[%s381 + $0x78] sm:$0xff]
      %v393 = vld [vmem:[%s381 + $0x80] sm:$0xff]
      %v394 = vld [vmem:[%s381 + $0x90] sm:$0xff]
      %v395 = vld [vmem:[%s381 + $0x98] sm:$0xff]
      %v396 = vld [vmem:[%s381 + $0xa8] sm:$0xff]
      %v397 = vld [vmem:[%s381 + $0xb0] sm:$0xff]
      %v398 = vld [vmem:[%s381 + $0xc0] sm:$0xff]
      %v399 = vld [vmem:[%s381 + $0xc8] sm:$0xff]
      %v400 = vld [vmem:[%s381 + $0xd8] sm:$0xff]
      %v401 = vld [vmem:[%s381 + $0xe0] sm:$0xff]
      %v402 = vld [vmem:[%s381 + $0xf0] sm:$0xff]
      %v403 = vld [vmem:[%s381 + $0xf8] sm:$0xff]
      %v404 = vld [vmem:[%s381 + $0x108] sm:$0xff]
      %v405 = vld [vmem:[%s381 + $0x110] sm:$0xff]
      %v406 = vld [vmem:[%s381 + $0x120] sm:$0xff]
      %v407 = vld [vmem:[%s381 + $0x128] sm:$0xff]
      %v408 = vld [vmem:[%s381 + $0x138] sm:$0xff]
      %v409 = vld [vmem:[%s381 + $0x140] sm:$0xff]
      %v410 = vld [vmem:[%s381 + $0x150] sm:$0xff]
      %v411 = vld [vmem:[%s381 + $0x158] sm:$0xff]
      %v412 = vld [vmem:[%s381 + $0x168] sm:$0xff]
      %v413 = vld [vmem:[%s381 + $0x170] sm:$0xff]
      %v414 = vld [vmem:[%s381 + $0x1] sm:$0xff]
      %v415 = vld [vmem:[%s381 + $0x9] sm:$0xff]
      %v416 = vld [vmem:[%s381 + $0x19] sm:$0xff]
      %v417 = vld [vmem:[%s381 + $0x21] sm:$0xff]
      %v418 = vld [vmem:[%s381 + $0x31] sm:$0xff]
      %v419 = vld [vmem:[%s381 + $0x39] sm:$0xff]
      %v420 = vld [vmem:[%s381 + $0x49] sm:$0xff]
      %v421 = vld [vmem:[%s381 + $0x51] sm:$0xff]
      %v422 = vld [vmem:[%s381 + $0x61] sm:$0xff]
      %v423 = vld [vmem:[%s381 + $0x69] sm:$0xff]
      %v424 = vld [vmem:[%s381 + $0x79] sm:$0xff]
      %v425 = vld [vmem:[%s381 + $0x81] sm:$0xff]
      %v426 = vld [vmem:[%s381 + $0x91] sm:$0xff]
      %v427 = vld [vmem:[%s381 + $0x99] sm:$0xff]
      %v428 = vld [vmem:[%s381 + $0xa9] sm:$0xff]
      %v429 = vld [vmem:[%s381 + $0xb1] sm:$0xff]
      %v430 = vld [vmem:[%s381 + $0xc1] sm:$0xff]
      %v431 = vld [vmem:[%s381 + $0xc9] sm:$0xff]
      %v432 = vld [vmem:[%s381 + $0xd9] sm:$0xff]
      %v433 = vld [vmem:[%s381 + $0xe1] sm:$0xff]
      %v434 = vld [vmem:[%s381 + $0xf1] sm:$0xff]
      %v435 = vld [vmem:[%s381 + $0xf9] sm:$0xff]
      %v436 = vld [vmem:[%s381 + $0x109] sm:$0xff]
      %v437 = vld [vmem:[%s381 + $0x111] sm:$0xff]
      %v438 = vld [vmem:[%s381 + $0x121] sm:$0xff]
      %v439 = vld [vmem:[%s381 + $0x129] sm:$0xff]
      %v440 = vld [vmem:[%s381 + $0x139] sm:$0xff]
      %v441 = vld [vmem:[%s381 + $0x141] sm:$0xff]
      %v442 = vld [vmem:[%s381 + $0x151] sm:$0xff]
      %v443 = vld [vmem:[%s381 + $0x159] sm:$0xff]
      %v444 = vld [vmem:[%s381 + $0x169] sm:$0xff]
      %v445 = vld [vmem:[%s381 + $0x171] sm:$0xff]
      %v446 = vld [vmem:[%s381 + $0x2] sm:$0xff]
      %v447 = vld [vmem:[%s381 + $0xa] sm:$0xff]
      %v448 = vld [vmem:[%s381 + $0x1a] sm:$0xff]
      %v449 = vld [vmem:[%s381 + $0x22] sm:$0xff]
      %v450 = vld [vmem:[%s381 + $0x32] sm:$0xff]
      %v451 = vld [vmem:[%s381 + $0x3a] sm:$0xff]
      %v452 = vld [vmem:[%s381 + $0x4a] sm:$0xff]
      %v453 = vld [vmem:[%s381 + $0x52] sm:$0xff]
      %v454 = vld [vmem:[%s381 + $0x62] sm:$0xff]
      %v455 = vld [vmem:[%s381 + $0x6a] sm:$0xff]
      %v456 = vld [vmem:[%s381 + $0x7a] sm:$0xff]
      %v457 = vld [vmem:[%s381 + $0x82] sm:$0xff]
      %v458 = vld [vmem:[%s381 + $0x92] sm:$0xff]
      %v459 = vld [vmem:[%s381 + $0x9a] sm:$0xff]
      %v460 = vld [vmem:[%s381 + $0xaa] sm:$0xff]
      %v461 = vld [vmem:[%s381 + $0xb2] sm:$0xff]
      %v462 = vld [vmem:[%s381 + $0xc2] sm:$0xff]
      %v463 = vld [vmem:[%s381 + $0xca] sm:$0xff]
      %v464 = vld [vmem:[%s381 + $0xda] sm:$0xff]
      %v465 = vld [vmem:[%s381 + $0xe2] sm:$0xff]
      %v466 = vld [vmem:[%s381 + $0xf2] sm:$0xff]
      %v467 = vld [vmem:[%s381 + $0xfa] sm:$0xff]
      %v468 = vld [vmem:[%s381 + $0x10a] sm:$0xff]
      %v469 = vld [vmem:[%s381 + $0x112] sm:$0xff]
      %v470 = vld [vmem:[%s381 + $0x122] sm:$0xff]
      %v471 = vld [vmem:[%s381 + $0x12a] sm:$0xff]
      %v472 = vld [vmem:[%s381 + $0x13a] sm:$0xff]
      %v473 = vld [vmem:[%s381 + $0x142] sm:$0xff]
      %v474 = vld [vmem:[%s381 + $0x152] sm:$0xff]
      %v475 = vld [vmem:[%s381 + $0x15a] sm:$0xff]
      %v476 = vld [vmem:[%s381 + $0x16a] sm:$0xff]
      %v477 = vld [vmem:[%s381 + $0x172] sm:$0xff]
      %s478 = scalar_lea.vmem %s266, 48
      %v479 = vld [vmem:[%s478] sm:$0xff]
      %v480 = vld [vmem:[%s478 + $0x8] sm:$0xff]
      %v481 = vld [vmem:[%s478 + $0x18] sm:$0xff]
      %v482 = vld [vmem:[%s478 + $0x20] sm:$0xff]
      %v483 = vld [vmem:[%s478 + $0x30] sm:$0xff]
      %v484 = vld [vmem:[%s478 + $0x38] sm:$0xff]
      %v485 = vld [vmem:[%s478 + $0x48] sm:$0xff]
      %v486 = vld [vmem:[%s478 + $0x50] sm:$0xff]
      %v487 = vld [vmem:[%s478 + $0x60] sm:$0xff]
      %v488 = vld [vmem:[%s478 + $0x68] sm:$0xff]
      %v489 = vld [vmem:[%s478 + $0x78] sm:$0xff]
      %v490 = vld [vmem:[%s478 + $0x80] sm:$0xff]
      %v491 = vld [vmem:[%s478 + $0x90] sm:$0xff]
      %v492 = vld [vmem:[%s478 + $0x98] sm:$0xff]
      %v493 = vld [vmem:[%s478 + $0xa8] sm:$0xff]
      %v494 = vld [vmem:[%s478 + $0xb0] sm:$0xff]
      %v495 = vld [vmem:[%s478 + $0xc0] sm:$0xff]
      %v496 = vld [vmem:[%s478 + $0xc8] sm:$0xff]
      %v497 = vld [vmem:[%s478 + $0xd8] sm:$0xff]
      %v498 = vld [vmem:[%s478 + $0xe0] sm:$0xff]
      %v499 = vld [vmem:[%s478 + $0xf0] sm:$0xff]
      %v500 = vld [vmem:[%s478 + $0xf8] sm:$0xff]
      %v501 = vld [vmem:[%s478 + $0x108] sm:$0xff]
      %v502 = vld [vmem:[%s478 + $0x110] sm:$0xff]
      %v503 = vld [vmem:[%s478 + $0x120] sm:$0xff]
      %v504 = vld [vmem:[%s478 + $0x128] sm:$0xff]
      %v505 = vld [vmem:[%s478 + $0x138] sm:$0xff]
      %v506 = vld [vmem:[%s478 + $0x140] sm:$0xff]
      %v507 = vld [vmem:[%s478 + $0x150] sm:$0xff]
      %v508 = vld [vmem:[%s478 + $0x158] sm:$0xff]
      %v509 = vld [vmem:[%s478 + $0x168] sm:$0xff]
      %v510 = vld [vmem:[%s478 + $0x170] sm:$0xff]
      %v511 = vld [vmem:[%s478 + $0x1] sm:$0xff]
      %v512 = vld [vmem:[%s478 + $0x9] sm:$0xff]
      %v513 = vld [vmem:[%s478 + $0x19] sm:$0xff]
      %v514 = vld [vmem:[%s478 + $0x21] sm:$0xff]
      %v515 = vld [vmem:[%s478 + $0x31] sm:$0xff]
      %v516 = vld [vmem:[%s478 + $0x39] sm:$0xff]
      %v517 = vld [vmem:[%s478 + $0x49] sm:$0xff]
      %v518 = vld [vmem:[%s478 + $0x51] sm:$0xff]
      %v519 = vld [vmem:[%s478 + $0x61] sm:$0xff]
      %v520 = vld [vmem:[%s478 + $0x69] sm:$0xff]
      %v521 = vld [vmem:[%s478 + $0x79] sm:$0xff]
      %v522 = vld [vmem:[%s478 + $0x81] sm:$0xff]
      %v523 = vld [vmem:[%s478 + $0x91] sm:$0xff]
      %v524 = vld [vmem:[%s478 + $0x99] sm:$0xff]
      %v525 = vld [vmem:[%s478 + $0xa9] sm:$0xff]
      %v526 = vld [vmem:[%s478 + $0xb1] sm:$0xff]
      %v527 = vld [vmem:[%s478 + $0xc1] sm:$0xff]
      %v528 = vld [vmem:[%s478 + $0xc9] sm:$0xff]
      %v529 = vld [vmem:[%s478 + $0xd9] sm:$0xff]
      %v530 = vld [vmem:[%s478 + $0xe1] sm:$0xff]
      %v531 = vld [vmem:[%s478 + $0xf1] sm:$0xff]
      %v532 = vld [vmem:[%s478 + $0xf9] sm:$0xff]
      %v533 = vld [vmem:[%s478 + $0x109] sm:$0xff]
      %v534 = vld [vmem:[%s478 + $0x111] sm:$0xff]
      %v535 = vld [vmem:[%s478 + $0x121] sm:$0xff]
      %v536 = vld [vmem:[%s478 + $0x129] sm:$0xff]
      %v537 = vld [vmem:[%s478 + $0x139] sm:$0xff]
      %v538 = vld [vmem:[%s478 + $0x141] sm:$0xff]
      %v539 = vld [vmem:[%s478 + $0x151] sm:$0xff]
      %v540 = vld [vmem:[%s478 + $0x159] sm:$0xff]
      %v541 = vld [vmem:[%s478 + $0x169] sm:$0xff]
      %v542 = vld [vmem:[%s478 + $0x171] sm:$0xff]
      %v543 = vld [vmem:[%s478 + $0x2] sm:$0xff]
      %v544 = vld [vmem:[%s478 + $0xa] sm:$0xff]
      %v545 = vld [vmem:[%s478 + $0x1a] sm:$0xff]
      %v546 = vld [vmem:[%s478 + $0x22] sm:$0xff]
      %v547 = vld [vmem:[%s478 + $0x32] sm:$0xff]
      %v548 = vld [vmem:[%s478 + $0x3a] sm:$0xff]
      %v549 = vld [vmem:[%s478 + $0x4a] sm:$0xff]
      %v550 = vld [vmem:[%s478 + $0x52] sm:$0xff]
      %v551 = vld [vmem:[%s478 + $0x62] sm:$0xff]
      %v552 = vld [vmem:[%s478 + $0x6a] sm:$0xff]
      %v553 = vld [vmem:[%s478 + $0x7a] sm:$0xff]
      %v554 = vld [vmem:[%s478 + $0x82] sm:$0xff]
      %v555 = vld [vmem:[%s478 + $0x92] sm:$0xff]
      %v556 = vld [vmem:[%s478 + $0x9a] sm:$0xff]
      %v557 = vld [vmem:[%s478 + $0xaa] sm:$0xff]
      %v558 = vld [vmem:[%s478 + $0xb2] sm:$0xff]
      %v559 = vld [vmem:[%s478 + $0xc2] sm:$0xff]
      %v560 = vld [vmem:[%s478 + $0xca] sm:$0xff]
      %v561 = vld [vmem:[%s478 + $0xda] sm:$0xff]
      %v562 = vld [vmem:[%s478 + $0xe2] sm:$0xff]
      %v563 = vld [vmem:[%s478 + $0xf2] sm:$0xff]
      %v564 = vld [vmem:[%s478 + $0xfa] sm:$0xff]
      %v565 = vld [vmem:[%s478 + $0x10a] sm:$0xff]
      %v566 = vld [vmem:[%s478 + $0x112] sm:$0xff]
      %v567 = vld [vmem:[%s478 + $0x122] sm:$0xff]
      %v568 = vld [vmem:[%s478 + $0x12a] sm:$0xff]
      %v569 = vld [vmem:[%s478 + $0x13a] sm:$0xff]
      %v570 = vld [vmem:[%s478 + $0x142] sm:$0xff]
      %v571 = vld [vmem:[%s478 + $0x152] sm:$0xff]
      %v572 = vld [vmem:[%s478 + $0x15a] sm:$0xff]
      %v573 = vld [vmem:[%s478 + $0x16a] sm:$0xff]
      %v574 = vld [vmem:[%s478 + $0x172] sm:$0xff]
      %607 = vrot.lane.b32.xlu0 %v317, 4
      %v608 = vpop.permute.xlu0 %607
      %609 = vrot.lane.b32.xlu0 %v318, 4
      %v610 = vpop.permute.xlu0 %609
      %611 = vrot.lane.b32.xlu0 %v319, 4
      %v612 = vpop.permute.xlu0 %611
      %613 = vrot.lane.b32.xlu0 %v320, 4
      %v614 = vpop.permute.xlu0 %613
      %615 = vrot.lane.b32.xlu0 %v321, 4
      %v616 = vpop.permute.xlu0 %615
      %617 = vrot.lane.b32.xlu0 %v322, 4
      %v618 = vpop.permute.xlu0 %617
      %619 = vrot.lane.b32.xlu0 %v323, 4
      %v620 = vpop.permute.xlu0 %619
      %621 = vrot.lane.b32.xlu0 %v324, 4
      %v622 = vpop.permute.xlu0 %621
      %623 = vrot.lane.b32.xlu0 %v325, 4
      %v624 = vpop.permute.xlu0 %623
      %625 = vrot.lane.b32.xlu0 %v326, 4
      %v626 = vpop.permute.xlu0 %625
      %627 = vrot.lane.b32.xlu0 %v327, 4
      %v628 = vpop.permute.xlu0 %627
      %629 = vrot.lane.b32.xlu0 %v328, 4
      %v630 = vpop.permute.xlu0 %629
      %631 = vrot.lane.b32.xlu0 %v329, 4
      %v632 = vpop.permute.xlu0 %631
      %633 = vrot.lane.b32.xlu0 %v330, 4
      %v634 = vpop.permute.xlu0 %633
      %635 = vrot.lane.b32.xlu0 %v331, 4
      %v636 = vpop.permute.xlu0 %635
      %637 = vrot.lane.b32.xlu0 %v332, 4
      %v638 = vpop.permute.xlu0 %637
      %639 = vrot.lane.b32.xlu0 %v333, 4
      %v640 = vpop.permute.xlu0 %639
      %641 = vrot.lane.b32.xlu0 %v334, 4
      %v642 = vpop.permute.xlu0 %641
      %643 = vrot.lane.b32.xlu0 %v335, 4
      %v644 = vpop.permute.xlu0 %643
      %645 = vrot.lane.b32.xlu0 %v336, 4
      %v646 = vpop.permute.xlu0 %645
      %647 = vrot.lane.b32.xlu0 %v337, 4
      %v648 = vpop.permute.xlu0 %647
      %649 = vrot.lane.b32.xlu0 %v338, 4
      %v650 = vpop.permute.xlu0 %649
      %651 = vrot.lane.b32.xlu0 %v339, 4
      %v652 = vpop.permute.xlu0 %651
      %653 = vrot.lane.b32.xlu0 %v340, 4
      %v654 = vpop.permute.xlu0 %653
      %655 = vrot.lane.b32.xlu0 %v341, 4
      %v656 = vpop.permute.xlu0 %655
      %657 = vrot.lane.b32.xlu0 %v342, 4
      %v658 = vpop.permute.xlu0 %657
      %659 = vrot.lane.b32.xlu0 %v343, 4
      %v660 = vpop.permute.xlu0 %659
      %661 = vrot.lane.b32.xlu0 %v344, 4
      %v662 = vpop.permute.xlu0 %661
      %663 = vrot.lane.b32.xlu0 %v345, 4
      %v664 = vpop.permute.xlu0 %663
      %665 = vrot.lane.b32.xlu0 %v346, 4
      %v666 = vpop.permute.xlu0 %665
      %667 = vrot.lane.b32.xlu0 %v347, 4
      %v668 = vpop.permute.xlu0 %667
      %669 = vrot.lane.b32.xlu0 %v348, 4
      %v670 = vpop.permute.xlu0 %669
      %735 = vrot.lane.b32.xlu0 %v349, 8
      %v736 = vpop.permute.xlu0 %735
      %737 = vrot.lane.b32.xlu0 %v350, 8
      %v738 = vpop.permute.xlu0 %737
      %739 = vrot.lane.b32.xlu0 %v351, 8
      %v740 = vpop.permute.xlu0 %739
      %741 = vrot.lane.b32.xlu0 %v352, 8
      %v742 = vpop.permute.xlu0 %741
      %743 = vrot.lane.b32.xlu0 %v353, 8
      %v744 = vpop.permute.xlu0 %743
      %745 = vrot.lane.b32.xlu0 %v354, 8
      %v746 = vpop.permute.xlu0 %745
      %747 = vrot.lane.b32.xlu0 %v355, 8
      %v748 = vpop.permute.xlu0 %747
      %749 = vrot.lane.b32.xlu0 %v356, 8
      %v750 = vpop.permute.xlu0 %749
      %751 = vrot.lane.b32.xlu0 %v357, 8
      %v752 = vpop.permute.xlu0 %751
      %753 = vrot.lane.b32.xlu0 %v358, 8
      %v754 = vpop.permute.xlu0 %753
      %755 = vrot.lane.b32.xlu0 %v359, 8
      %v756 = vpop.permute.xlu0 %755
      %757 = vrot.lane.b32.xlu0 %v360, 8
      %v758 = vpop.permute.xlu0 %757
      %759 = vrot.lane.b32.xlu0 %v361, 8
      %v760 = vpop.permute.xlu0 %759
      %761 = vrot.lane.b32.xlu0 %v362, 8
      %v762 = vpop.permute.xlu0 %761
      %763 = vrot.lane.b32.xlu0 %v363, 8
      %v764 = vpop.permute.xlu0 %763
      %765 = vrot.lane.b32.xlu0 %v364, 8
      %v766 = vpop.permute.xlu0 %765
      %767 = vrot.lane.b32.xlu0 %v365, 8
      %v768 = vpop.permute.xlu0 %767
      %769 = vrot.lane.b32.xlu0 %v366, 8
      %v770 = vpop.permute.xlu0 %769
      %771 = vrot.lane.b32.xlu0 %v367, 8
      %v772 = vpop.permute.xlu0 %771
      %773 = vrot.lane.b32.xlu0 %v368, 8
      %v774 = vpop.permute.xlu0 %773
      %775 = vrot.lane.b32.xlu0 %v369, 8
      %v776 = vpop.permute.xlu0 %775
      %777 = vrot.lane.b32.xlu0 %v370, 8
      %v778 = vpop.permute.xlu0 %777
      %779 = vrot.lane.b32.xlu0 %v371, 8
      %v780 = vpop.permute.xlu0 %779
      %781 = vrot.lane.b32.xlu0 %v372, 8
      %v782 = vpop.permute.xlu0 %781
      %783 = vrot.lane.b32.xlu0 %v373, 8
      %v784 = vpop.permute.xlu0 %783
      %785 = vrot.lane.b32.xlu0 %v374, 8
      %v786 = vpop.permute.xlu0 %785
      %787 = vrot.lane.b32.xlu0 %v375, 8
      %v788 = vpop.permute.xlu0 %787
      %789 = vrot.lane.b32.xlu0 %v376, 8
      %v790 = vpop.permute.xlu0 %789
      %791 = vrot.lane.b32.xlu0 %v377, 8
      %v792 = vpop.permute.xlu0 %791
      %793 = vrot.lane.b32.xlu0 %v378, 8
      %v794 = vpop.permute.xlu0 %793
      %795 = vrot.lane.b32.xlu0 %v379, 8
      %v796 = vpop.permute.xlu0 %795
      %797 = vrot.lane.b32.xlu0 %v380, 8
      %v798 = vpop.permute.xlu0 %797
      %863 = vrot.lane.b32.xlu0 %v382, 12
      %v864 = vpop.permute.xlu0 %863
      %865 = vrot.lane.b32.xlu0 %v383, 12
      %v866 = vpop.permute.xlu0 %865
      %867 = vrot.lane.b32.xlu0 %v384, 12
      %v868 = vpop.permute.xlu0 %867
      %869 = vrot.lane.b32.xlu0 %v385, 12
      %v870 = vpop.permute.xlu0 %869
      %871 = vrot.lane.b32.xlu0 %v386, 12
      %v872 = vpop.permute.xlu0 %871
      %873 = vrot.lane.b32.xlu0 %v387, 12
      %v874 = vpop.permute.xlu0 %873
      %875 = vrot.lane.b32.xlu0 %v388, 12
      %v876 = vpop.permute.xlu0 %875
      %877 = vrot.lane.b32.xlu0 %v389, 12
      %v878 = vpop.permute.xlu0 %877
      %879 = vrot.lane.b32.xlu0 %v390, 12
      %v880 = vpop.permute.xlu0 %879
      %881 = vrot.lane.b32.xlu0 %v391, 12
      %v882 = vpop.permute.xlu0 %881
      %883 = vrot.lane.b32.xlu0 %v392, 12
      %v884 = vpop.permute.xlu0 %883
      %885 = vrot.lane.b32.xlu0 %v393, 12
      %v886 = vpop.permute.xlu0 %885
      %887 = vrot.lane.b32.xlu0 %v394, 12
      %v888 = vpop.permute.xlu0 %887
      %889 = vrot.lane.b32.xlu0 %v395, 12
      %v890 = vpop.permute.xlu0 %889
      %891 = vrot.lane.b32.xlu0 %v396, 12
      %v892 = vpop.permute.xlu0 %891
      %893 = vrot.lane.b32.xlu0 %v397, 12
      %v894 = vpop.permute.xlu0 %893
      %895 = vrot.lane.b32.xlu0 %v398, 12
      %v896 = vpop.permute.xlu0 %895
      %897 = vrot.lane.b32.xlu0 %v399, 12
      %v898 = vpop.permute.xlu0 %897
      %899 = vrot.lane.b32.xlu0 %v400, 12
      %v900 = vpop.permute.xlu0 %899
      %901 = vrot.lane.b32.xlu0 %v401, 12
      %v902 = vpop.permute.xlu0 %901
      %903 = vrot.lane.b32.xlu0 %v402, 12
      %v904 = vpop.permute.xlu0 %903
      %905 = vrot.lane.b32.xlu0 %v403, 12
      %v906 = vpop.permute.xlu0 %905
      %907 = vrot.lane.b32.xlu0 %v404, 12
      %v908 = vpop.permute.xlu0 %907
      %909 = vrot.lane.b32.xlu0 %v405, 12
      %v910 = vpop.permute.xlu0 %909
      %911 = vrot.lane.b32.xlu0 %v406, 12
      %v912 = vpop.permute.xlu0 %911
      %913 = vrot.lane.b32.xlu0 %v407, 12
      %v914 = vpop.permute.xlu0 %913
      %915 = vrot.lane.b32.xlu0 %v408, 12
      %v916 = vpop.permute.xlu0 %915
      %917 = vrot.lane.b32.xlu0 %v409, 12
      %v918 = vpop.permute.xlu0 %917
      %919 = vrot.lane.b32.xlu0 %v410, 12
      %v920 = vpop.permute.xlu0 %919
      %921 = vrot.lane.b32.xlu0 %v411, 12
      %v922 = vpop.permute.xlu0 %921
      %923 = vrot.lane.b32.xlu0 %v412, 12
      %v924 = vpop.permute.xlu0 %923
      %925 = vrot.lane.b32.xlu0 %v413, 12
      %v926 = vpop.permute.xlu0 %925
      %991 = vrot.lane.b32.xlu0 %v414, 16
      %v992 = vpop.permute.xlu0 %991
      %993 = vrot.lane.b32.xlu0 %v415, 16
      %v994 = vpop.permute.xlu0 %993
      %995 = vrot.lane.b32.xlu0 %v416, 16
      %v996 = vpop.permute.xlu0 %995
      %997 = vrot.lane.b32.xlu0 %v417, 16
      %v998 = vpop.permute.xlu0 %997
      %999 = vrot.lane.b32.xlu0 %v418, 16
      %v1000 = vpop.permute.xlu0 %999
      %1001 = vrot.lane.b32.xlu0 %v419, 16
      %v1002 = vpop.permute.xlu0 %1001
      %1003 = vrot.lane.b32.xlu0 %v420, 16
      %v1004 = vpop.permute.xlu0 %1003
      %1005 = vrot.lane.b32.xlu0 %v421, 16
      %v1006 = vpop.permute.xlu0 %1005
      %1007 = vrot.lane.b32.xlu0 %v422, 16
      %v1008 = vpop.permute.xlu0 %1007
      %1009 = vrot.lane.b32.xlu0 %v423, 16
      %v1010 = vpop.permute.xlu0 %1009
      %1011 = vrot.lane.b32.xlu0 %v424, 16
      %v1012 = vpop.permute.xlu0 %1011
      %1013 = vrot.lane.b32.xlu0 %v425, 16
      %v1014 = vpop.permute.xlu0 %1013
      %1015 = vrot.lane.b32.xlu0 %v426, 16
      %v1016 = vpop.permute.xlu0 %1015
      %1017 = vrot.lane.b32.xlu0 %v427, 16
      %v1018 = vpop.permute.xlu0 %1017
      %1019 = vrot.lane.b32.xlu0 %v428, 16
      %v1020 = vpop.permute.xlu0 %1019
      %1021 = vrot.lane.b32.xlu0 %v429, 16
      %v1022 = vpop.permute.xlu0 %1021
      %1023 = vrot.lane.b32.xlu0 %v430, 16
      %v1024 = vpop.permute.xlu0 %1023
      %1025 = vrot.lane.b32.xlu0 %v431, 16
      %v1026 = vpop.permute.xlu0 %1025
      %1027 = vrot.lane.b32.xlu0 %v432, 16
      %v1028 = vpop.permute.xlu0 %1027
      %1029 = vrot.lane.b32.xlu0 %v433, 16
      %v1030 = vpop.permute.xlu0 %1029
      %1031 = vrot.lane.b32.xlu0 %v434, 16
      %v1032 = vpop.permute.xlu0 %1031
      %1033 = vrot.lane.b32.xlu0 %v435, 16
      %v1034 = vpop.permute.xlu0 %1033
      %1035 = vrot.lane.b32.xlu0 %v436, 16
      %v1036 = vpop.permute.xlu0 %1035
      %1037 = vrot.lane.b32.xlu0 %v437, 16
      %v1038 = vpop.permute.xlu0 %1037
      %1039 = vrot.lane.b32.xlu0 %v438, 16
      %v1040 = vpop.permute.xlu0 %1039
      %1041 = vrot.lane.b32.xlu0 %v439, 16
      %v1042 = vpop.permute.xlu0 %1041
      %1043 = vrot.lane.b32.xlu0 %v440, 16
      %v1044 = vpop.permute.xlu0 %1043
      %1045 = vrot.lane.b32.xlu0 %v441, 16
      %v1046 = vpop.permute.xlu0 %1045
      %1047 = vrot.lane.b32.xlu0 %v442, 16
      %v1048 = vpop.permute.xlu0 %1047
      %1049 = vrot.lane.b32.xlu0 %v443, 16
      %v1050 = vpop.permute.xlu0 %1049
      %1051 = vrot.lane.b32.xlu0 %v444, 16
      %v1052 = vpop.permute.xlu0 %1051
      %1053 = vrot.lane.b32.xlu0 %v445, 16
      %v1054 = vpop.permute.xlu0 %1053
      %1119 = vrot.lane.b32.xlu0 %v446, 20
      %v1120 = vpop.permute.xlu0 %1119
      %1121 = vrot.lane.b32.xlu0 %v447, 20
      %v1122 = vpop.permute.xlu0 %1121
      %1123 = vrot.lane.b32.xlu0 %v448, 20
      %v1124 = vpop.permute.xlu0 %1123
      %1125 = vrot.lane.b32.xlu0 %v449, 20
      %v1126 = vpop.permute.xlu0 %1125
      %1127 = vrot.lane.b32.xlu0 %v450, 20
      %v1128 = vpop.permute.xlu0 %1127
      %1129 = vrot.lane.b32.xlu0 %v451, 20
      %v1130 = vpop.permute.xlu0 %1129
      %1131 = vrot.lane.b32.xlu0 %v452, 20
      %v1132 = vpop.permute.xlu0 %1131
      %1133 = vrot.lane.b32.xlu0 %v453, 20
      %v1134 = vpop.permute.xlu0 %1133
      %1135 = vrot.lane.b32.xlu0 %v454, 20
      %v1136 = vpop.permute.xlu0 %1135
      %1137 = vrot.lane.b32.xlu0 %v455, 20
      %v1138 = vpop.permute.xlu0 %1137
      %1139 = vrot.lane.b32.xlu0 %v456, 20
      %v1140 = vpop.permute.xlu0 %1139
      %1141 = vrot.lane.b32.xlu0 %v457, 20
      %v1142 = vpop.permute.xlu0 %1141
      %1143 = vrot.lane.b32.xlu0 %v458, 20
      %v1144 = vpop.permute.xlu0 %1143
      %1145 = vrot.lane.b32.xlu0 %v459, 20
      %v1146 = vpop.permute.xlu0 %1145
      %1147 = vrot.lane.b32.xlu0 %v460, 20
      %v1148 = vpop.permute.xlu0 %1147
      %1149 = vrot.lane.b32.xlu0 %v461, 20
      %v1150 = vpop.permute.xlu0 %1149
      %1151 = vrot.lane.b32.xlu0 %v462, 20
      %v1152 = vpop.permute.xlu0 %1151
      %1153 = vrot.lane.b32.xlu0 %v463, 20
      %v1154 = vpop.permute.xlu0 %1153
      %1155 = vrot.lane.b32.xlu0 %v464, 20
      %v1156 = vpop.permute.xlu0 %1155
      %1157 = vrot.lane.b32.xlu0 %v465, 20
      %v1158 = vpop.permute.xlu0 %1157
      %1159 = vrot.lane.b32.xlu0 %v466, 20
      %v1160 = vpop.permute.xlu0 %1159
      %1161 = vrot.lane.b32.xlu0 %v467, 20
      %v1162 = vpop.permute.xlu0 %1161
      %1163 = vrot.lane.b32.xlu0 %v468, 20
      %v1164 = vpop.permute.xlu0 %1163
      %1165 = vrot.lane.b32.xlu0 %v469, 20
      %v1166 = vpop.permute.xlu0 %1165
      %1167 = vrot.lane.b32.xlu0 %v470, 20
      %v1168 = vpop.permute.xlu0 %1167
      %1169 = vrot.lane.b32.xlu0 %v471, 20
      %v1170 = vpop.permute.xlu0 %1169
      %1171 = vrot.lane.b32.xlu0 %v472, 20
      %v1172 = vpop.permute.xlu0 %1171
      %1173 = vrot.lane.b32.xlu0 %v473, 20
      %v1174 = vpop.permute.xlu0 %1173
      %1175 = vrot.lane.b32.xlu0 %v474, 20
      %v1176 = vpop.permute.xlu0 %1175
      %1177 = vrot.lane.b32.xlu0 %v475, 20
      %v1178 = vpop.permute.xlu0 %1177
      %1179 = vrot.lane.b32.xlu0 %v476, 20
      %v1180 = vpop.permute.xlu0 %1179
      %1181 = vrot.lane.b32.xlu0 %v477, 20
      %v1182 = vpop.permute.xlu0 %1181
      %1247 = vrot.lane.b32.xlu0 %v479, 24
      %v1248 = vpop.permute.xlu0 %1247
      %1249 = vrot.lane.b32.xlu0 %v480, 24
      %v1250 = vpop.permute.xlu0 %1249
      %1251 = vrot.lane.b32.xlu0 %v481, 24
      %v1252 = vpop.permute.xlu0 %1251
      %1253 = vrot.lane.b32.xlu0 %v482, 24
      %v1254 = vpop.permute.xlu0 %1253
      %1255 = vrot.lane.b32.xlu0 %v483, 24
      %v1256 = vpop.permute.xlu0 %1255
      %1257 = vrot.lane.b32.xlu0 %v484, 24
      %v1258 = vpop.permute.xlu0 %1257
      %1259 = vrot.lane.b32.xlu0 %v485, 24
      %v1260 = vpop.permute.xlu0 %1259
      %1261 = vrot.lane.b32.xlu0 %v486, 24
      %v1262 = vpop.permute.xlu0 %1261
      %1263 = vrot.lane.b32.xlu0 %v487, 24
      %v1264 = vpop.permute.xlu0 %1263
      %1265 = vrot.lane.b32.xlu0 %v488, 24
      %v1266 = vpop.permute.xlu0 %1265
      %1267 = vrot.lane.b32.xlu0 %v489, 24
      %v1268 = vpop.permute.xlu0 %1267
      %1269 = vrot.lane.b32.xlu0 %v490, 24
      %v1270 = vpop.permute.xlu0 %1269
      %1271 = vrot.lane.b32.xlu0 %v491, 24
      %v1272 = vpop.permute.xlu0 %1271
      %1273 = vrot.lane.b32.xlu0 %v492, 24
      %v1274 = vpop.permute.xlu0 %1273
      %1275 = vrot.lane.b32.xlu0 %v493, 24
      %v1276 = vpop.permute.xlu0 %1275
      %1277 = vrot.lane.b32.xlu0 %v494, 24
      %v1278 = vpop.permute.xlu0 %1277
      %1279 = vrot.lane.b32.xlu0 %v495, 24
      %v1280 = vpop.permute.xlu0 %1279
      %1281 = vrot.lane.b32.xlu0 %v496, 24
      %v1282 = vpop.permute.xlu0 %1281
      %1283 = vrot.lane.b32.xlu0 %v497, 24
      %v1284 = vpop.permute.xlu0 %1283
      %1285 = vrot.lane.b32.xlu0 %v498, 24
      %v1286 = vpop.permute.xlu0 %1285
      %1287 = vrot.lane.b32.xlu0 %v499, 24
      %v1288 = vpop.permute.xlu0 %1287
      %1289 = vrot.lane.b32.xlu0 %v500, 24
      %v1290 = vpop.permute.xlu0 %1289
      %1291 = vrot.lane.b32.xlu0 %v501, 24
      %v1292 = vpop.permute.xlu0 %1291
      %1293 = vrot.lane.b32.xlu0 %v502, 24
      %v1294 = vpop.permute.xlu0 %1293
      %1295 = vrot.lane.b32.xlu0 %v503, 24
      %v1296 = vpop.permute.xlu0 %1295
      %1297 = vrot.lane.b32.xlu0 %v504, 24
      %v1298 = vpop.permute.xlu0 %1297
      %1299 = vrot.lane.b32.xlu0 %v505, 24
      %v1300 = vpop.permute.xlu0 %1299
      %1301 = vrot.lane.b32.xlu0 %v506, 24
      %v1302 = vpop.permute.xlu0 %1301
      %1303 = vrot.lane.b32.xlu0 %v507, 24
      %v1304 = vpop.permute.xlu0 %1303
      %1305 = vrot.lane.b32.xlu0 %v508, 24
      %v1306 = vpop.permute.xlu0 %1305
      %1307 = vrot.lane.b32.xlu0 %v509, 24
      %v1308 = vpop.permute.xlu0 %1307
      %1309 = vrot.lane.b32.xlu0 %v510, 24
      %v1310 = vpop.permute.xlu0 %1309
      %1375 = vrot.lane.b32.xlu0 %v511, 28
      %v1376 = vpop.permute.xlu0 %1375
      %1377 = vrot.lane.b32.xlu0 %v512, 28
      %v1378 = vpop.permute.xlu0 %1377
      %1379 = vrot.lane.b32.xlu0 %v513, 28
      %v1380 = vpop.permute.xlu0 %1379
      %1381 = vrot.lane.b32.xlu0 %v514, 28
      %v1382 = vpop.permute.xlu0 %1381
      %1383 = vrot.lane.b32.xlu0 %v515, 28
      %v1384 = vpop.permute.xlu0 %1383
      %1385 = vrot.lane.b32.xlu0 %v516, 28
      %v1386 = vpop.permute.xlu0 %1385
      %1387 = vrot.lane.b32.xlu0 %v517, 28
      %v1388 = vpop.permute.xlu0 %1387
      %1389 = vrot.lane.b32.xlu0 %v518, 28
      %v1390 = vpop.permute.xlu0 %1389
      %1391 = vrot.lane.b32.xlu0 %v519, 28
      %v1392 = vpop.permute.xlu0 %1391
      %1393 = vrot.lane.b32.xlu0 %v520, 28
      %v1394 = vpop.permute.xlu0 %1393
      %1395 = vrot.lane.b32.xlu0 %v521, 28
      %v1396 = vpop.permute.xlu0 %1395
      %1397 = vrot.lane.b32.xlu0 %v522, 28
      %v1398 = vpop.permute.xlu0 %1397
      %1399 = vrot.lane.b32.xlu0 %v523, 28
      %v1400 = vpop.permute.xlu0 %1399
      %1401 = vrot.lane.b32.xlu0 %v524, 28
      %v1402 = vpop.permute.xlu0 %1401
      %1403 = vrot.lane.b32.xlu0 %v525, 28
      %v1404 = vpop.permute.xlu0 %1403
      %1405 = vrot.lane.b32.xlu0 %v526, 28
      %v1406 = vpop.permute.xlu0 %1405
      %1407 = vrot.lane.b32.xlu0 %v527, 28
      %v1408 = vpop.permute.xlu0 %1407
      %1409 = vrot.lane.b32.xlu0 %v528, 28
      %v1410 = vpop.permute.xlu0 %1409
      %1411 = vrot.lane.b32.xlu0 %v529, 28
      %v1412 = vpop.permute.xlu0 %1411
      %1413 = vrot.lane.b32.xlu0 %v530, 28
      %v1414 = vpop.permute.xlu0 %1413
      %1415 = vrot.lane.b32.xlu0 %v531, 28
      %v1416 = vpop.permute.xlu0 %1415
      %1417 = vrot.lane.b32.xlu0 %v532, 28
      %v1418 = vpop.permute.xlu0 %1417
      %1419 = vrot.lane.b32.xlu0 %v533, 28
      %v1420 = vpop.permute.xlu0 %1419
      %1421 = vrot.lane.b32.xlu0 %v534, 28
      %v1422 = vpop.permute.xlu0 %1421
      %1423 = vrot.lane.b32.xlu0 %v535, 28
      %v1424 = vpop.permute.xlu0 %1423
      %1425 = vrot.lane.b32.xlu0 %v536, 28
      %v1426 = vpop.permute.xlu0 %1425
      %1427 = vrot.lane.b32.xlu0 %v537, 28
      %v1428 = vpop.permute.xlu0 %1427
      %1429 = vrot.lane.b32.xlu0 %v538, 28
      %v1430 = vpop.permute.xlu0 %1429
      %1431 = vrot.lane.b32.xlu0 %v539, 28
      %v1432 = vpop.permute.xlu0 %1431
      %1433 = vrot.lane.b32.xlu0 %v540, 28
      %v1434 = vpop.permute.xlu0 %1433
      %1435 = vrot.lane.b32.xlu0 %v541, 28
      %v1436 = vpop.permute.xlu0 %1435
      %1437 = vrot.lane.b32.xlu0 %v542, 28
      %v1438 = vpop.permute.xlu0 %1437
      %1503 = vrot.lane.b32.xlu0 %v543, 32
      %v1504 = vpop.permute.xlu0 %1503
      %1505 = vrot.lane.b32.xlu0 %v544, 32
      %v1506 = vpop.permute.xlu0 %1505
      %1507 = vrot.lane.b32.xlu0 %v545, 32
      %v1508 = vpop.permute.xlu0 %1507
      %1509 = vrot.lane.b32.xlu0 %v546, 32
      %v1510 = vpop.permute.xlu0 %1509
      %1511 = vrot.lane.b32.xlu0 %v547, 32
      %v1512 = vpop.permute.xlu0 %1511
      %1513 = vrot.lane.b32.xlu0 %v548, 32
      %v1514 = vpop.permute.xlu0 %1513
      %1515 = vrot.lane.b32.xlu0 %v549, 32
      %v1516 = vpop.permute.xlu0 %1515
      %1517 = vrot.lane.b32.xlu0 %v550, 32
      %v1518 = vpop.permute.xlu0 %1517
      %1519 = vrot.lane.b32.xlu0 %v551, 32
      %v1520 = vpop.permute.xlu0 %1519
      %1521 = vrot.lane.b32.xlu0 %v552, 32
      %v1522 = vpop.permute.xlu0 %1521
      %1523 = vrot.lane.b32.xlu0 %v553, 32
      %v1524 = vpop.permute.xlu0 %1523
      %1525 = vrot.lane.b32.xlu0 %v554, 32
      %v1526 = vpop.permute.xlu0 %1525
      %1527 = vrot.lane.b32.xlu0 %v555, 32
      %v1528 = vpop.permute.xlu0 %1527
      %1529 = vrot.lane.b32.xlu0 %v556, 32
      %v1530 = vpop.permute.xlu0 %1529
      %1531 = vrot.lane.b32.xlu0 %v557, 32
      %v1532 = vpop.permute.xlu0 %1531
      %1533 = vrot.lane.b32.xlu0 %v558, 32
      %v1534 = vpop.permute.xlu0 %1533
      %1535 = vrot.lane.b32.xlu0 %v559, 32
      %v1536 = vpop.permute.xlu0 %1535
      %1537 = vrot.lane.b32.xlu0 %v560, 32
      %v1538 = vpop.permute.xlu0 %1537
      %1539 = vrot.lane.b32.xlu0 %v561, 32
      %v1540 = vpop.permute.xlu0 %1539
      %1541 = vrot.lane.b32.xlu0 %v562, 32
      %v1542 = vpop.permute.xlu0 %1541
      %1543 = vrot.lane.b32.xlu0 %v563, 32
      %v1544 = vpop.permute.xlu0 %1543
      %1545 = vrot.lane.b32.xlu0 %v564, 32
      %v1546 = vpop.permute.xlu0 %1545
      %1547 = vrot.lane.b32.xlu0 %v565, 32
      %v1548 = vpop.permute.xlu0 %1547
      %1549 = vrot.lane.b32.xlu0 %v566, 32
      %v1550 = vpop.permute.xlu0 %1549
      %1551 = vrot.lane.b32.xlu0 %v567, 32
      %v1552 = vpop.permute.xlu0 %1551
      %1553 = vrot.lane.b32.xlu0 %v568, 32
      %v1554 = vpop.permute.xlu0 %1553
      %1555 = vrot.lane.b32.xlu0 %v569, 32
      %v1556 = vpop.permute.xlu0 %1555
      %1557 = vrot.lane.b32.xlu0 %v570, 32
      %v1558 = vpop.permute.xlu0 %1557
      %1559 = vrot.lane.b32.xlu0 %v571, 32
      %v1560 = vpop.permute.xlu0 %1559
      %1561 = vrot.lane.b32.xlu0 %v572, 32
      %v1562 = vpop.permute.xlu0 %1561
      %1563 = vrot.lane.b32.xlu0 %v573, 32
      %v1564 = vpop.permute.xlu0 %1563
      %1565 = vrot.lane.b32.xlu0 %v574, 32
      %v1566 = vpop.permute.xlu0 %1565
      %vm1599 = vcmask 31744
      %v1600 = vsel %vm1599, %v285, %v608
      %v1601 = vsel %vm1599, %v286, %v610
      %v1602 = vsel %vm1599, %v287, %v612
      %v1603 = vsel %vm1599, %v288, %v614
      %v1604 = vsel %vm1599, %v289, %v616
      %v1605 = vsel %vm1599, %v290, %v618
      %v1606 = vsel %vm1599, %v291, %v620
      %v1607 = vsel %vm1599, %v292, %v622
      %v1608 = vsel %vm1599, %v293, %v624
      %v1609 = vsel %vm1599, %v294, %v626
      %v1610 = vsel %vm1599, %v295, %v628
      %v1611 = vsel %vm1599, %v296, %v630
      %v1612 = vsel %vm1599, %v297, %v632
      %v1613 = vsel %vm1599, %v298, %v634
      %v1614 = vsel %vm1599, %v299, %v636
      %v1615 = vsel %vm1599, %v300, %v638
      %v1616 = vsel %vm1599, %v301, %v640
      %v1617 = vsel %vm1599, %v302, %v642
      %v1618 = vsel %vm1599, %v303, %v644
      %v1619 = vsel %vm1599, %v304, %v646
      %v1620 = vsel %vm1599, %v305, %v648
      %v1621 = vsel %vm1599, %v306, %v650
      %v1622 = vsel %vm1599, %v307, %v652
      %v1623 = vsel %vm1599, %v308, %v654
      %v1624 = vsel %vm1599, %v309, %v656
      %v1625 = vsel %vm1599, %v310, %v658
      %v1626 = vsel %vm1599, %v311, %v660
      %v1627 = vsel %vm1599, %v312, %v662
      %v1628 = vsel %vm1599, %v313, %v664
      %v1629 = vsel %vm1599, %v314, %v666
      %v1630 = vsel %vm1599, %v315, %v668
      %v1631 = vsel %vm1599, %v316, %v670
      %vm1632 = vcmask 64512
      %v1633 = vsel %vm1632, %v1600, %v736
      %v1634 = vsel %vm1632, %v1601, %v738
      %v1635 = vsel %vm1632, %v1602, %v740
      %v1636 = vsel %vm1632, %v1603, %v742
      %v1637 = vsel %vm1632, %v1604, %v744
      %v1638 = vsel %vm1632, %v1605, %v746
      %v1639 = vsel %vm1632, %v1606, %v748
      %v1640 = vsel %vm1632, %v1607, %v750
      %v1641 = vsel %vm1632, %v1608, %v752
      %v1642 = vsel %vm1632, %v1609, %v754
      %v1643 = vsel %vm1632, %v1610, %v756
      %v1644 = vsel %vm1632, %v1611, %v758
      %v1645 = vsel %vm1632, %v1612, %v760
      %v1646 = vsel %vm1632, %v1613, %v762
      %v1647 = vsel %vm1632, %v1614, %v764
      %v1648 = vsel %vm1632, %v1615, %v766
      %v1649 = vsel %vm1632, %v1616, %v768
      %v1650 = vsel %vm1632, %v1617, %v770
      %v1651 = vsel %vm1632, %v1618, %v772
      %v1652 = vsel %vm1632, %v1619, %v774
      %v1653 = vsel %vm1632, %v1620, %v776
      %v1654 = vsel %vm1632, %v1621, %v778
      %v1655 = vsel %vm1632, %v1622, %v780
      %v1656 = vsel %vm1632, %v1623, %v782
      %v1657 = vsel %vm1632, %v1624, %v784
      %v1658 = vsel %vm1632, %v1625, %v786
      %v1659 = vsel %vm1632, %v1626, %v788
      %v1660 = vsel %vm1632, %v1627, %v790
      %v1661 = vsel %vm1632, %v1628, %v792
      %v1662 = vsel %vm1632, %v1629, %v794
      %v1663 = vsel %vm1632, %v1630, %v796
      %v1664 = vsel %vm1632, %v1631, %v798
      %vm1665 = vcmask 97280
      %v1666 = vsel %vm1665, %v1633, %v864
      %v1667 = vsel %vm1665, %v1634, %v866
      %v1668 = vsel %vm1665, %v1635, %v868
      %v1669 = vsel %vm1665, %v1636, %v870
      %v1670 = vsel %vm1665, %v1637, %v872
      %v1671 = vsel %vm1665, %v1638, %v874
      %v1672 = vsel %vm1665, %v1639, %v876
      %v1673 = vsel %vm1665, %v1640, %v878
      %v1674 = vsel %vm1665, %v1641, %v880
      %v1675 = vsel %vm1665, %v1642, %v882
      %v1676 = vsel %vm1665, %v1643, %v884
      %v1677 = vsel %vm1665, %v1644, %v886
      %v1678 = vsel %vm1665, %v1645, %v888
      %v1679 = vsel %vm1665, %v1646, %v890
      %v1680 = vsel %vm1665, %v1647, %v892
      %v1681 = vsel %vm1665, %v1648, %v894
      %v1682 = vsel %vm1665, %v1649, %v896
      %v1683 = vsel %vm1665, %v1650, %v898
      %v1684 = vsel %vm1665, %v1651, %v900
      %v1685 = vsel %vm1665, %v1652, %v902
      %v1686 = vsel %vm1665, %v1653, %v904
      %v1687 = vsel %vm1665, %v1654, %v906
      %v1688 = vsel %vm1665, %v1655, %v908
      %v1689 = vsel %vm1665, %v1656, %v910
      %v1690 = vsel %vm1665, %v1657, %v912
      %v1691 = vsel %vm1665, %v1658, %v914
      %v1692 = vsel %vm1665, %v1659, %v916
      %v1693 = vsel %vm1665, %v1660, %v918
      %v1694 = vsel %vm1665, %v1661, %v920
      %v1695 = vsel %vm1665, %v1662, %v922
      %v1696 = vsel %vm1665, %v1663, %v924
      %v1697 = vsel %vm1665, %v1664, %v926
      %vm1698 = vcmask 130048
      %v1699 = vsel %vm1698, %v1666, %v992
      %v1700 = vsel %vm1698, %v1667, %v994
      %v1701 = vsel %vm1698, %v1668, %v996
      %v1702 = vsel %vm1698, %v1669, %v998
      %v1703 = vsel %vm1698, %v1670, %v1000
      %v1704 = vsel %vm1698, %v1671, %v1002
      %v1705 = vsel %vm1698, %v1672, %v1004
      %v1706 = vsel %vm1698, %v1673, %v1006
      %v1707 = vsel %vm1698, %v1674, %v1008
      %v1708 = vsel %vm1698, %v1675, %v1010
      %v1709 = vsel %vm1698, %v1676, %v1012
      %v1710 = vsel %vm1698, %v1677, %v1014
      %v1711 = vsel %vm1698, %v1678, %v1016
      %v1712 = vsel %vm1698, %v1679, %v1018
      %v1713 = vsel %vm1698, %v1680, %v1020
      %v1714 = vsel %vm1698, %v1681, %v1022
      %v1715 = vsel %vm1698, %v1682, %v1024
      %v1716 = vsel %vm1698, %v1683, %v1026
      %v1717 = vsel %vm1698, %v1684, %v1028
      %v1718 = vsel %vm1698, %v1685, %v1030
      %v1719 = vsel %vm1698, %v1686, %v1032
      %v1720 = vsel %vm1698, %v1687, %v1034
      %v1721 = vsel %vm1698, %v1688, %v1036
      %v1722 = vsel %vm1698, %v1689, %v1038
      %v1723 = vsel %vm1698, %v1690, %v1040
      %v1724 = vsel %vm1698, %v1691, %v1042
      %v1725 = vsel %vm1698, %v1692, %v1044
      %v1726 = vsel %vm1698, %v1693, %v1046
      %v1727 = vsel %vm1698, %v1694, %v1048
      %v1728 = vsel %vm1698, %v1695, %v1050
      %v1729 = vsel %vm1698, %v1696, %v1052
      %v1730 = vsel %vm1698, %v1697, %v1054
      %vm1731 = vcmask 162816
      %v1732 = vsel %vm1731, %v1699, %v1120
      %v1733 = vsel %vm1731, %v1700, %v1122
      %v1734 = vsel %vm1731, %v1701, %v1124
      %v1735 = vsel %vm1731, %v1702, %v1126
      %v1736 = vsel %vm1731, %v1703, %v1128
      %v1737 = vsel %vm1731, %v1704, %v1130
      %v1738 = vsel %vm1731, %v1705, %v1132
      %v1739 = vsel %vm1731, %v1706, %v1134
      %v1740 = vsel %vm1731, %v1707, %v1136
      %v1741 = vsel %vm1731, %v1708, %v1138
      %v1742 = vsel %vm1731, %v1709, %v1140
      %v1743 = vsel %vm1731, %v1710, %v1142
      %v1744 = vsel %vm1731, %v1711, %v1144
      %v1745 = vsel %vm1731, %v1712, %v1146
      %v1746 = vsel %vm1731, %v1713, %v1148
      %v1747 = vsel %vm1731, %v1714, %v1150
      %v1748 = vsel %vm1731, %v1715, %v1152
      %v1749 = vsel %vm1731, %v1716, %v1154
      %v1750 = vsel %vm1731, %v1717, %v1156
      %v1751 = vsel %vm1731, %v1718, %v1158
      %v1752 = vsel %vm1731, %v1719, %v1160
      %v1753 = vsel %vm1731, %v1720, %v1162
      %v1754 = vsel %vm1731, %v1721, %v1164
      %v1755 = vsel %vm1731, %v1722, %v1166
      %v1756 = vsel %vm1731, %v1723, %v1168
      %v1757 = vsel %vm1731, %v1724, %v1170
      %v1758 = vsel %vm1731, %v1725, %v1172
      %v1759 = vsel %vm1731, %v1726, %v1174
      %v1760 = vsel %vm1731, %v1727, %v1176
      %v1761 = vsel %vm1731, %v1728, %v1178
      %v1762 = vsel %vm1731, %v1729, %v1180
      %v1763 = vsel %vm1731, %v1730, %v1182
      %vm1764 = vcmask 195584
      %v1765 = vsel %vm1764, %v1732, %v1248
      %v1766 = vsel %vm1764, %v1733, %v1250
      %v1767 = vsel %vm1764, %v1734, %v1252
      %v1768 = vsel %vm1764, %v1735, %v1254
      %v1769 = vsel %vm1764, %v1736, %v1256
      %v1770 = vsel %vm1764, %v1737, %v1258
      %v1771 = vsel %vm1764, %v1738, %v1260
      %v1772 = vsel %vm1764, %v1739, %v1262
      %v1773 = vsel %vm1764, %v1740, %v1264
      %v1774 = vsel %vm1764, %v1741, %v1266
      %v1775 = vsel %vm1764, %v1742, %v1268
      %v1776 = vsel %vm1764, %v1743, %v1270
      %v1777 = vsel %vm1764, %v1744, %v1272
      %v1778 = vsel %vm1764, %v1745, %v1274
      %v1779 = vsel %vm1764, %v1746, %v1276
      %v1780 = vsel %vm1764, %v1747, %v1278
      %v1781 = vsel %vm1764, %v1748, %v1280
      %v1782 = vsel %vm1764, %v1749, %v1282
      %v1783 = vsel %vm1764, %v1750, %v1284
      %v1784 = vsel %vm1764, %v1751, %v1286
      %v1785 = vsel %vm1764, %v1752, %v1288
      %v1786 = vsel %vm1764, %v1753, %v1290
      %v1787 = vsel %vm1764, %v1754, %v1292
      %v1788 = vsel %vm1764, %v1755, %v1294
      %v1789 = vsel %vm1764, %v1756, %v1296
      %v1790 = vsel %vm1764, %v1757, %v1298
      %v1791 = vsel %vm1764, %v1758, %v1300
      %v1792 = vsel %vm1764, %v1759, %v1302
      %v1793 = vsel %vm1764, %v1760, %v1304
      %v1794 = vsel %vm1764, %v1761, %v1306
      %v1795 = vsel %vm1764, %v1762, %v1308
      %v1796 = vsel %vm1764, %v1763, %v1310
      %vm1797 = vcmask 228352
      %v1798 = vsel %vm1797, %v1765, %v1376
      %v1799 = vsel %vm1797, %v1766, %v1378
      %v1800 = vsel %vm1797, %v1767, %v1380
      %v1801 = vsel %vm1797, %v1768, %v1382
      %v1802 = vsel %vm1797, %v1769, %v1384
      %v1803 = vsel %vm1797, %v1770, %v1386
      %v1804 = vsel %vm1797, %v1771, %v1388
      %v1805 = vsel %vm1797, %v1772, %v1390
      %v1806 = vsel %vm1797, %v1773, %v1392
      %v1807 = vsel %vm1797, %v1774, %v1394
      %v1808 = vsel %vm1797, %v1775, %v1396
      %v1809 = vsel %vm1797, %v1776, %v1398
      %v1810 = vsel %vm1797, %v1777, %v1400
      %v1811 = vsel %vm1797, %v1778, %v1402
      %v1812 = vsel %vm1797, %v1779, %v1404
      %v1813 = vsel %vm1797, %v1780, %v1406
      %v1814 = vsel %vm1797, %v1781, %v1408
      %v1815 = vsel %vm1797, %v1782, %v1410
      %v1816 = vsel %vm1797, %v1783, %v1412
      %v1817 = vsel %vm1797, %v1784, %v1414
      %v1818 = vsel %vm1797, %v1785, %v1416
      %v1819 = vsel %vm1797, %v1786, %v1418
      %v1820 = vsel %vm1797, %v1787, %v1420
      %v1821 = vsel %vm1797, %v1788, %v1422
      %v1822 = vsel %vm1797, %v1789, %v1424
      %v1823 = vsel %vm1797, %v1790, %v1426
      %v1824 = vsel %vm1797, %v1791, %v1428
      %v1825 = vsel %vm1797, %v1792, %v1430
      %v1826 = vsel %vm1797, %v1793, %v1432
      %v1827 = vsel %vm1797, %v1794, %v1434
      %v1828 = vsel %vm1797, %v1795, %v1436
      %v1829 = vsel %vm1797, %v1796, %v1438
      %vm1830 = vcmask 261120
      %v1831 = vsel %vm1830, %v1798, %v1504
      %v1832 = vsel %vm1830, %v1799, %v1506
      %v1833 = vsel %vm1830, %v1800, %v1508
      %v1834 = vsel %vm1830, %v1801, %v1510
      %v1835 = vsel %vm1830, %v1802, %v1512
      %v1836 = vsel %vm1830, %v1803, %v1514
      %v1837 = vsel %vm1830, %v1804, %v1516
      %v1838 = vsel %vm1830, %v1805, %v1518
      %v1839 = vsel %vm1830, %v1806, %v1520
      %v1840 = vsel %vm1830, %v1807, %v1522
      %v1841 = vsel %vm1830, %v1808, %v1524
      %v1842 = vsel %vm1830, %v1809, %v1526
      %v1843 = vsel %vm1830, %v1810, %v1528
      %v1844 = vsel %vm1830, %v1811, %v1530
      %v1845 = vsel %vm1830, %v1812, %v1532
      %v1846 = vsel %vm1830, %v1813, %v1534
      %v1847 = vsel %vm1830, %v1814, %v1536
      %v1848 = vsel %vm1830, %v1815, %v1538
      %v1849 = vsel %vm1830, %v1816, %v1540
      %v1850 = vsel %vm1830, %v1817, %v1542
      %v1851 = vsel %vm1830, %v1818, %v1544
      %v1852 = vsel %vm1830, %v1819, %v1546
      %v1853 = vsel %vm1830, %v1820, %v1548
      %v1854 = vsel %vm1830, %v1821, %v1550
      %v1855 = vsel %vm1830, %v1822, %v1552
      %v1856 = vsel %vm1830, %v1823, %v1554
      %v1857 = vsel %vm1830, %v1824, %v1556
      %v1858 = vsel %vm1830, %v1825, %v1558
      %v1859 = vsel %vm1830, %v1826, %v1560
      %v1860 = vsel %vm1830, %v1827, %v1562
      %v1861 = vsel %vm1830, %v1828, %v1564
      %v1862 = vsel %vm1830, %v1829, %v1566
      %v1863 = vld [vmem:[%s1] sm:$0xff]
      %v1864 = vld [vmem:[%s1 + $0x8] sm:$0xff]
      %v1865 = vld [vmem:[%s1 + $0x10] sm:$0xff]
      %v1866 = vld [vmem:[%s1 + $0x18] sm:$0xff]
      %v1867 = vld [vmem:[%s1 + $0x20] sm:$0xf]
      %vm1868 = vcmask 293888
      %v1870 = vsel %vm1868, %v1831, 0
      %v1873 = vsel %vm1868, %v1832, 0
      %v1876 = vsel %vm1868, %v1833, 0
      %v1879 = vsel %vm1868, %v1834, 0
      %v1882 = vsel %vm1868, %v1835, 0
      %v1885 = vsel %vm1868, %v1836, 0
      %v1888 = vsel %vm1868, %v1837, 0
      %v1891 = vsel %vm1868, %v1838, 0
      %v1894 = vsel %vm1868, %v1839, 0
      %v1897 = vsel %vm1868, %v1840, 0
      %v1900 = vsel %vm1868, %v1841, 0
      %v1903 = vsel %vm1868, %v1842, 0
      %v1906 = vsel %vm1868, %v1843, 0
      %v1909 = vsel %vm1868, %v1844, 0
      %v1912 = vsel %vm1868, %v1845, 0
      %v1915 = vsel %vm1868, %v1846, 0
      %v1918 = vsel %vm1868, %v1847, 0
      %v1921 = vsel %vm1868, %v1848, 0
      %v1924 = vsel %vm1868, %v1849, 0
      %v1927 = vsel %vm1868, %v1850, 0
      %v1930 = vsel %vm1868, %v1851, 0
      %v1933 = vsel %vm1868, %v1852, 0
      %v1936 = vsel %vm1868, %v1853, 0
      %v1939 = vsel %vm1868, %v1854, 0
      %v1942 = vsel %vm1868, %v1855, 0
      %v1945 = vsel %vm1868, %v1856, 0
      %v1948 = vsel %vm1868, %v1857, 0
      %v1951 = vsel %vm1868, %v1858, 0
      %v1954 = vsel %vm1868, %v1859, 0
      %v1957 = vsel %vm1868, %v1860, 0
      %v1960 = vsel %vm1868, %v1861, 0
      %v1963 = vsel %vm1868, %v1862, 0
      %vm1965 = vcmask 1043456
      %v1967 = vsel %vm1965, %v1867, 0
      %1969 = vmatprep.subr.mxu0 0.0
      %1970 = vmatpush1.msra.mxu0 %v1863
      %1971 = vmatprep.subr.mxu0 0.0
      %1972 = vmatpush1.msra.mxu0 %v1864
      %1973 = vmatprep.subr.mxu0 0.0
      %1974 = vmatpush1.msra.mxu0 %v1865
      %1975 = vmatprep.subr.mxu0 0.0
      %1976 = vmatpush1.msra.mxu0 %v1866
      %1977 = vmatprep.subr.mxu0 0.0
      %1978 = vmatpush1.msra.mxu0 %v1967
      %1979 = vmatprep.subr.mxu0 0.0
      %1980 = vmatpush1.msra.mxu0 0.0
      %1981 = vmatprep.subr.mxu0 0.0
      %1982 = vmatpush1.msra.mxu0 0.0
      %1983 = vmatprep.subr.mxu0 0.0
      %1984 = vmatpush1.msra.mxu0 0.0
      %1985 = vmatprep.subr.mxu0 0.0
      %1986 = vmatpush1.msra.mxu0 0.0
      %1987 = vmatprep.subr.mxu0 0.0
      %1988 = vmatpush1.msra.mxu0 0.0
      %1989 = vmatprep.subr.mxu0 0.0
      %1990 = vmatpush1.msra.mxu0 0.0
      %1991 = vmatprep.subr.mxu0 0.0
      %1992 = vmatpush1.msra.mxu0 0.0
      %1993 = vmatprep.subr.mxu0 0.0
      %1994 = vmatpush1.msra.mxu0 0.0
      %1995 = vmatprep.subr.mxu0 0.0
      %1996 = vmatpush1.msra.mxu0 0.0
      %1997 = vmatprep.subr.mxu0 0.0
      %1998 = vmatpush1.msra.mxu0 0.0
      %1999 = vmatprep.subr.mxu0 0.0
      %2000 = vmatpush1.msra.mxu0 0.0
      %2001 = vmatprep.subr.mxu0 0.0
      %2002 = vmatpush1.msra.mxu0 0.0
      %2003 = vmatprep.subr.mxu0 0.0
      %2004 = vmatpush1.msra.mxu0 0.0
      %2005 = vmatprep.subr.mxu0 0.0
      %2006 = vmatpush1.msra.mxu0 0.0
      %2007 = vmatprep.subr.mxu0 0.0
      %2008 = vmatpush1.msra.mxu0 0.0
      %2009 = vmatprep.subr.mxu0 0.0
      %2010 = vmatpush1.msra.mxu0 0.0
      %2011 = vmatprep.subr.mxu0 0.0
      %2012 = vmatpush1.msra.mxu0 0.0
      %2013 = vmatprep.subr.mxu0 0.0
      %2014 = vmatpush1.msra.mxu0 0.0
      %2015 = vmatprep.subr.mxu0 0.0
      %2016 = vmatpush1.msra.mxu0 0.0
      %2017 = vmatprep.subr.mxu0 0.0
      %2018 = vmatpush1.msra.mxu0 0.0
      %2019 = vmatprep.subr.mxu0 0.0
      %2020 = vmatpush1.msra.mxu0 0.0
      %2021 = vmatprep.subr.mxu0 0.0
      %2022 = vmatpush1.msra.mxu0 0.0
      %2023 = vmatprep.subr.mxu0 0.0
      %2024 = vmatpush1.msra.mxu0 0.0
      %2025 = vmatprep.subr.mxu0 0.0
      %2026 = vmatpush1.msra.mxu0 0.0
      %2027 = vmatprep.subr.mxu0 0.0
      %2028 = vmatpush1.msra.mxu0 0.0
      %2029 = vmatprep.subr.mxu0 0.0
      %2030 = vmatpush1.msra.mxu0 0.0
      %2031 = vmatprep.subr.mxu0 0.0
      %2032 = vmatpush1.msra.mxu0 0.0
      %2033 = vmatprep.mubr.f32.mxu0 0.0
      %2034 = vmatmul.mubr.f32.gmra.mrb[0].mxu0 %v1870
      %v2035 = vpop.f32.mrb[0].mxu0
      %v2036 = vadd.f32 0.0, %v2035
      %v2037 = vpop.f32.mrb[0].mxu0
      %2038 = vmatprep.mubr.f32.mxu0 0.0
      %2039 = vmatmul.mubr.f32.gmra.mrb[0].mxu0 %v1873
      %v2040 = vpop.f32.mrb[0].mxu0
      %v2041 = vadd.f32 0.0, %v2040
      %v2042 = vpop.f32.mrb[0].mxu0
      %2043 = vmatprep.mubr.f32.mxu0 0.0
      %2044 = vmatmul.mubr.f32.gmra.mrb[0].mxu0 %v1876
      %v2045 = vpop.f32.mrb[0].mxu0
      %v2046 = vadd.f32 0.0, %v2045
      %v2047 = vpop.f32.mrb[0].mxu0
      %2048 = vmatprep.mubr.f32.mxu0 0.0
      %2049 = vmatmul.mubr.f32.gmra.mrb[0].mxu0 %v1879
      %v2050 = vpop.f32.mrb[0].mxu0
      %v2051 = vadd.f32 0.0, %v2050
      %v2052 = vpop.f32.mrb[0].mxu0
      %2053 = vmatprep.mubr.f32.mxu0 0.0
      %2054 = vmatmul.mubr.f32.gmra.mrb[0].mxu0 %v1882
      %v2055 = vpop.f32.mrb[0].mxu0
      %v2056 = vadd.f32 0.0, %v2055
      %v2057 = vpop.f32.mrb[0].mxu0
      %2058 = vmatprep.mubr.f32.mxu0 0.0
      %2059 = vmatmul.mubr.f32.gmra.mrb[0].mxu0 %v1885
      %v2060 = vpop.f32.mrb[0].mxu0
      %v2061 = vadd.f32 0.0, %v2060
      %v2062 = vpop.f32.mrb[0].mxu0
      %2063 = vmatprep.mubr.f32.mxu0 0.0
      %2064 = vmatmul.mubr.f32.gmra.mrb[0].mxu0 %v1888
      %v2065 = vpop.f32.mrb[0].mxu0
      %v2066 = vadd.f32 0.0, %v2065
      %v2067 = vpop.f32.mrb[0].mxu0
      %2068 = vmatprep.mubr.f32.mxu0 0.0
      %2069 = vmatmul.mubr.f32.gmra.mrb[0].mxu0 %v1891
      %v2070 = vpop.f32.mrb[0].mxu0
      %v2071 = vadd.f32 0.0, %v2070
      %v2072 = vpop.f32.mrb[0].mxu0
      %2073 = vmatprep.mubr.f32.mxu0 0.0
      %2074 = vmatmul.mubr.f32.gmra.mrb[0].mxu0 %v1894
      %v2075 = vpop.f32.mrb[0].mxu0
      %v2076 = vadd.f32 0.0, %v2075
      %v2077 = vpop.f32.mrb[0].mxu0
      %2078 = vmatprep.mubr.f32.mxu0 0.0
      %2079 = vmatmul.mubr.f32.gmra.mrb[0].mxu0 %v1897
      %v2080 = vpop.f32.mrb[0].mxu0
      %v2081 = vadd.f32 0.0, %v2080
      %v2082 = vpop.f32.mrb[0].mxu0
      %2083 = vmatprep.mubr.f32.mxu0 0.0
      %2084 = vmatmul.mubr.f32.gmra.mrb[0].mxu0 %v1900
      %v2085 = vpop.f32.mrb[0].mxu0
      %v2086 = vadd.f32 0.0, %v2085
      %v2087 = vpop.f32.mrb[0].mxu0
      %2088 = vmatprep.mubr.f32.mxu0 0.0
      %2089 = vmatmul.mubr.f32.gmra.mrb[0].mxu0 %v1903
      %v2090 = vpop.f32.mrb[0].mxu0
      %v2091 = vadd.f32 0.0, %v2090
      %v2092 = vpop.f32.mrb[0].mxu0
      %2093 = vmatprep.mubr.f32.mxu0 0.0
      %2094 = vmatmul.mubr.f32.gmra.mrb[0].mxu0 %v1906
      %v2095 = vpop.f32.mrb[0].mxu0
      %v2096 = vadd.f32 0.0, %v2095
      %v2097 = vpop.f32.mrb[0].mxu0
      %2098 = vmatprep.mubr.f32.mxu0 0.0
      %2099 = vmatmul.mubr.f32.gmra.mrb[0].mxu0 %v1909
      %v2100 = vpop.f32.mrb[0].mxu0
      %v2101 = vadd.f32 0.0, %v2100
      %v2102 = vpop.f32.mrb[0].mxu0
      %2103 = vmatprep.mubr.f32.mxu0 0.0
      %2104 = vmatmul.mubr.f32.gmra.mrb[0].mxu0 %v1912
      %v2105 = vpop.f32.mrb[0].mxu0
      %v2106 = vadd.f32 0.0, %v2105
      %v2107 = vpop.f32.mrb[0].mxu0
      %2108 = vmatprep.mubr.f32.mxu0 0.0
      %2109 = vmatmul.mubr.f32.gmra.mrb[0].mxu0 %v1915
      %v2110 = vpop.f32.mrb[0].mxu0
      %v2111 = vadd.f32 0.0, %v2110
      %v2112 = vpop.f32.mrb[0].mxu0
      %2113 = vmatprep.mubr.f32.mxu0 0.0
      %2114 = vmatmul.mubr.f32.gmra.mrb[0].mxu0 %v1918
      %v2115 = vpop.f32.mrb[0].mxu0
      %v2116 = vadd.f32 0.0, %v2115
      %v2117 = vpop.f32.mrb[0].mxu0
      %2118 = vmatprep.mubr.f32.mxu0 0.0
      %2119 = vmatmul.mubr.f32.gmra.mrb[0].mxu0 %v1921
      %v2120 = vpop.f32.mrb[0].mxu0
      %v2121 = vadd.f32 0.0, %v2120
      %v2122 = vpop.f32.mrb[0].mxu0
      %2123 = vmatprep.mubr.f32.mxu0 0.0
      %2124 = vmatmul.mubr.f32.gmra.mrb[0].mxu0 %v1924
      %v2125 = vpop.f32.mrb[0].mxu0
      %v2126 = vadd.f32 0.0, %v2125
      %v2127 = vpop.f32.mrb[0].mxu0
      %2128 = vmatprep.mubr.f32.mxu0 0.0
      %2129 = vmatmul.mubr.f32.gmra.mrb[0].mxu0 %v1927
      %v2130 = vpop.f32.mrb[0].mxu0
      %v2131 = vadd.f32 0.0, %v2130
      %v2132 = vpop.f32.mrb[0].mxu0
      %2133 = vmatprep.mubr.f32.mxu0 0.0
      %2134 = vmatmul.mubr.f32.gmra.mrb[0].mxu0 %v1930
      %v2135 = vpop.f32.mrb[0].mxu0
      %v2136 = vadd.f32 0.0, %v2135
      %v2137 = vpop.f32.mrb[0].mxu0
      %2138 = vmatprep.mubr.f32.mxu0 0.0
      %2139 = vmatmul.mubr.f32.gmra.mrb[0].mxu0 %v1933
      %v2140 = vpop.f32.mrb[0].mxu0
      %v2141 = vadd.f32 0.0, %v2140
      %v2142 = vpop.f32.mrb[0].mxu0
      %2143 = vmatprep.mubr.f32.mxu0 0.0
      %2144 = vmatmul.mubr.f32.gmra.mrb[0].mxu0 %v1936
      %v2145 = vpop.f32.mrb[0].mxu0
      %v2146 = vadd.f32 0.0, %v2145
      %v2147 = vpop.f32.mrb[0].mxu0
      %2148 = vmatprep.mubr.f32.mxu0 0.0
      %2149 = vmatmul.mubr.f32.gmra.mrb[0].mxu0 %v1939
      %v2150 = vpop.f32.mrb[0].mxu0
      %v2151 = vadd.f32 0.0, %v2150
      %v2152 = vpop.f32.mrb[0].mxu0
      %2153 = vmatprep.mubr.f32.mxu0 0.0
      %2154 = vmatmul.mubr.f32.gmra.mrb[0].mxu0 %v1942
      %v2155 = vpop.f32.mrb[0].mxu0
      %v2156 = vadd.f32 0.0, %v2155
      %v2157 = vpop.f32.mrb[0].mxu0
      %2158 = vmatprep.mubr.f32.mxu0 0.0
      %2159 = vmatmul.mubr.f32.gmra.mrb[0].mxu0 %v1945
      %v2160 = vpop.f32.mrb[0].mxu0
      %v2161 = vadd.f32 0.0, %v2160
      %v2162 = vpop.f32.mrb[0].mxu0
      %2163 = vmatprep.mubr.f32.mxu0 0.0
      %2164 = vmatmul.mubr.f32.gmra.mrb[0].mxu0 %v1948
      %v2165 = vpop.f32.mrb[0].mxu0
      %v2166 = vadd.f32 0.0, %v2165
      %v2167 = vpop.f32.mrb[0].mxu0
      %2168 = vmatprep.mubr.f32.mxu0 0.0
      %2169 = vmatmul.mubr.f32.gmra.mrb[0].mxu0 %v1951
      %v2170 = vpop.f32.mrb[0].mxu0
      %v2171 = vadd.f32 0.0, %v2170
      %v2172 = vpop.f32.mrb[0].mxu0
      %2173 = vmatprep.mubr.f32.mxu0 0.0
      %2174 = vmatmul.mubr.f32.gmra.mrb[0].mxu0 %v1954
      %v2175 = vpop.f32.mrb[0].mxu0
      %v2176 = vadd.f32 0.0, %v2175
      %v2177 = vpop.f32.mrb[0].mxu0
      %2178 = vmatprep.mubr.f32.mxu0 0.0
      %2179 = vmatmul.mubr.f32.gmra.mrb[0].mxu0 %v1957
      %v2180 = vpop.f32.mrb[0].mxu0
      %v2181 = vadd.f32 0.0, %v2180
      %v2182 = vpop.f32.mrb[0].mxu0
      %2183 = vmatprep.mubr.f32.mxu0 0.0
      %2184 = vmatmul.mubr.f32.gmra.mrb[0].mxu0 %v1960
      %v2185 = vpop.f32.mrb[0].mxu0
      %v2186 = vadd.f32 0.0, %v2185
      %v2187 = vpop.f32.mrb[0].mxu0
      %2188 = vmatprep.mubr.f32.mxu0 0.0
      %2189 = vmatmul.mubr.f32.gmra.mrb[0].mxu0 %v1963
      %v2190 = vpop.f32.mrb[0].mxu0
      %v2191 = vadd.f32 0.0, %v2190
      %v2192 = vpop.f32.mrb[0].mxu0
      %2193 = vdwg.mxu0
      %2194 = vst.msk [vmem:[%s271] sm:$0xff] %vm1632, %v2036
      %2195 = vst.msk [vmem:[%s271 + $0x8] sm:$0xff] %vm1632, %v2041
      %2196 = vst.msk [vmem:[%s271 + $0x10] sm:$0xff] %vm1632, %v2046
      %2197 = vst.msk [vmem:[%s271 + $0x18] sm:$0xff] %vm1632, %v2051
      %2198 = vst.msk [vmem:[%s271 + $0x20] sm:$0xff] %vm1632, %v2056
      %2199 = vst.msk [vmem:[%s271 + $0x28] sm:$0xff] %vm1632, %v2061
      %2200 = vst.msk [vmem:[%s271 + $0x30] sm:$0xff] %vm1632, %v2066
      %2201 = vst.msk [vmem:[%s271 + $0x38] sm:$0xff] %vm1632, %v2071
      %2202 = vst.msk [vmem:[%s271 + $0x40] sm:$0xff] %vm1632, %v2076
      %2203 = vst.msk [vmem:[%s271 + $0x48] sm:$0xff] %vm1632, %v2081
      %2204 = vst.msk [vmem:[%s271 + $0x50] sm:$0xff] %vm1632, %v2086
      %2205 = vst.msk [vmem:[%s271 + $0x58] sm:$0xff] %vm1632, %v2091
      %2206 = vst.msk [vmem:[%s271 + $0x60] sm:$0xff] %vm1632, %v2096
      %2207 = vst.msk [vmem:[%s271 + $0x68] sm:$0xff] %vm1632, %v2101
      %2208 = vst.msk [vmem:[%s271 + $0x70] sm:$0xff] %vm1632, %v2106
      %2209 = vst.msk [vmem:[%s271 + $0x78] sm:$0xff] %vm1632, %v2111
      %2210 = vst.msk [vmem:[%s271 + $0x80] sm:$0xff] %vm1632, %v2116
      %2211 = vst.msk [vmem:[%s271 + $0x88] sm:$0xff] %vm1632, %v2121
      %2212 = vst.msk [vmem:[%s271 + $0x90] sm:$0xff] %vm1632, %v2126
      %2213 = vst.msk [vmem:[%s271 + $0x98] sm:$0xff] %vm1632, %v2131
      %2214 = vst.msk [vmem:[%s271 + $0xa0] sm:$0xff] %vm1632, %v2136
      %2215 = vst.msk [vmem:[%s271 + $0xa8] sm:$0xff] %vm1632, %v2141
      %2216 = vst.msk [vmem:[%s271 + $0xb0] sm:$0xff] %vm1632, %v2146
      %2217 = vst.msk [vmem:[%s271 + $0xb8] sm:$0xff] %vm1632, %v2151
      %2218 = vst.msk [vmem:[%s271 + $0xc0] sm:$0xff] %vm1632, %v2156
      %2219 = vst.msk [vmem:[%s271 + $0xc8] sm:$0xff] %vm1632, %v2161
      %2220 = vst.msk [vmem:[%s271 + $0xd0] sm:$0xff] %vm1632, %v2166
      %2221 = vst.msk [vmem:[%s271 + $0xd8] sm:$0xff] %vm1632, %v2171
      %2222 = vst.msk [vmem:[%s271 + $0xe0] sm:$0xff] %vm1632, %v2176
      %2223 = vst.msk [vmem:[%s271 + $0xe8] sm:$0xff] %vm1632, %v2181
      %2224 = vst.msk [vmem:[%s271 + $0xf0] sm:$0xff] %vm1632, %v2186
      %2225 = vst.msk [vmem:[%s271 + $0xf8] sm:$0xff] %vm1632, %v2191
      %v2226 = vsel %vm1632, %v2036, 0.0
      %v2227 = vsel %vm1632, %v2041, 0.0
      %v2228 = vadd.f32 %v2226, %v2227
      %v2229 = vsel %vm1632, %v2046, 0.0
      %v2230 = vadd.f32 %v2228, %v2229
      %v2231 = vsel %vm1632, %v2051, 0.0
      %v2232 = vadd.f32 %v2230, %v2231
      %v2233 = vsel %vm1632, %v2056, 0.0
      %v2234 = vadd.f32 %v2232, %v2233
      %v2235 = vsel %vm1632, %v2061, 0.0
      %v2236 = vadd.f32 %v2234, %v2235
      %v2237 = vsel %vm1632, %v2066, 0.0
      %v2238 = vadd.f32 %v2236, %v2237
      %v2239 = vsel %vm1632, %v2071, 0.0
      %v2240 = vadd.f32 %v2238, %v2239
      %v2241 = vsel %vm1632, %v2076, 0.0
      %v2242 = vadd.f32 %v2240, %v2241
      %v2243 = vsel %vm1632, %v2081, 0.0
      %v2244 = vadd.f32 %v2242, %v2243
      %v2245 = vsel %vm1632, %v2086, 0.0
      %v2246 = vadd.f32 %v2244, %v2245
      %v2247 = vsel %vm1632, %v2091, 0.0
      %v2248 = vadd.f32 %v2246, %v2247
      %v2249 = vsel %vm1632, %v2096, 0.0
      %v2250 = vadd.f32 %v2248, %v2249
      %v2251 = vsel %vm1632, %v2101, 0.0
      %v2252 = vadd.f32 %v2250, %v2251
      %v2253 = vsel %vm1632, %v2106, 0.0
      %v2254 = vadd.f32 %v2252, %v2253
      %v2255 = vsel %vm1632, %v2111, 0.0
      %v2256 = vadd.f32 %v2254, %v2255
      %v2257 = vsel %vm1632, %v2116, 0.0
      %v2258 = vadd.f32 %v2256, %v2257
      %v2259 = vsel %vm1632, %v2121, 0.0
      %v2260 = vadd.f32 %v2258, %v2259
      %v2261 = vsel %vm1632, %v2126, 0.0
      %v2262 = vadd.f32 %v2260, %v2261
      %v2263 = vsel %vm1632, %v2131, 0.0
      %v2264 = vadd.f32 %v2262, %v2263
      %v2265 = vsel %vm1632, %v2136, 0.0
      %v2266 = vadd.f32 %v2264, %v2265
      %v2267 = vsel %vm1632, %v2141, 0.0
      %v2268 = vadd.f32 %v2266, %v2267
      %v2269 = vsel %vm1632, %v2146, 0.0
      %v2270 = vadd.f32 %v2268, %v2269
      %v2271 = vsel %vm1632, %v2151, 0.0
      %v2272 = vadd.f32 %v2270, %v2271
      %v2273 = vsel %vm1632, %v2156, 0.0
      %v2274 = vadd.f32 %v2272, %v2273
      %v2275 = vsel %vm1632, %v2161, 0.0
      %v2276 = vadd.f32 %v2274, %v2275
      %v2277 = vsel %vm1632, %v2166, 0.0
      %v2278 = vadd.f32 %v2276, %v2277
      %v2279 = vsel %vm1632, %v2171, 0.0
      %v2280 = vadd.f32 %v2278, %v2279
      %v2281 = vsel %vm1632, %v2176, 0.0
      %v2282 = vadd.f32 %v2280, %v2281
      %v2283 = vsel %vm1632, %v2181, 0.0
      %v2284 = vadd.f32 %v2282, %v2283
      %v2285 = vsel %vm1632, %v2186, 0.0
      %v2286 = vadd.f32 %v2284, %v2285
      %v2287 = vsel %vm1632, %v2191, 0.0
      %v2288 = vadd.f32 %v2286, %v2287
      %v2289 = vrot.slane %v2288, 4
      %v2290 = vadd.f32 %v2288, %v2289
      %v2291 = vrot.slane %v2290, 2
      %v2292 = vadd.f32 %v2290, %v2291
      %v2293 = vrot.slane %v2292, 1
      %v2294 = vadd.f32 %v2292, %v2293
      %vm2295 = vcmask 57344
      %2296 = vst.msk [vmem:[%s275] sm:$0x1] %vm2295, %v2294
      %v2297 = vmul.f32 %v2036, %v2036
      %v2298 = vmul.f32 %v2041, %v2041
      %v2299 = vmul.f32 %v2046, %v2046
      %v2300 = vmul.f32 %v2051, %v2051
      %v2301 = vmul.f32 %v2056, %v2056
      %v2302 = vmul.f32 %v2061, %v2061
      %v2303 = vmul.f32 %v2066, %v2066
      %v2304 = vmul.f32 %v2071, %v2071
      %v2305 = vmul.f32 %v2076, %v2076
      %v2306 = vmul.f32 %v2081, %v2081
      %v2307 = vmul.f32 %v2086, %v2086
      %v2308 = vmul.f32 %v2091, %v2091
      %v2309 = vmul.f32 %v2096, %v2096
      %v2310 = vmul.f32 %v2101, %v2101
      %v2311 = vmul.f32 %v2106, %v2106
      %v2312 = vmul.f32 %v2111, %v2111
      %v2313 = vmul.f32 %v2116, %v2116
      %v2314 = vmul.f32 %v2121, %v2121
      %v2315 = vmul.f32 %v2126, %v2126
      %v2316 = vmul.f32 %v2131, %v2131
      %v2317 = vmul.f32 %v2136, %v2136
      %v2318 = vmul.f32 %v2141, %v2141
      %v2319 = vmul.f32 %v2146, %v2146
      %v2320 = vmul.f32 %v2151, %v2151
      %v2321 = vmul.f32 %v2156, %v2156
      %v2322 = vmul.f32 %v2161, %v2161
      %v2323 = vmul.f32 %v2166, %v2166
      %v2324 = vmul.f32 %v2171, %v2171
      %v2325 = vmul.f32 %v2176, %v2176
      %v2326 = vmul.f32 %v2181, %v2181
      %v2327 = vmul.f32 %v2186, %v2186
      %v2328 = vmul.f32 %v2191, %v2191
      %v2329 = vsel %vm1632, %v2297, 0.0
      %v2330 = vsel %vm1632, %v2298, 0.0
      %v2331 = vadd.f32 %v2329, %v2330
      %v2332 = vsel %vm1632, %v2299, 0.0
      %v2333 = vadd.f32 %v2331, %v2332
      %v2334 = vsel %vm1632, %v2300, 0.0
      %v2335 = vadd.f32 %v2333, %v2334
      %v2336 = vsel %vm1632, %v2301, 0.0
      %v2337 = vadd.f32 %v2335, %v2336
      %v2338 = vsel %vm1632, %v2302, 0.0
      %v2339 = vadd.f32 %v2337, %v2338
      %v2340 = vsel %vm1632, %v2303, 0.0
      %v2341 = vadd.f32 %v2339, %v2340
      %v2342 = vsel %vm1632, %v2304, 0.0
      %v2343 = vadd.f32 %v2341, %v2342
      %v2344 = vsel %vm1632, %v2305, 0.0
      %v2345 = vadd.f32 %v2343, %v2344
      %v2346 = vsel %vm1632, %v2306, 0.0
      %v2347 = vadd.f32 %v2345, %v2346
      %v2348 = vsel %vm1632, %v2307, 0.0
      %v2349 = vadd.f32 %v2347, %v2348
      %v2350 = vsel %vm1632, %v2308, 0.0
      %v2351 = vadd.f32 %v2349, %v2350
      %v2352 = vsel %vm1632, %v2309, 0.0
      %v2353 = vadd.f32 %v2351, %v2352
      %v2354 = vsel %vm1632, %v2310, 0.0
      %v2355 = vadd.f32 %v2353, %v2354
      %v2356 = vsel %vm1632, %v2311, 0.0
      %v2357 = vadd.f32 %v2355, %v2356
      %v2358 = vsel %vm1632, %v2312, 0.0
      %v2359 = vadd.f32 %v2357, %v2358
      %v2360 = vsel %vm1632, %v2313, 0.0
      %v2361 = vadd.f32 %v2359, %v2360
      %v2362 = vsel %vm1632, %v2314, 0.0
      %v2363 = vadd.f32 %v2361, %v2362
      %v2364 = vsel %vm1632, %v2315, 0.0
      %v2365 = vadd.f32 %v2363, %v2364
      %v2366 = vsel %vm1632, %v2316, 0.0
      %v2367 = vadd.f32 %v2365, %v2366
      %v2368 = vsel %vm1632, %v2317, 0.0
      %v2369 = vadd.f32 %v2367, %v2368
      %v2370 = vsel %vm1632, %v2318, 0.0
      %v2371 = vadd.f32 %v2369, %v2370
      %v2372 = vsel %vm1632, %v2319, 0.0
      %v2373 = vadd.f32 %v2371, %v2372
      %v2374 = vsel %vm1632, %v2320, 0.0
      %v2375 = vadd.f32 %v2373, %v2374
      %v2376 = vsel %vm1632, %v2321, 0.0
      %v2377 = vadd.f32 %v2375, %v2376
      %v2378 = vsel %vm1632, %v2322, 0.0
      %v2379 = vadd.f32 %v2377, %v2378
      %v2380 = vsel %vm1632, %v2323, 0.0
      %v2381 = vadd.f32 %v2379, %v2380
      %v2382 = vsel %vm1632, %v2324, 0.0
      %v2383 = vadd.f32 %v2381, %v2382
      %v2384 = vsel %vm1632, %v2325, 0.0
      %v2385 = vadd.f32 %v2383, %v2384
      %v2386 = vsel %vm1632, %v2326, 0.0
      %v2387 = vadd.f32 %v2385, %v2386
      %v2388 = vsel %vm1632, %v2327, 0.0
      %v2389 = vadd.f32 %v2387, %v2388
      %v2390 = vsel %vm1632, %v2328, 0.0
      %v2391 = vadd.f32 %v2389, %v2390
      %v2392 = vrot.slane %v2391, 4
      %v2393 = vadd.f32 %v2391, %v2392
      %v2394 = vrot.slane %v2393, 2
      %v2395 = vadd.f32 %v2393, %v2394
      %v2396 = vrot.slane %v2395, 1
      %v2397 = vadd.f32 %v2395, %v2396
      %2398 = vst.msk [vmem:[%s275 + $0x1] sm:$0x1] %vm2295, %v2397
      %v2399 = vld [vmem:[%s381 + $0x1] sm:$0xff]
      %v2400 = vld [vmem:[%s381 + $0x9] sm:$0xff]
      %v2401 = vld [vmem:[%s381 + $0x19] sm:$0xff]
      %v2402 = vld [vmem:[%s381 + $0x21] sm:$0xff]
      %v2403 = vld [vmem:[%s381 + $0x31] sm:$0xff]
      %v2404 = vld [vmem:[%s381 + $0x39] sm:$0xff]
      %v2405 = vld [vmem:[%s381 + $0x49] sm:$0xff]
      %v2406 = vld [vmem:[%s381 + $0x51] sm:$0xff]
      %v2407 = vld [vmem:[%s381 + $0x61] sm:$0xff]
      %v2408 = vld [vmem:[%s381 + $0x69] sm:$0xff]
      %v2409 = vld [vmem:[%s381 + $0x79] sm:$0xff]
      %v2410 = vld [vmem:[%s381 + $0x81] sm:$0xff]
      %v2411 = vld [vmem:[%s381 + $0x91] sm:$0xff]
      %v2412 = vld [vmem:[%s381 + $0x99] sm:$0xff]
      %v2413 = vld [vmem:[%s381 + $0xa9] sm:$0xff]
      %v2414 = vld [vmem:[%s381 + $0xb1] sm:$0xff]
      %v2415 = vld [vmem:[%s381 + $0xc1] sm:$0xff]
      %v2416 = vld [vmem:[%s381 + $0xc9] sm:$0xff]
      %v2417 = vld [vmem:[%s381 + $0xd9] sm:$0xff]
      %v2418 = vld [vmem:[%s381 + $0xe1] sm:$0xff]
      %v2419 = vld [vmem:[%s381 + $0xf1] sm:$0xff]
      %v2420 = vld [vmem:[%s381 + $0xf9] sm:$0xff]
      %v2421 = vld [vmem:[%s381 + $0x109] sm:$0xff]
      %v2422 = vld [vmem:[%s381 + $0x111] sm:$0xff]
      %v2423 = vld [vmem:[%s381 + $0x121] sm:$0xff]
      %v2424 = vld [vmem:[%s381 + $0x129] sm:$0xff]
      %v2425 = vld [vmem:[%s381 + $0x139] sm:$0xff]
      %v2426 = vld [vmem:[%s381 + $0x141] sm:$0xff]
      %v2427 = vld [vmem:[%s381 + $0x151] sm:$0xff]
      %v2428 = vld [vmem:[%s381 + $0x159] sm:$0xff]
      %v2429 = vld [vmem:[%s381 + $0x169] sm:$0xff]
      %v2430 = vld [vmem:[%s381 + $0x171] sm:$0xff]
      %v2431 = vld [vmem:[%s2] sm:$0xf]
      %v2433 = vsel %vm1599, %v2399, 0
      %v2436 = vsel %vm1599, %v2400, 0
      %v2439 = vsel %vm1599, %v2401, 0
      %v2442 = vsel %vm1599, %v2402, 0
      %v2445 = vsel %vm1599, %v2403, 0
      %v2448 = vsel %vm1599, %v2404, 0
      %v2451 = vsel %vm1599, %v2405, 0
      %v2454 = vsel %vm1599, %v2406, 0
      %v2457 = vsel %vm1599, %v2407, 0
      %v2460 = vsel %vm1599, %v2408, 0
      %v2463 = vsel %vm1599, %v2409, 0
      %v2466 = vsel %vm1599, %v2410, 0
      %v2469 = vsel %vm1599, %v2411, 0
      %v2472 = vsel %vm1599, %v2412, 0
      %v2475 = vsel %vm1599, %v2413, 0
      %v2478 = vsel %vm1599, %v2414, 0
      %v2481 = vsel %vm1599, %v2415, 0
      %v2484 = vsel %vm1599, %v2416, 0
      %v2487 = vsel %vm1599, %v2417, 0
      %v2490 = vsel %vm1599, %v2418, 0
      %v2493 = vsel %vm1599, %v2419, 0
      %v2496 = vsel %vm1599, %v2420, 0
      %v2499 = vsel %vm1599, %v2421, 0
      %v2502 = vsel %vm1599, %v2422, 0
      %v2505 = vsel %vm1599, %v2423, 0
      %v2508 = vsel %vm1599, %v2424, 0
      %v2511 = vsel %vm1599, %v2425, 0
      %v2514 = vsel %vm1599, %v2426, 0
      %v2517 = vsel %vm1599, %v2427, 0
      %v2520 = vsel %vm1599, %v2428, 0
      %v2523 = vsel %vm1599, %v2429, 0
      %v2526 = vsel %vm1599, %v2430, 0
      %v2529 = vsel %vm1965, %v2431, 0
      %2531 = vmatprep.subr.mxu0 0.0
      %2532 = vmatpush1.msra.mxu0 %v2529
      %2533 = vmatprep.subr.mxu0 0.0
      %2534 = vmatpush1.msra.mxu0 0.0
      %2535 = vmatprep.subr.mxu0 0.0
      %2536 = vmatpush1.msra.mxu0 0.0
      %2537 = vmatprep.subr.mxu0 0.0
      %2538 = vmatpush1.msra.mxu0 0.0
      %2539 = vmatprep.subr.mxu0 0.0
      %2540 = vmatpush1.msra.mxu0 0.0
      %2541 = vmatprep.subr.mxu0 0.0
      %2542 = vmatpush1.msra.mxu0 0.0
      %2543 = vmatprep.subr.mxu0 0.0
      %2544 = vmatpush1.msra.mxu0 0.0
      %2545 = vmatprep.subr.mxu0 0.0
      %2546 = vmatpush1.msra.mxu0 0.0
      %2547 = vmatprep.subr.mxu0 0.0
      %2548 = vmatpush1.msra.mxu0 0.0
      %2549 = vmatprep.subr.mxu0 0.0
      %2550 = vmatpush1.msra.mxu0 0.0
      %2551 = vmatprep.subr.mxu0 0.0
      %2552 = vmatpush1.msra.mxu0 0.0
      %2553 = vmatprep.subr.mxu0 0.0
      %2554 = vmatpush1.msra.mxu0 0.0
      %2555 = vmatprep.subr.mxu0 0.0
      %2556 = vmatpush1.msra.mxu0 0.0
      %2557 = vmatprep.subr.mxu0 0.0
      %2558 = vmatpush1.msra.mxu0 0.0
      %2559 = vmatprep.subr.mxu0 0.0
      %2560 = vmatpush1.msra.mxu0 0.0
      %2561 = vmatprep.subr.mxu0 0.0
      %2562 = vmatpush1.msra.mxu0 0.0
      %2563 = vmatprep.subr.mxu0 0.0
      %2564 = vmatpush1.msra.mxu0 0.0
      %2565 = vmatprep.subr.mxu0 0.0
      %2566 = vmatpush1.msra.mxu0 0.0
      %2567 = vmatprep.subr.mxu0 0.0
      %2568 = vmatpush1.msra.mxu0 0.0
      %2569 = vmatprep.subr.mxu0 0.0
      %2570 = vmatpush1.msra.mxu0 0.0
      %2571 = vmatprep.subr.mxu0 0.0
      %2572 = vmatpush1.msra.mxu0 0.0
      %2573 = vmatprep.subr.mxu0 0.0
      %2574 = vmatpush1.msra.mxu0 0.0
      %2575 = vmatprep.subr.mxu0 0.0
      %2576 = vmatpush1.msra.mxu0 0.0
      %2577 = vmatprep.subr.mxu0 0.0
      %2578 = vmatpush1.msra.mxu0 0.0
      %2579 = vmatprep.subr.mxu0 0.0
      %2580 = vmatpush1.msra.mxu0 0.0
      %2581 = vmatprep.subr.mxu0 0.0
      %2582 = vmatpush1.msra.mxu0 0.0
      %2583 = vmatprep.subr.mxu0 0.0
      %2584 = vmatpush1.msra.mxu0 0.0
      %2585 = vmatprep.subr.mxu0 0.0
      %2586 = vmatpush1.msra.mxu0 0.0
      %2587 = vmatprep.subr.mxu0 0.0
      %2588 = vmatpush1.msra.mxu0 0.0
      %2589 = vmatprep.subr.mxu0 0.0
      %2590 = vmatpush1.msra.mxu0 0.0
      %2591 = vmatprep.subr.mxu0 0.0
      %2592 = vmatpush1.msra.mxu0 0.0
      %2593 = vmatprep.subr.mxu0 0.0
      %2594 = vmatpush1.msra.mxu0 0.0
      %2595 = vmatprep.mubr.f32.mxu0 0.0
      %2596 = vmatmul.mubr.f32.gmra.mrb[0].mxu0 %v2433
      %v2597 = vpop.f32.mrb[0].mxu0
      %v2598 = vadd.f32 0.0, %v2597
      %v2599 = vpop.f32.mrb[0].mxu0
      %2600 = vmatprep.mubr.f32.mxu0 0.0
      %2601 = vmatmul.mubr.f32.gmra.mrb[0].mxu0 %v2436
      %v2602 = vpop.f32.mrb[0].mxu0
      %v2603 = vadd.f32 0.0, %v2602
      %v2604 = vpop.f32.mrb[0].mxu0
      %2605 = vmatprep.mubr.f32.mxu0 0.0
      %2606 = vmatmul.mubr.f32.gmra.mrb[0].mxu0 %v2439
      %v2607 = vpop.f32.mrb[0].mxu0
      %v2608 = vadd.f32 0.0, %v2607
      %v2609 = vpop.f32.mrb[0].mxu0
      %2610 = vmatprep.mubr.f32.mxu0 0.0
      %2611 = vmatmul.mubr.f32.gmra.mrb[0].mxu0 %v2442
      %v2612 = vpop.f32.mrb[0].mxu0
      %v2613 = vadd.f32 0.0, %v2612
      %v2614 = vpop.f32.mrb[0].mxu0
      %2615 = vmatprep.mubr.f32.mxu0 0.0
      %2616 = vmatmul.mubr.f32.gmra.mrb[0].mxu0 %v2445
      %v2617 = vpop.f32.mrb[0].mxu0
      %v2618 = vadd.f32 0.0, %v2617
      %v2619 = vpop.f32.mrb[0].mxu0
      %2620 = vmatprep.mubr.f32.mxu0 0.0
      %2621 = vmatmul.mubr.f32.gmra.mrb[0].mxu0 %v2448
      %v2622 = vpop.f32.mrb[0].mxu0
      %v2623 = vadd.f32 0.0, %v2622
      %v2624 = vpop.f32.mrb[0].mxu0
      %2625 = vmatprep.mubr.f32.mxu0 0.0
      %2626 = vmatmul.mubr.f32.gmra.mrb[0].mxu0 %v2451
      %v2627 = vpop.f32.mrb[0].mxu0
      %v2628 = vadd.f32 0.0, %v2627
      %v2629 = vpop.f32.mrb[0].mxu0
      %2630 = vmatprep.mubr.f32.mxu0 0.0
      %2631 = vmatmul.mubr.f32.gmra.mrb[0].mxu0 %v2454
      %v2632 = vpop.f32.mrb[0].mxu0
      %v2633 = vadd.f32 0.0, %v2632
      %v2634 = vpop.f32.mrb[0].mxu0
      %2635 = vmatprep.mubr.f32.mxu0 0.0
      %2636 = vmatmul.mubr.f32.gmra.mrb[0].mxu0 %v2457
      %v2637 = vpop.f32.mrb[0].mxu0
      %v2638 = vadd.f32 0.0, %v2637
      %v2639 = vpop.f32.mrb[0].mxu0
      %2640 = vmatprep.mubr.f32.mxu0 0.0
      %2641 = vmatmul.mubr.f32.gmra.mrb[0].mxu0 %v2460
      %v2642 = vpop.f32.mrb[0].mxu0
      %v2643 = vadd.f32 0.0, %v2642
      %v2644 = vpop.f32.mrb[0].mxu0
      %2645 = vmatprep.mubr.f32.mxu0 0.0
      %2646 = vmatmul.mubr.f32.gmra.mrb[0].mxu0 %v2463
      %v2647 = vpop.f32.mrb[0].mxu0
      %v2648 = vadd.f32 0.0, %v2647
      %v2649 = vpop.f32.mrb[0].mxu0
      %2650 = vmatprep.mubr.f32.mxu0 0.0
      %2651 = vmatmul.mubr.f32.gmra.mrb[0].mxu0 %v2466
      %v2652 = vpop.f32.mrb[0].mxu0
      %v2653 = vadd.f32 0.0, %v2652
      %v2654 = vpop.f32.mrb[0].mxu0
      %2655 = vmatprep.mubr.f32.mxu0 0.0
      %2656 = vmatmul.mubr.f32.gmra.mrb[0].mxu0 %v2469
      %v2657 = vpop.f32.mrb[0].mxu0
      %v2658 = vadd.f32 0.0, %v2657
      %v2659 = vpop.f32.mrb[0].mxu0
      %2660 = vmatprep.mubr.f32.mxu0 0.0
      %2661 = vmatmul.mubr.f32.gmra.mrb[0].mxu0 %v2472
      %v2662 = vpop.f32.mrb[0].mxu0
      %v2663 = vadd.f32 0.0, %v2662
      %v2664 = vpop.f32.mrb[0].mxu0
      %2665 = vmatprep.mubr.f32.mxu0 0.0
      %2666 = vmatmul.mubr.f32.gmra.mrb[0].mxu0 %v2475
      %v2667 = vpop.f32.mrb[0].mxu0
      %v2668 = vadd.f32 0.0, %v2667
      %v2669 = vpop.f32.mrb[0].mxu0
      %2670 = vmatprep.mubr.f32.mxu0 0.0
      %2671 = vmatmul.mubr.f32.gmra.mrb[0].mxu0 %v2478
      %v2672 = vpop.f32.mrb[0].mxu0
      %v2673 = vadd.f32 0.0, %v2672
      %v2674 = vpop.f32.mrb[0].mxu0
      %2675 = vmatprep.mubr.f32.mxu0 0.0
      %2676 = vmatmul.mubr.f32.gmra.mrb[0].mxu0 %v2481
      %v2677 = vpop.f32.mrb[0].mxu0
      %v2678 = vadd.f32 0.0, %v2677
      %v2679 = vpop.f32.mrb[0].mxu0
      %2680 = vmatprep.mubr.f32.mxu0 0.0
      %2681 = vmatmul.mubr.f32.gmra.mrb[0].mxu0 %v2484
      %v2682 = vpop.f32.mrb[0].mxu0
      %v2683 = vadd.f32 0.0, %v2682
      %v2684 = vpop.f32.mrb[0].mxu0
      %2685 = vmatprep.mubr.f32.mxu0 0.0
      %2686 = vmatmul.mubr.f32.gmra.mrb[0].mxu0 %v2487
      %v2687 = vpop.f32.mrb[0].mxu0
      %v2688 = vadd.f32 0.0, %v2687
      %v2689 = vpop.f32.mrb[0].mxu0
      %2690 = vmatprep.mubr.f32.mxu0 0.0
      %2691 = vmatmul.mubr.f32.gmra.mrb[0].mxu0 %v2490
      %v2692 = vpop.f32.mrb[0].mxu0
      %v2693 = vadd.f32 0.0, %v2692
      %v2694 = vpop.f32.mrb[0].mxu0
      %2695 = vmatprep.mubr.f32.mxu0 0.0
      %2696 = vmatmul.mubr.f32.gmra.mrb[0].mxu0 %v2493
      %v2697 = vpop.f32.mrb[0].mxu0
      %v2698 = vadd.f32 0.0, %v2697
      %v2699 = vpop.f32.mrb[0].mxu0
      %2700 = vmatprep.mubr.f32.mxu0 0.0
      %2701 = vmatmul.mubr.f32.gmra.mrb[0].mxu0 %v2496
      %v2702 = vpop.f32.mrb[0].mxu0
      %v2703 = vadd.f32 0.0, %v2702
      %v2704 = vpop.f32.mrb[0].mxu0
      %2705 = vmatprep.mubr.f32.mxu0 0.0
      %2706 = vmatmul.mubr.f32.gmra.mrb[0].mxu0 %v2499
      %v2707 = vpop.f32.mrb[0].mxu0
      %v2708 = vadd.f32 0.0, %v2707
      %v2709 = vpop.f32.mrb[0].mxu0
      %2710 = vmatprep.mubr.f32.mxu0 0.0
      %2711 = vmatmul.mubr.f32.gmra.mrb[0].mxu0 %v2502
      %v2712 = vpop.f32.mrb[0].mxu0
      %v2713 = vadd.f32 0.0, %v2712
      %v2714 = vpop.f32.mrb[0].mxu0
      %2715 = vmatprep.mubr.f32.mxu0 0.0
      %2716 = vmatmul.mubr.f32.gmra.mrb[0].mxu0 %v2505
      %v2717 = vpop.f32.mrb[0].mxu0
      %v2718 = vadd.f32 0.0, %v2717
      %v2719 = vpop.f32.mrb[0].mxu0
      %2720 = vmatprep.mubr.f32.mxu0 0.0
      %2721 = vmatmul.mubr.f32.gmra.mrb[0].mxu0 %v2508
      %v2722 = vpop.f32.mrb[0].mxu0
      %v2723 = vadd.f32 0.0, %v2722
      %v2724 = vpop.f32.mrb[0].mxu0
      %2725 = vmatprep.mubr.f32.mxu0 0.0
      %2726 = vmatmul.mubr.f32.gmra.mrb[0].mxu0 %v2511
      %v2727 = vpop.f32.mrb[0].mxu0
      %v2728 = vadd.f32 0.0, %v2727
      %v2729 = vpop.f32.mrb[0].mxu0
      %2730 = vmatprep.mubr.f32.mxu0 0.0
      %2731 = vmatmul.mubr.f32.gmra.mrb[0].mxu0 %v2514
      %v2732 = vpop.f32.mrb[0].mxu0
      %v2733 = vadd.f32 0.0, %v2732
      %v2734 = vpop.f32.mrb[0].mxu0
      %2735 = vmatprep.mubr.f32.mxu0 0.0
      %2736 = vmatmul.mubr.f32.gmra.mrb[0].mxu0 %v2517
      %v2737 = vpop.f32.mrb[0].mxu0
      %v2738 = vadd.f32 0.0, %v2737
      %v2739 = vpop.f32.mrb[0].mxu0
      %2740 = vmatprep.mubr.f32.mxu0 0.0
      %2741 = vmatmul.mubr.f32.gmra.mrb[0].mxu0 %v2520
      %v2742 = vpop.f32.mrb[0].mxu0
      %v2743 = vadd.f32 0.0, %v2742
      %v2744 = vpop.f32.mrb[0].mxu0
      %2745 = vmatprep.mubr.f32.mxu0 0.0
      %2746 = vmatmul.mubr.f32.gmra.mrb[0].mxu0 %v2523
      %v2747 = vpop.f32.mrb[0].mxu0
      %v2748 = vadd.f32 0.0, %v2747
      %v2749 = vpop.f32.mrb[0].mxu0
      %2750 = vmatprep.mubr.f32.mxu0 0.0
      %2751 = vmatmul.mubr.f32.gmra.mrb[0].mxu0 %v2526
      %v2752 = vpop.f32.mrb[0].mxu0
      %v2753 = vadd.f32 0.0, %v2752
      %v2754 = vpop.f32.mrb[0].mxu0
      %2755 = vdwg.mxu0
      %2756 = vst.msk [vmem:[%s280] sm:$0xff] %vm1632, %v2598
      %2757 = vst.msk [vmem:[%s280 + $0x8] sm:$0xff] %vm1632, %v2603
      %2758 = vst.msk [vmem:[%s280 + $0x10] sm:$0xff] %vm1632, %v2608
      %2759 = vst.msk [vmem:[%s280 + $0x18] sm:$0xff] %vm1632, %v2613
      %2760 = vst.msk [vmem:[%s280 + $0x20] sm:$0xff] %vm1632, %v2618
      %2761 = vst.msk [vmem:[%s280 + $0x28] sm:$0xff] %vm1632, %v2623
      %2762 = vst.msk [vmem:[%s280 + $0x30] sm:$0xff] %vm1632, %v2628
      %2763 = vst.msk [vmem:[%s280 + $0x38] sm:$0xff] %vm1632, %v2633
      %2764 = vst.msk [vmem:[%s280 + $0x40] sm:$0xff] %vm1632, %v2638
      %2765 = vst.msk [vmem:[%s280 + $0x48] sm:$0xff] %vm1632, %v2643
      %2766 = vst.msk [vmem:[%s280 + $0x50] sm:$0xff] %vm1632, %v2648
      %2767 = vst.msk [vmem:[%s280 + $0x58] sm:$0xff] %vm1632, %v2653
      %2768 = vst.msk [vmem:[%s280 + $0x60] sm:$0xff] %vm1632, %v2658
      %2769 = vst.msk [vmem:[%s280 + $0x68] sm:$0xff] %vm1632, %v2663
      %2770 = vst.msk [vmem:[%s280 + $0x70] sm:$0xff] %vm1632, %v2668
      %2771 = vst.msk [vmem:[%s280 + $0x78] sm:$0xff] %vm1632, %v2673
      %2772 = vst.msk [vmem:[%s280 + $0x80] sm:$0xff] %vm1632, %v2678
      %2773 = vst.msk [vmem:[%s280 + $0x88] sm:$0xff] %vm1632, %v2683
      %2774 = vst.msk [vmem:[%s280 + $0x90] sm:$0xff] %vm1632, %v2688
      %2775 = vst.msk [vmem:[%s280 + $0x98] sm:$0xff] %vm1632, %v2693
      %2776 = vst.msk [vmem:[%s280 + $0xa0] sm:$0xff] %vm1632, %v2698
      %2777 = vst.msk [vmem:[%s280 + $0xa8] sm:$0xff] %vm1632, %v2703
      %2778 = vst.msk [vmem:[%s280 + $0xb0] sm:$0xff] %vm1632, %v2708
      %2779 = vst.msk [vmem:[%s280 + $0xb8] sm:$0xff] %vm1632, %v2713
      %2780 = vst.msk [vmem:[%s280 + $0xc0] sm:$0xff] %vm1632, %v2718
      %2781 = vst.msk [vmem:[%s280 + $0xc8] sm:$0xff] %vm1632, %v2723
      %2782 = vst.msk [vmem:[%s280 + $0xd0] sm:$0xff] %vm1632, %v2728
      %2783 = vst.msk [vmem:[%s280 + $0xd8] sm:$0xff] %vm1632, %v2733
      %2784 = vst.msk [vmem:[%s280 + $0xe0] sm:$0xff] %vm1632, %v2738
      %2785 = vst.msk [vmem:[%s280 + $0xe8] sm:$0xff] %vm1632, %v2743
      %2786 = vst.msk [vmem:[%s280 + $0xf0] sm:$0xff] %vm1632, %v2748
      %2787 = vst.msk [vmem:[%s280 + $0xf8] sm:$0xff] %vm1632, %v2753
      %v2788 = vsel %vm1632, %v2598, 0.0
      %v2789 = vsel %vm1632, %v2603, 0.0
      %v2790 = vadd.f32 %v2788, %v2789
      %v2791 = vsel %vm1632, %v2608, 0.0
      %v2792 = vadd.f32 %v2790, %v2791
      %v2793 = vsel %vm1632, %v2613, 0.0
      %v2794 = vadd.f32 %v2792, %v2793
      %v2795 = vsel %vm1632, %v2618, 0.0
      %v2796 = vadd.f32 %v2794, %v2795
      %v2797 = vsel %vm1632, %v2623, 0.0
      %v2798 = vadd.f32 %v2796, %v2797
      %v2799 = vsel %vm1632, %v2628, 0.0
      %v2800 = vadd.f32 %v2798, %v2799
      %v2801 = vsel %vm1632, %v2633, 0.0
      %v2802 = vadd.f32 %v2800, %v2801
      %v2803 = vsel %vm1632, %v2638, 0.0
      %v2804 = vadd.f32 %v2802, %v2803
      %v2805 = vsel %vm1632, %v2643, 0.0
      %v2806 = vadd.f32 %v2804, %v2805
      %v2807 = vsel %vm1632, %v2648, 0.0
      %v2808 = vadd.f32 %v2806, %v2807
      %v2809 = vsel %vm1632, %v2653, 0.0
      %v2810 = vadd.f32 %v2808, %v2809
      %v2811 = vsel %vm1632, %v2658, 0.0
      %v2812 = vadd.f32 %v2810, %v2811
      %v2813 = vsel %vm1632, %v2663, 0.0
      %v2814 = vadd.f32 %v2812, %v2813
      %v2815 = vsel %vm1632, %v2668, 0.0
      %v2816 = vadd.f32 %v2814, %v2815
      %v2817 = vsel %vm1632, %v2673, 0.0
      %v2818 = vadd.f32 %v2816, %v2817
      %v2819 = vsel %vm1632, %v2678, 0.0
      %v2820 = vadd.f32 %v2818, %v2819
      %v2821 = vsel %vm1632, %v2683, 0.0
      %v2822 = vadd.f32 %v2820, %v2821
      %v2823 = vsel %vm1632, %v2688, 0.0
      %v2824 = vadd.f32 %v2822, %v2823
      %v2825 = vsel %vm1632, %v2693, 0.0
      %v2826 = vadd.f32 %v2824, %v2825
      %v2827 = vsel %vm1632, %v2698, 0.0
      %v2828 = vadd.f32 %v2826, %v2827
      %v2829 = vsel %vm1632, %v2703, 0.0
      %v2830 = vadd.f32 %v2828, %v2829
      %v2831 = vsel %vm1632, %v2708, 0.0
      %v2832 = vadd.f32 %v2830, %v2831
      %v2833 = vsel %vm1632, %v2713, 0.0
      %v2834 = vadd.f32 %v2832, %v2833
      %v2835 = vsel %vm1632, %v2718, 0.0
      %v2836 = vadd.f32 %v2834, %v2835
      %v2837 = vsel %vm1632, %v2723, 0.0
      %v2838 = vadd.f32 %v2836, %v2837
      %v2839 = vsel %vm1632, %v2728, 0.0
      %v2840 = vadd.f32 %v2838, %v2839
      %v2841 = vsel %vm1632, %v2733, 0.0
      %v2842 = vadd.f32 %v2840, %v2841
      %v2843 = vsel %vm1632, %v2738, 0.0
      %v2844 = vadd.f32 %v2842, %v2843
      %v2845 = vsel %vm1632, %v2743, 0.0
      %v2846 = vadd.f32 %v2844, %v2845
      %v2847 = vsel %vm1632, %v2748, 0.0
      %v2848 = vadd.f32 %v2846, %v2847
      %v2849 = vsel %vm1632, %v2753, 0.0
      %v2850 = vadd.f32 %v2848, %v2849
      %v2851 = vrot.slane %v2850, 4
      %v2852 = vadd.f32 %v2850, %v2851
      %v2853 = vrot.slane %v2852, 2
      %v2854 = vadd.f32 %v2852, %v2853
      %v2855 = vrot.slane %v2854, 1
      %v2856 = vadd.f32 %v2854, %v2855
      %2857 = vst.msk [vmem:[%s284] sm:$0x1] %vm2295, %v2856
      %v2858 = vmul.f32 %v2598, %v2598
      %v2859 = vmul.f32 %v2603, %v2603
      %v2860 = vmul.f32 %v2608, %v2608
      %v2861 = vmul.f32 %v2613, %v2613
      %v2862 = vmul.f32 %v2618, %v2618
      %v2863 = vmul.f32 %v2623, %v2623
      %v2864 = vmul.f32 %v2628, %v2628
      %v2865 = vmul.f32 %v2633, %v2633
      %v2866 = vmul.f32 %v2638, %v2638
      %v2867 = vmul.f32 %v2643, %v2643
      %v2868 = vmul.f32 %v2648, %v2648
      %v2869 = vmul.f32 %v2653, %v2653
      %v2870 = vmul.f32 %v2658, %v2658
      %v2871 = vmul.f32 %v2663, %v2663
      %v2872 = vmul.f32 %v2668, %v2668
      %v2873 = vmul.f32 %v2673, %v2673
      %v2874 = vmul.f32 %v2678, %v2678
      %v2875 = vmul.f32 %v2683, %v2683
      %v2876 = vmul.f32 %v2688, %v2688
      %v2877 = vmul.f32 %v2693, %v2693
      %v2878 = vmul.f32 %v2698, %v2698
      %v2879 = vmul.f32 %v2703, %v2703
      %v2880 = vmul.f32 %v2708, %v2708
      %v2881 = vmul.f32 %v2713, %v2713
      %v2882 = vmul.f32 %v2718, %v2718
      %v2883 = vmul.f32 %v2723, %v2723
      %v2884 = vmul.f32 %v2728, %v2728
      %v2885 = vmul.f32 %v2733, %v2733
      %v2886 = vmul.f32 %v2738, %v2738
      %v2887 = vmul.f32 %v2743, %v2743
      %v2888 = vmul.f32 %v2748, %v2748
      %v2889 = vmul.f32 %v2753, %v2753
      %v2890 = vsel %vm1632, %v2858, 0.0
      %v2891 = vsel %vm1632, %v2859, 0.0
      %v2892 = vadd.f32 %v2890, %v2891
      %v2893 = vsel %vm1632, %v2860, 0.0
      %v2894 = vadd.f32 %v2892, %v2893
      %v2895 = vsel %vm1632, %v2861, 0.0
      %v2896 = vadd.f32 %v2894, %v2895
      %v2897 = vsel %vm1632, %v2862, 0.0
      %v2898 = vadd.f32 %v2896, %v2897
      %v2899 = vsel %vm1632, %v2863, 0.0
      %v2900 = vadd.f32 %v2898, %v2899
      %v2901 = vsel %vm1632, %v2864, 0.0
      %v2902 = vadd.f32 %v2900, %v2901
      %v2903 = vsel %vm1632, %v2865, 0.0
      %v2904 = vadd.f32 %v2902, %v2903
      %v2905 = vsel %vm1632, %v2866, 0.0
      %v2906 = vadd.f32 %v2904, %v2905
      %v2907 = vsel %vm1632, %v2867, 0.0
      %v2908 = vadd.f32 %v2906, %v2907
      %v2909 = vsel %vm1632, %v2868, 0.0
      %v2910 = vadd.f32 %v2908, %v2909
      %v2911 = vsel %vm1632, %v2869, 0.0
      %v2912 = vadd.f32 %v2910, %v2911
      %v2913 = vsel %vm1632, %v2870, 0.0
      %v2914 = vadd.f32 %v2912, %v2913
      %v2915 = vsel %vm1632, %v2871, 0.0
      %v2916 = vadd.f32 %v2914, %v2915
      %v2917 = vsel %vm1632, %v2872, 0.0
      %v2918 = vadd.f32 %v2916, %v2917
      %v2919 = vsel %vm1632, %v2873, 0.0
      %v2920 = vadd.f32 %v2918, %v2919
      %v2921 = vsel %vm1632, %v2874, 0.0
      %v2922 = vadd.f32 %v2920, %v2921
      %v2923 = vsel %vm1632, %v2875, 0.0
      %v2924 = vadd.f32 %v2922, %v2923
      %v2925 = vsel %vm1632, %v2876, 0.0
      %v2926 = vadd.f32 %v2924, %v2925
      %v2927 = vsel %vm1632, %v2877, 0.0
      %v2928 = vadd.f32 %v2926, %v2927
      %v2929 = vsel %vm1632, %v2878, 0.0
      %v2930 = vadd.f32 %v2928, %v2929
      %v2931 = vsel %vm1632, %v2879, 0.0
      %v2932 = vadd.f32 %v2930, %v2931
      %v2933 = vsel %vm1632, %v2880, 0.0
      %v2934 = vadd.f32 %v2932, %v2933
      %v2935 = vsel %vm1632, %v2881, 0.0
      %v2936 = vadd.f32 %v2934, %v2935
      %v2937 = vsel %vm1632, %v2882, 0.0
      %v2938 = vadd.f32 %v2936, %v2937
      %v2939 = vsel %vm1632, %v2883, 0.0
      %v2940 = vadd.f32 %v2938, %v2939
      %v2941 = vsel %vm1632, %v2884, 0.0
      %v2942 = vadd.f32 %v2940, %v2941
      %v2943 = vsel %vm1632, %v2885, 0.0
      %v2944 = vadd.f32 %v2942, %v2943
      %v2945 = vsel %vm1632, %v2886, 0.0
      %v2946 = vadd.f32 %v2944, %v2945
      %v2947 = vsel %vm1632, %v2887, 0.0
      %v2948 = vadd.f32 %v2946, %v2947
      %v2949 = vsel %vm1632, %v2888, 0.0
      %v2950 = vadd.f32 %v2948, %v2949
      %v2951 = vsel %vm1632, %v2889, 0.0
      %v2952 = vadd.f32 %v2950, %v2951
      %v2953 = vrot.slane %v2952, 4
      %v2954 = vadd.f32 %v2952, %v2953
      %v2955 = vrot.slane %v2954, 2
      %v2956 = vadd.f32 %v2954, %v2955
      %v2957 = vrot.slane %v2956, 1
      %v2958 = vadd.f32 %v2956, %v2957
      %2959 = vst.msk [vmem:[%s284 + $0x1] sm:$0x1] %vm2295, %v2958
      %p2960 = scmp.lt.s32.totalorder %s18, 1
      %s2961 = scalar_select %p2960, %s18, 1
      %s2962 = smul.addr %s2961, 32
      %s2963 = smul.addr %s2962, 8
      %s2964 = scalar_lea.vmem %s3, %s2963
      %p2965 = scmp.lt.s32.totalorder %s18, 1
      %s2966 = scalar_select %p2965, %s18, 1
      %s2967 = smul.addr %s2966, 2
      %s2968 = scalar_lea.vmem %s4, %s2967
      %p2969 = scmp.lt.s32.totalorder %s18, 1
      %s2970 = scalar_select %p2969, %s18, 1
      %s2971 = smul.addr %s2970, 32
      %s2972 = smul.addr %s2971, 8
      %s2973 = scalar_lea.vmem %s5, %s2972
      %p2974 = scmp.lt.s32.totalorder %s18, 1
      %s2975 = scalar_select %p2974, %s18, 1
      %s2976 = smul.addr %s2975, 2
      %s2977 = scalar_lea.vmem %s6, %s2976
      // Predicated region
      $region33: #{basic_block_forward.3} parent=31 // pred_check
        %p2978 = pneg %p104
      $region34: #{basic_block_forward.3} parent=31 // pred_check_branch
        %2980 = sbr.rel (%p2978) target = $region36
      $region35: #{basic_block_forward.3} parent=31 // pred_region
        _
      $region36: #{basic_block_forward.3} parent=31 // pred_fallthru
        _
      // Predicated region
      $region37: #{basic_block_forward.3} parent=31 // pred_check
        %p2981 = pneg %p130
      $region38: #{basic_block_forward.3} parent=31 // pred_check_branch
        %2983 = sbr.rel (%p2981) target = $region40
      $region39: #{basic_block_forward.3} parent=31 // pred_region
        _
      $region40: #{basic_block_forward.3} parent=31 // pred_fallthru
        _
      // Predicated region
      $region41: #{basic_block_forward.3} parent=31 // pred_check
        %p2984 = pneg %p156
      $region42: #{basic_block_forward.3} parent=31 // pred_check_branch
        %2986 = sbr.rel (%p2984) target = $region44
      $region43: #{basic_block_forward.3} parent=31 // pred_region
        _
      $region44: #{basic_block_forward.3} parent=31 // pred_fallthru
        _
      // Predicated region
      $region45: #{basic_block_forward.3} parent=31 // pred_check
        %p2987 = pneg %p182
      $region46: #{basic_block_forward.3} parent=31 // pred_check_branch
        %2989 = sbr.rel (%p2987) target = $region48
      $region47: #{basic_block_forward.3} parent=31 // pred_region
        _
      $region48: #{basic_block_forward.3} parent=31 // pred_fallthru
        _
    $region32: #{basic_block_forward.3} parent=5 // pred_fallthru
      _
    %p2990 = scmp.le.s32.totalorder 2, %s13
    // Predicated region
    $region49: #{basic_block_forward.3} parent=5 // pred_check
      %p2991 = pneg %p2990
    $region50: #{basic_block_forward.3} parent=5 // pred_check_branch
      %2993 = sbr.rel (%p2991) target = $region52
    $region51: #{basic_block_forward.3} parent=5 // pred_region
      %s2994 = ssub.s32 %s13, 2
      // Predicated region
      $region53: #{basic_block_forward.3} parent=51 // pred_check
        %p2995 = pneg %p110
      $region54: #{basic_block_forward.3} parent=51 // pred_check_branch
        %2997 = sbr.rel (%p2995) target = $region56
      $region55: #{basic_block_forward.3} parent=51 // pred_region
        %p2998 = scmp.lt.s32.totalorder %s19, 1
        %s2999 = scalar_select %p2998, %s19, 1
        %s3000 = smul.addr %s2999, 32
        %s3001 = smul.addr %s3000, 8
        %s3002 = scalar_lea.vmem %s3, %s3001
      $region56: #{basic_block_forward.3} parent=51 // pred_fallthru
        _
      // Predicated region
      $region57: #{basic_block_forward.3} parent=51 // pred_check
        %p3003 = pneg %p136
      $region58: #{basic_block_forward.3} parent=51 // pred_check_branch
        %3005 = sbr.rel (%p3003) target = $region60
      $region59: #{basic_block_forward.3} parent=51 // pred_region
        %p3006 = scmp.lt.s32.totalorder %s19, 1
        %s3007 = scalar_select %p3006, %s19, 1
        %s3008 = smul.addr %s3007, 2
        %s3009 = scalar_lea.vmem %s4, %s3008
      $region60: #{basic_block_forward.3} parent=51 // pred_fallthru
        _
      // Predicated region
      $region61: #{basic_block_forward.3} parent=51 // pred_check
        %p3010 = pneg %p162
      $region62: #{basic_block_forward.3} parent=51 // pred_check_branch
        %3012 = sbr.rel (%p3010) target = $region64
      $region63: #{basic_block_forward.3} parent=51 // pred_region
        %p3013 = scmp.lt.s32.totalorder %s19, 1
        %s3014 = scalar_select %p3013, %s19, 1
        %s3015 = smul.addr %s3014, 32
        %s3016 = smul.addr %s3015, 8
        %s3017 = scalar_lea.vmem %s5, %s3016
      $region64: #{basic_block_forward.3} parent=51 // pred_fallthru
        _
      // Predicated region
      $region65: #{basic_block_forward.3} parent=51 // pred_check
        %p3018 = pneg %p188
      $region66: #{basic_block_forward.3} parent=51 // pred_check_branch
        %3020 = sbr.rel (%p3018) target = $region68
      $region67: #{basic_block_forward.3} parent=51 // pred_region
        %p3021 = scmp.lt.s32.totalorder %s19, 1
        %s3022 = scalar_select %p3021, %s19, 1
        %s3023 = smul.addr %s3022, 2
        %s3024 = scalar_lea.vmem %s6, %s3023
      $region68: #{basic_block_forward.3} parent=51 // pred_fallthru
        _
    $region52: #{basic_block_forward.3} parent=5 // pred_fallthru
      _
  $region6: #{basic_block_forward.3} parent=0 // loop_footer
    %s17 = sadd.s32 1, %s13
  $region7: #{basic_block_forward.3} parent=0 // loop_footer_branch
    %12 = sbr.rel target = $region3
  $region8: #{basic_block_forward.3} parent=0 // loop_exit
    _

// kernel: basic_block_forward.4
$region0: #{basic_block_forward.4}
  #allocation0 [shape = 'u32[]', space=smem, size = 0x4, offset = 0x4, fixed_abs, tag = 'smem constant byte address 0x4 - core index']
  #allocation1 [shape = 'u32[144,128]{1,0:T(1,128)}', space=vmem, size = 0x12000, scoped, tag = 'internal scratch']
  #allocation2 [shape = 'f32[18,18,8]{2,1,0:T(8,128)}', space=vmem, size = 0x36000, scoped, tag = 'scratch operand']
  %s0 = inlined_call_operand.vmem [shape: f32[2,256,8], index: 0, kind: input, shape index: {}]
  %s1 = inlined_call_operand.vmem [shape: f32[2,8], index: 1, kind: input, shape index: {}]
  %s2 = inlined_call_operand.vmem [shape: f32[72,8], index: 2, kind: input, shape index: {}]
  %s3 = inlined_call_operand.vmem [shape: f32[2,256,8], index: 3, kind: output, shape index: {0}]
  %s4 = inlined_call_operand.vmem [shape: f32[2,2,8], index: 4, kind: output, shape index: {1}]
  %5 = xla_tuple %s3, %s4
  %s6 = sld [smem:[#allocation0]]
  $region53: #{basic_block_forward.4} parent=0
    _
  %s8 = ssub.s32 1, %s6
  %s9 = scalar_select 0, %s8, %s6
  loop: start=0, step=1, limit=4
  $region2: #{basic_block_forward.4} parent=0 // loop_pre_header
    _
  $region3: #{basic_block_forward.4} parent=0 // loop_header
    %s11 = sphi 0, %s15
    %p12 = scmp.ge.s32.totalorder %s11, 4
    %s21 = sphi 0, %s23
    %s24 = sphi 0, %s21
    %s25 = sphi 0, %s24
    %s41 = sphi 0, %s25
    %s45 = sphi 0, %s45
    %s47 = sphi 0, %s45
    %s48 = sphi 0, %s47
    %s62 = sphi 0, %s48
    %s66 = sphi 0, %s66
    %s68 = sphi 0, %s66
    %s69 = sphi 0, %s68
    %s83 = sphi 0, %s69
    %s89 = sphi 0, %s91
    %s92 = sphi 0, %s89
    %s93 = sphi 0, %s92
    %s109 = sphi 0, %s93
    %s115 = sphi 0, %s117
    %s118 = sphi 0, %s115
    %s119 = sphi 0, %s118
    %s135 = sphi 0, %s119
  $region4: #{basic_block_forward.4} parent=0 // loop_header_branch
    %14 = sbr.rel (%p12) target = $region8
  $region5: #{basic_block_forward.4} parent=0 // loop_body
    %s16 = ssub.s32 %s11, 1
    %s17 = ssub.s32 %s11, 2
    %s18 = sadd.s32 %s11, 1
    %s19 = ssub.s32 %s11, %s18
    %p20 = scmp.eq.s32.totalorder %s19, 0
    %s22 = sadd.s32 %s21, 1
    %s23 = scalar_select %p20, %s21, %s22
    %p26 = pneg %p20
    %p27 = scmp.eq.s32.totalorder %s11, 1
    %p28 = por %p26, %p27
    %p29 = scmp.ne.s32.totalorder %s21, %s24
    %p30 = scmp.eq.s32.totalorder %s11, 0
    %p31 = por %p29, %p30
    %p32 = scmp.ne.s32.totalorder %s21, %s24
    %p33 = scmp.eq.s32.totalorder %s16, 1
    %p34 = por %p32, %p33
    %p35 = scmp.ne.s32.totalorder %s24, %s25
    %p36 = scmp.eq.s32.totalorder %s16, 0
    %p37 = por %p35, %p36
    %p38 = scmp.ne.s32.totalorder %s24, %s25
    %p39 = scmp.eq.s32.totalorder %s17, 1
    %p40 = por %p38, %p39
    %p42 = scmp.ne.s32.totalorder %s25, %s41
    %p43 = scmp.eq.s32.totalorder %s17, 0
    %p44 = por %p42, %p43
    %s46 = sadd.s32 %s45, 1
    %p49 = scmp.eq.s32.totalorder %s11, 1
    %p50 = scmp.ne.s32.totalorder %s45, %s47
    %p51 = scmp.eq.s32.totalorder %s11, 0
    %p52 = por %p50, %p51
    %p53 = scmp.ne.s32.totalorder %s45, %s47
    %p54 = scmp.eq.s32.totalorder %s16, 1
    %p55 = por %p53, %p54
    %p56 = scmp.ne.s32.totalorder %s47, %s48
    %p57 = scmp.eq.s32.totalorder %s16, 0
    %p58 = por %p56, %p57
    %p59 = scmp.ne.s32.totalorder %s47, %s48
    %p60 = scmp.eq.s32.totalorder %s17, 1
    %p61 = por %p59, %p60
    %p63 = scmp.ne.s32.totalorder %s48, %s62
    %p64 = scmp.eq.s32.totalorder %s17, 0
    %p65 = por %p63, %p64
    %s67 = sadd.s32 %s66, 1
    %p70 = scmp.eq.s32.totalorder %s11, 1
    %p71 = scmp.ne.s32.totalorder %s66, %s68
    %p72 = scmp.eq.s32.totalorder %s11, 0
    %p73 = por %p71, %p72
    %p74 = scmp.ne.s32.totalorder %s66, %s68
    %p75 = scmp.eq.s32.totalorder %s16, 1
    %p76 = por %p74, %p75
    %p77 = scmp.ne.s32.totalorder %s68, %s69
    %p78 = scmp.eq.s32.totalorder %s16, 0
    %p79 = por %p77, %p78
    %p80 = scmp.ne.s32.totalorder %s68, %s69
    %p81 = scmp.eq.s32.totalorder %s17, 1
    %p82 = por %p80, %p81
    %p84 = scmp.ne.s32.totalorder %s69, %s83
    %p85 = scmp.eq.s32.totalorder %s17, 0
    %p86 = por %p84, %p85
    %s87 = ssub.s32 %s11, %s18
    %p88 = scmp.eq.s32.totalorder %s87, 0
    %s90 = sadd.s32 %s89, 1
    %s91 = scalar_select %p88, %s89, %s90
    %p94 = pneg %p88
    %p95 = scmp.eq.s32.totalorder %s11, 1
    %p96 = por %p94, %p95
    %p97 = scmp.ne.s32.totalorder %s89, %s92
    %p98 = scmp.eq.s32.totalorder %s11, 0
    %p99 = por %p97, %p98
    %p100 = scmp.ne.s32.totalorder %s89, %s92
    %p101 = scmp.eq.s32.totalorder %s16, 1
    %p102 = por %p100, %p101
    %p103 = scmp.ne.s32.totalorder %s92, %s93
    %p104 = scmp.eq.s32.totalorder %s16, 0
    %p105 = por %p103, %p104
    %p106 = scmp.ne.s32.totalorder %s92, %s93
    %p107 = scmp.eq.s32.totalorder %s17, 1
    %p108 = por %p106, %p107
    %p110 = scmp.ne.s32.totalorder %s93, %s109
    %p111 = scmp.eq.s32.totalorder %s17, 0
    %p112 = por %p110, %p111
    %s113 = ssub.s32 %s11, %s18
    %p114 = scmp.eq.s32.totalorder %s113, 0
    %s116 = sadd.s32 %s115, 1
    %s117 = scalar_select %p114, %s115, %s116
    %p120 = pneg %p114
    %p121 = scmp.eq.s32.totalorder %s11, 1
    %p122 = por %p120, %p121
    %p123 = scmp.ne.s32.totalorder %s115, %s118
    %p124 = scmp.eq.s32.totalorder %s11, 0
    %p125 = por %p123, %p124
    %p126 = scmp.ne.s32.totalorder %s115, %s118
    %p127 = scmp.eq.s32.totalorder %s16, 1
    %p128 = por %p126, %p127
    %p129 = scmp.ne.s32.totalorder %s118, %s119
    %p130 = scmp.eq.s32.totalorder %s16, 0
    %p131 = por %p129, %p130
    %p132 = scmp.ne.s32.totalorder %s118, %s119
    %p133 = scmp.eq.s32.totalorder %s17, 1
    %p134 = por %p132, %p133
    %p136 = scmp.ne.s32.totalorder %s119, %s135
    %p137 = scmp.eq.s32.totalorder %s17, 0
    %p138 = por %p136, %p137
    %p139 = scmp.le.s32.totalorder 1, %s11
    %p140 = scmp.lt.s32.totalorder %s11, 3
    %p141 = pnand %p139, %p140
    %p142 = pneg %p141
    // Predicated region
    $region9: #{basic_block_forward.4} parent=5 // pred_check
      _
    $region10: #{basic_block_forward.4} parent=5 // pred_check_branch
      %144 = sbr.rel (%p141) target = $region12
    $region11: #{basic_block_forward.4} parent=5 // pred_region
      %s145 = ssub.s32 %s11, 1
      // Predicated region
      $region13: #{basic_block_forward.4} parent=11 // pred_check
        %p146 = pneg %p58
      $region14: #{basic_block_forward.4} parent=11 // pred_check_branch
        %148 = sbr.rel (%p146) target = $region16
      $region15: #{basic_block_forward.4} parent=11 // pred_region
        _
      $region16: #{basic_block_forward.4} parent=11 // pred_fallthru
        _
      // Predicated region
      $region17: #{basic_block_forward.4} parent=11 // pred_check
        %p149 = pneg %p79
      $region18: #{basic_block_forward.4} parent=11 // pred_check_branch
        %151 = sbr.rel (%p149) target = $region20
      $region19: #{basic_block_forward.4} parent=11 // pred_region
        _
      $region20: #{basic_block_forward.4} parent=11 // pred_fallthru
        _
    $region12: #{basic_block_forward.4} parent=5 // pred_fallthru
      _
    %p152 = scmp.lt.s32.totalorder %s11, 2
    // Predicated region
    $region21: #{basic_block_forward.4} parent=5 // pred_check
      %p153 = pneg %p152
    $region22: #{basic_block_forward.4} parent=5 // pred_check_branch
      %155 = sbr.rel (%p153) target = $region24
    $region23: #{basic_block_forward.4} parent=5 // pred_region
      // Predicated region
      $region25: #{basic_block_forward.4} parent=23 // pred_check
        %p156 = pneg %p31
      $region26: #{basic_block_forward.4} parent=23 // pred_check_branch
        %158 = sbr.rel (%p156) target = $region28
      $region27: #{basic_block_forward.4} parent=23 // pred_region
        %p159 = scmp.lt.s32.totalorder %s11, 1
        %s160 = scalar_select %p159, %s11, 1
        %s161 = smul.addr %s160, 32
        %s162 = smul.addr %s161, 8
        %s163 = scalar_lea.vmem %s0, %s162
      $region28: #{basic_block_forward.4} parent=23 // pred_fallthru
        _
    $region24: #{basic_block_forward.4} parent=5 // pred_fallthru
      _
    %p164 = scmp.le.s32.totalorder 1, %s11
    %p165 = scmp.lt.s32.totalorder %s11, 3
    %p166 = pnand %p164, %p165
    %p167 = pneg %p166
    // Predicated region
    $region29: #{basic_block_forward.4} parent=5 // pred_check
      _
    $region30: #{basic_block_forward.4} parent=5 // pred_check_branch
      %169 = sbr.rel (%p166) target = $region32
    $region31: #{basic_block_forward.4} parent=5 // pred_region
      %s170 = ssub.s32 %s11, 1
      %p171 = scmp.lt.s32.totalorder %s16, 1
      %s172 = scalar_select %p171, %s16, 1
      %s173 = smul.addr %s172, 32
      %s174 = smul.addr %s173, 8
      %s175 = scalar_lea.vmem %s0, %s174
      %p176 = pneg %p37
      %p177 = pneg %p34
      %p178 = pneg %p58
      %p179 = pneg %p55
      %p180 = pneg %p79
      %p181 = pneg %p76
      %p182 = pneg %p105
      %p183 = pneg %p102
      %p184 = scmp.lt.s32.totalorder %s16, 1
      %s185 = scalar_select %p184, %s16, 1
      %s186 = smul.addr %s185, 32
      %s187 = smul.addr %s186, 8
      %s188 = scalar_lea.vmem %s3, %s187
      %p189 = pneg %p131
      %p190 = pneg %p128
      %p191 = scmp.lt.s32.totalorder %s16, 1
      %s192 = scalar_select %p191, %s16, 1
      %s193 = smul.addr %s192, 2
      %s194 = scalar_lea.vmem %s4, %s193
      %p195 = scmp.lt.s32.totalorder %s16, 1
      %s196 = scalar_select %p195, %s16, 1
      %s197 = smul.addr %s196, 32
      %s198 = smul.addr %s197, 8
      %s199 = scalar_lea.vmem %s0, %s198
      %p200 = scmp.lt.s32.totalorder %s16, 1
      %s201 = scalar_select %p200, %s16, 1
      %s202 = smul.addr %s201, 32
      %s203 = smul.addr %s202, 8
      %s204 = scalar_lea.vmem %s3, %s203
      %p205 = scmp.lt.s32.totalorder %s16, 1
      %s206 = scalar_select %p205, %s16, 1
      %s207 = smul.addr %s206, 2
      %s208 = scalar_lea.vmem %s4, %s207
      %v209 = vld [vmem:[%s199] sm:$0xff]
      %v210 = vld [vmem:[%s199 + $0x8] sm:$0xff]
      %v211 = vld [vmem:[%s199 + $0x10] sm:$0xff]
      %v212 = vld [vmem:[%s199 + $0x18] sm:$0xff]
      %v213 = vld [vmem:[%s199 + $0x20] sm:$0xff]
      %v214 = vld [vmem:[%s199 + $0x28] sm:$0xff]
      %v215 = vld [vmem:[%s199 + $0x30] sm:$0xff]
      %v216 = vld [vmem:[%s199 + $0x38] sm:$0xff]
      %v217 = vld [vmem:[%s199 + $0x40] sm:$0xff]
      %v218 = vld [vmem:[%s199 + $0x48] sm:$0xff]
      %v219 = vld [vmem:[%s199 + $0x50] sm:$0xff]
      %v220 = vld [vmem:[%s199 + $0x58] sm:$0xff]
      %v221 = vld [vmem:[%s199 + $0x60] sm:$0xff]
      %v222 = vld [vmem:[%s199 + $0x68] sm:$0xff]
      %v223 = vld [vmem:[%s199 + $0x70] sm:$0xff]
      %v224 = vld [vmem:[%s199 + $0x78] sm:$0xff]
      %v225 = vld [vmem:[%s199 + $0x80] sm:$0xff]
      %v226 = vld [vmem:[%s199 + $0x88] sm:$0xff]
      %v227 = vld [vmem:[%s199 + $0x90] sm:$0xff]
      %v228 = vld [vmem:[%s199 + $0x98] sm:$0xff]
      %v229 = vld [vmem:[%s199 + $0xa0] sm:$0xff]
      %v230 = vld [vmem:[%s199 + $0xa8] sm:$0xff]
      %v231 = vld [vmem:[%s199 + $0xb0] sm:$0xff]
      %v232 = vld [vmem:[%s199 + $0xb8] sm:$0xff]
      %v233 = vld [vmem:[%s199 + $0xc0] sm:$0xff]
      %v234 = vld [vmem:[%s199 + $0xc8] sm:$0xff]
      %v235 = vld [vmem:[%s199 + $0xd0] sm:$0xff]
      %v236 = vld [vmem:[%s199 + $0xd8] sm:$0xff]
      %v237 = vld [vmem:[%s199 + $0xe0] sm:$0xff]
      %v238 = vld [vmem:[%s199 + $0xe8] sm:$0xff]
      %v239 = vld [vmem:[%s199 + $0xf0] sm:$0xff]
      %v240 = vld [vmem:[%s199 + $0xf8] sm:$0xff]
      %v241 = vld [vmem:[%s1] sm:$0x1]
      %v242 = vlaneseq
      %v243 = vshrl.u32 %v242, 7
      %v244 = vsub.s32 0, %v243
      %v245 = vrot.slane %v241, %v244
      %v246 = vmul.f32 %v209, %v245
      %v247 = vmul.f32 %v210, %v245
      %v248 = vmul.f32 %v211, %v245
      %v249 = vmul.f32 %v212, %v245
      %v250 = vmul.f32 %v213, %v245
      %v251 = vmul.f32 %v214, %v245
      %v252 = vmul.f32 %v215, %v245
      %v253 = vmul.f32 %v216, %v245
      %v254 = vmul.f32 %v217, %v245
      %v255 = vmul.f32 %v218, %v245
      %v256 = vmul.f32 %v219, %v245
      %v257 = vmul.f32 %v220, %v245
      %v258 = vmul.f32 %v221, %v245
      %v259 = vmul.f32 %v222, %v245
      %v260 = vmul.f32 %v223, %v245
      %v261 = vmul.f32 %v224, %v245
      %v262 = vmul.f32 %v225, %v245
      %v263 = vmul.f32 %v226, %v245
      %v264 = vmul.f32 %v227, %v245
      %v265 = vmul.f32 %v228, %v245
      %v266 = vmul.f32 %v229, %v245
      %v267 = vmul.f32 %v230, %v245
      %v268 = vmul.f32 %v231, %v245
      %v269 = vmul.f32 %v232, %v245
      %v270 = vmul.f32 %v233, %v245
      %v271 = vmul.f32 %v234, %v245
      %v272 = vmul.f32 %v235, %v245
      %v273 = vmul.f32 %v236, %v245
      %v274 = vmul.f32 %v237, %v245
      %v275 = vmul.f32 %v238, %v245
      %v276 = vmul.f32 %v239, %v245
      %v277 = vmul.f32 %v240, %v245
      %v278 = vld [vmem:[%s1 + $0x1] sm:$0x1]
      %v279 = vlaneseq
      %v280 = vshrl.u32 %v279, 7
      %v281 = vsub.s32 0, %v280
      %v282 = vrot.slane %v278, %v281
      %v283 = vadd.f32 %v246, %v282
      %v284 = vadd.f32 %v247, %v282
      %v285 = vadd.f32 %v248, %v282
      %v286 = vadd.f32 %v249, %v282
      %v287 = vadd.f32 %v250, %v282
      %v288 = vadd.f32 %v251, %v282
      %v289 = vadd.f32 %v252, %v282
      %v290 = vadd.f32 %v253, %v282
      %v291 = vadd.f32 %v254, %v282
      %v292 = vadd.f32 %v255, %v282
      %v293 = vadd.f32 %v256, %v282
      %v294 = vadd.f32 %v257, %v282
      %v295 = vadd.f32 %v258, %v282
      %v296 = vadd.f32 %v259, %v282
      %v297 = vadd.f32 %v260, %v282
      %v298 = vadd.f32 %v261, %v282
      %v299 = vadd.f32 %v262, %v282
      %v300 = vadd.f32 %v263, %v282
      %v301 = vadd.f32 %v264, %v282
      %v302 = vadd.f32 %v265, %v282
      %v303 = vadd.f32 %v266, %v282
      %v304 = vadd.f32 %v267, %v282
      %v305 = vadd.f32 %v268, %v282
      %v306 = vadd.f32 %v269, %v282
      %v307 = vadd.f32 %v270, %v282
      %v308 = vadd.f32 %v271, %v282
      %v309 = vadd.f32 %v272, %v282
      %v310 = vadd.f32 %v273, %v282
      %v311 = vadd.f32 %v274, %v282
      %v312 = vadd.f32 %v275, %v282
      %v313 = vadd.f32 %v276, %v282
      %v314 = vadd.f32 %v277, %v282
      %v315 = vmax.f32 %v283, 0.0
      %v316 = vmax.f32 %v284, 0.0
      %v317 = vmax.f32 %v285, 0.0
      %v318 = vmax.f32 %v286, 0.0
      %v319 = vmax.f32 %v287, 0.0
      %v320 = vmax.f32 %v288, 0.0
      %v321 = vmax.f32 %v289, 0.0
      %v322 = vmax.f32 %v290, 0.0
      %v323 = vmax.f32 %v291, 0.0
      %v324 = vmax.f32 %v292, 0.0
      %v325 = vmax.f32 %v293, 0.0
      %v326 = vmax.f32 %v294, 0.0
      %v327 = vmax.f32 %v295, 0.0
      %v328 = vmax.f32 %v296, 0.0
      %v329 = vmax.f32 %v297, 0.0
      %v330 = vmax.f32 %v298, 0.0
      %v331 = vmax.f32 %v299, 0.0
      %v332 = vmax.f32 %v300, 0.0
      %v333 = vmax.f32 %v301, 0.0
      %v334 = vmax.f32 %v302, 0.0
      %v335 = vmax.f32 %v303, 0.0
      %v336 = vmax.f32 %v304, 0.0
      %v337 = vmax.f32 %v305, 0.0
      %v338 = vmax.f32 %v306, 0.0
      %v339 = vmax.f32 %v307, 0.0
      %v340 = vmax.f32 %v308, 0.0
      %v341 = vmax.f32 %v309, 0.0
      %v342 = vmax.f32 %v310, 0.0
      %v343 = vmax.f32 %v311, 0.0
      %v344 = vmax.f32 %v312, 0.0
      %v345 = vmax.f32 %v313, 0.0
      %v346 = vmax.f32 %v314, 0.0
      %vm347 = vcmask 64512
      %348 = vst.msk [vmem:[#allocation2] sm:$0xff] %vm347, 0.0
      %349 = vst.msk [vmem:[#allocation2 + $0x8] sm:$0xff] %vm347, 0.0
      %vm350 = vcmask 58368
      %351 = vst.msk [vmem:[#allocation2 + $0x10] sm:$0x3] %vm350, 0.0
      %s352 = scalar_lea.vmem [#allocation2], 408
      %353 = vst.msk [vmem:[%s352] sm:$0xff] %vm347, 0.0
      %354 = vst.msk [vmem:[%s352 + $0x8] sm:$0xff] %vm347, 0.0
      %355 = vst.msk [vmem:[%s352 + $0x10] sm:$0x3] %vm350, 0.0
      %vm356 = vcmask 57344
      %357 = vst.msk [vmem:[#allocation2] sm:$0x1] %vm356, 0.0
      %358 = vst.msk [vmem:[#allocation2 + $0x18] sm:$0x1] %vm356, 0.0
      %359 = vst.msk [vmem:[#allocation2 + $0x30] sm:$0x1] %vm356, 0.0
      %360 = vst.msk [vmem:[#allocation2 + $0x48] sm:$0x1] %vm356, 0.0
      %361 = vst.msk [vmem:[#allocation2 + $0x60] sm:$0x1] %vm356, 0.0
      %362 = vst.msk [vmem:[#allocation2 + $0x78] sm:$0x1] %vm356, 0.0
      %363 = vst.msk [vmem:[#allocation2 + $0x90] sm:$0x1] %vm356, 0.0
      %364 = vst.msk [vmem:[#allocation2 + $0xa8] sm:$0x1] %vm356, 0.0
      %365 = vst.msk [vmem:[#allocation2 + $0xc0] sm:$0x1] %vm356, 0.0
      %366 = vst.msk [vmem:[#allocation2 + $0xd8] sm:$0x1] %vm356, 0.0
      %367 = vst.msk [vmem:[#allocation2 + $0xf0] sm:$0x1] %vm356, 0.0
      %368 = vst.msk [vmem:[#allocation2 + $0x108] sm:$0x1] %vm356, 0.0
      %369 = vst.msk [vmem:[#allocation2 + $0x120] sm:$0x1] %vm356, 0.0
      %370 = vst.msk [vmem:[#allocation2 + $0x138] sm:$0x1] %vm356, 0.0
      %371 = vst.msk [vmem:[#allocation2 + $0x150] sm:$0x1] %vm356, 0.0
      %372 = vst.msk [vmem:[#allocation2 + $0x168] sm:$0x1] %vm356, 0.0
      %373 = vst.msk [vmem:[#allocation2 + $0x180] sm:$0x1] %vm356, 0.0
      %374 = vst.msk [vmem:[#allocation2 + $0x198] sm:$0x1] %vm356, 0.0
      %375 = vst.msk [vmem:[#allocation2 + $0x11] sm:$0x1] %vm356, 0.0
      %376 = vst.msk [vmem:[#allocation2 + $0x29] sm:$0x1] %vm356, 0.0
      %377 = vst.msk [vmem:[#allocation2 + $0x41] sm:$0x1] %vm356, 0.0
      %378 = vst.msk [vmem:[#allocation2 + $0x59] sm:$0x1] %vm356, 0.0
      %379 = vst.msk [vmem:[#allocation2 + $0x71] sm:$0x1] %vm356, 0.0
      %380 = vst.msk [vmem:[#allocation2 + $0x89] sm:$0x1] %vm356, 0.0
      %381 = vst.msk [vmem:[#allocation2 + $0xa1] sm:$0x1] %vm356, 0.0
      %382 = vst.msk [vmem:[#allocation2 + $0xb9] sm:$0x1] %vm356, 0.0
      %383 = vst.msk [vmem:[#allocation2 + $0xd1] sm:$0x1] %vm356, 0.0
      %384 = vst.msk [vmem:[#allocation2 + $0xe9] sm:$0x1] %vm356, 0.0
      %385 = vst.msk [vmem:[#allocation2 + $0x101] sm:$0x1] %vm356, 0.0
      %386 = vst.msk [vmem:[#allocation2 + $0x119] sm:$0x1] %vm356, 0.0
      %387 = vst.msk [vmem:[#allocation2 + $0x131] sm:$0x1] %vm356, 0.0
      %388 = vst.msk [vmem:[#allocation2 + $0x149] sm:$0x1] %vm356, 0.0
      %389 = vst.msk [vmem:[#allocation2 + $0x161] sm:$0x1] %vm356, 0.0
      %390 = vst.msk [vmem:[#allocation2 + $0x179] sm:$0x1] %vm356, 0.0
      %391 = vst.msk [vmem:[#allocation2 + $0x191] sm:$0x1] %vm356, 0.0
      %392 = vst.msk [vmem:[#allocation2 + $0x1a9] sm:$0x1] %vm356, 0.0
      %s393 = scalar_lea.vmem [#allocation2], 24
      %394 = vst.msk [vmem:[%s393 + $0x1] sm:$0xff] %vm347, %v315
      %395 = vst.msk [vmem:[%s393 + $0x9] sm:$0xff] %vm347, %v316
      %396 = vst.msk [vmem:[%s393 + $0x19] sm:$0xff] %vm347, %v317
      %397 = vst.msk [vmem:[%s393 + $0x21] sm:$0xff] %vm347, %v318
      %398 = vst.msk [vmem:[%s393 + $0x31] sm:$0xff] %vm347, %v319
      %399 = vst.msk [vmem:[%s393 + $0x39] sm:$0xff] %vm347, %v320
      %400 = vst.msk [vmem:[%s393 + $0x49] sm:$0xff] %vm347, %v321
      %401 = vst.msk [vmem:[%s393 + $0x51] sm:$0xff] %vm347, %v322
      %402 = vst.msk [vmem:[%s393 + $0x61] sm:$0xff] %vm347, %v323
      %403 = vst.msk [vmem:[%s393 + $0x69] sm:$0xff] %vm347, %v324
      %404 = vst.msk [vmem:[%s393 + $0x79] sm:$0xff] %vm347, %v325
      %405 = vst.msk [vmem:[%s393 + $0x81] sm:$0xff] %vm347, %v326
      %406 = vst.msk [vmem:[%s393 + $0x91] sm:$0xff] %vm347, %v327
      %407 = vst.msk [vmem:[%s393 + $0x99] sm:$0xff] %vm347, %v328
      %408 = vst.msk [vmem:[%s393 + $0xa9] sm:$0xff] %vm347, %v329
      %409 = vst.msk [vmem:[%s393 + $0xb1] sm:$0xff] %vm347, %v330
      %410 = vst.msk [vmem:[%s393 + $0xc1] sm:$0xff] %vm347, %v331
      %411 = vst.msk [vmem:[%s393 + $0xc9] sm:$0xff] %vm347, %v332
      %412 = vst.msk [vmem:[%s393 + $0xd9] sm:$0xff] %vm347, %v333
      %413 = vst.msk [vmem:[%s393 + $0xe1] sm:$0xff] %vm347, %v334
      %414 = vst.msk [vmem:[%s393 + $0xf1] sm:$0xff] %vm347, %v335
      %415 = vst.msk [vmem:[%s393 + $0xf9] sm:$0xff] %vm347, %v336
      %416 = vst.msk [vmem:[%s393 + $0x109] sm:$0xff] %vm347, %v337
      %417 = vst.msk [vmem:[%s393 + $0x111] sm:$0xff] %vm347, %v338
      %418 = vst.msk [vmem:[%s393 + $0x121] sm:$0xff] %vm347, %v339
      %419 = vst.msk [vmem:[%s393 + $0x129] sm:$0xff] %vm347, %v340
      %420 = vst.msk [vmem:[%s393 + $0x139] sm:$0xff] %vm347, %v341
      %421 = vst.msk [vmem:[%s393 + $0x141] sm:$0xff] %vm347, %v342
      %422 = vst.msk [vmem:[%s393 + $0x151] sm:$0xff] %vm347, %v343
      %423 = vst.msk [vmem:[%s393 + $0x159] sm:$0xff] %vm347, %v344
      %424 = vst.msk [vmem:[%s393 + $0x169] sm:$0xff] %vm347, %v345
      %425 = vst.msk [vmem:[%s393 + $0x171] sm:$0xff] %vm347, %v346
      %v426 = vld [vmem:[#allocation2] sm:$0xff]
      %v427 = vld [vmem:[#allocation2 + $0x8] sm:$0xff]
      %v428 = vld [vmem:[#allocation2 + $0x18] sm:$0xff]
      %v429 = vld [vmem:[#allocation2 + $0x20] sm:$0xff]
      %v430 = vld [vmem:[#allocation2 + $0x30] sm:$0xff]
      %v431 = vld [vmem:[#allocation2 + $0x38] sm:$0xff]
      %v432 = vld [vmem:[#allocation2 + $0x48] sm:$0xff]
      %v433 = vld [vmem:[#allocation2 + $0x50] sm:$0xff]
      %v434 = vld [vmem:[#allocation2 + $0x60] sm:$0xff]
      %v435 = vld [vmem:[#allocation2 + $0x68] sm:$0xff]
      %v436 = vld [vmem:[#allocation2 + $0x78] sm:$0xff]
      %v437 = vld [vmem:[#allocation2 + $0x80] sm:$0xff]
      %v438 = vld [vmem:[#allocation2 + $0x90] sm:$0xff]
      %v439 = vld [vmem:[#allocation2 + $0x98] sm:$0xff]
      %v440 = vld [vmem:[#allocation2 + $0xa8] sm:$0xff]
      %v441 = vld [vmem:[#allocation2 + $0xb0] sm:$0xff]
      %v442 = vld [vmem:[#allocation2 + $0xc0] sm:$0xff]
      %v443 = vld [vmem:[#allocation2 + $0xc8] sm:$0xff]
      %v444 = vld [vmem:[#allocation2 + $0xd8] sm:$0xff]
      %v445 = vld [vmem:[#allocation2 + $0xe0] sm:$0xff]
      %v446 = vld [vmem:[#allocation2 + $0xf0] sm:$0xff]
      %v447 = vld [vmem:[#allocation2 + $0xf8] sm:$0xff]
      %v448 = vld [vmem:[#allocation2 + $0x108] sm:$0xff]
      %v449 = vld [vmem:[#allocation2 + $0x110] sm:$0xff]
      %v450 = vld [vmem:[#allocation2 + $0x120] sm:$0xff]
      %v451 = vld [vmem:[#allocation2 + $0x128] sm:$0xff]
      %v452 = vld [vmem:[#allocation2 + $0x138] sm:$0xff]
      %v453 = vld [vmem:[#allocation2 + $0x140] sm:$0xff]
      %v454 = vld [vmem:[#allocation2 + $0x150] sm:$0xff]
      %v455 = vld [vmem:[#allocation2 + $0x158] sm:$0xff]
      %v456 = vld [vmem:[#allocation2 + $0x168] sm:$0xff]
      %v457 = vld [vmem:[#allocation2 + $0x170] sm:$0xff]
      %v458 = vld [vmem:[#allocation2 + $0x1] sm:$0xff]
      %v459 = vld [vmem:[#allocation2 + $0x9] sm:$0xff]
      %v460 = vld [vmem:[#allocation2 + $0x19] sm:$0xff]
      %v461 = vld [vmem:[#allocation2 + $0x21] sm:$0xff]
      %v462 = vld [vmem:[#allocation2 + $0x31] sm:$0xff]
      %v463 = vld [vmem:[#allocation2 + $0x39] sm:$0xff]
      %v464 = vld [vmem:[#allocation2 + $0x49] sm:$0xff]
      %v465 = vld [vmem:[#allocation2 + $0x51] sm:$0xff]
      %v466 = vld [vmem:[#allocation2 + $0x61] sm:$0xff]
      %v467 = vld [vmem:[#allocation2 + $0x69] sm:$0xff]
      %v468 = vld [vmem:[#allocation2 + $0x79] sm:$0xff]
      %v469 = vld [vmem:[#allocation2 + $0x81] sm:$0xff]
      %v470 = vld [vmem:[#allocation2 + $0x91] sm:$0xff]
      %v471 = vld [vmem:[#allocation2 + $0x99] sm:$0xff]
      %v472 = vld [vmem:[#allocation2 + $0xa9] sm:$0xff]
      %v473 = vld [vmem:[#allocation2 + $0xb1] sm:$0xff]
      %v474 = vld [vmem:[#allocation2 + $0xc1] sm:$0xff]
      %v475 = vld [vmem:[#allocation2 + $0xc9] sm:$0xff]
      %v476 = vld [vmem:[#allocation2 + $0xd9] sm:$0xff]
      %v477 = vld [vmem:[#allocation2 + $0xe1] sm:$0xff]
      %v478 = vld [vmem:[#allocation2 + $0xf1] sm:$0xff]
      %v479 = vld [vmem:[#allocation2 + $0xf9] sm:$0xff]
      %v480 = vld [vmem:[#allocation2 + $0x109] sm:$0xff]
      %v481 = vld [vmem:[#allocation2 + $0x111] sm:$0xff]
      %v482 = vld [vmem:[#allocation2 + $0x121] sm:$0xff]
      %v483 = vld [vmem:[#allocation2 + $0x129] sm:$0xff]
      %v484 = vld [vmem:[#allocation2 + $0x139] sm:$0xff]
      %v485 = vld [vmem:[#allocation2 + $0x141] sm:$0xff]
      %v486 = vld [vmem:[#allocation2 + $0x151] sm:$0xff]
      %v487 = vld [vmem:[#allocation2 + $0x159] sm:$0xff]
      %v488 = vld [vmem:[#allocation2 + $0x169] sm:$0xff]
      %v489 = vld [vmem:[#allocation2 + $0x171] sm:$0xff]
      %v490 = vld [vmem:[#allocation2 + $0x2] sm:$0xff]
      %v491 = vld [vmem:[#allocation2 + $0xa] sm:$0xff]
      %v492 = vld [vmem:[#allocation2 + $0x1a] sm:$0xff]
      %v493 = vld [vmem:[#allocation2 + $0x22] sm:$0xff]
      %v494 = vld [vmem:[#allocation2 + $0x32] sm:$0xff]
      %v495 = vld [vmem:[#allocation2 + $0x3a] sm:$0xff]
      %v496 = vld [vmem:[#allocation2 + $0x4a] sm:$0xff]
      %v497 = vld [vmem:[#allocation2 + $0x52] sm:$0xff]
      %v498 = vld [vmem:[#allocation2 + $0x62] sm:$0xff]
      %v499 = vld [vmem:[#allocation2 + $0x6a] sm:$0xff]
      %v500 = vld [vmem:[#allocation2 + $0x7a] sm:$0xff]
      %v501 = vld [vmem:[#allocation2 + $0x82] sm:$0xff]
      %v502 = vld [vmem:[#allocation2 + $0x92] sm:$0xff]
      %v503 = vld [vmem:[#allocation2 + $0x9a] sm:$0xff]
      %v504 = vld [vmem:[#allocation2 + $0xaa] sm:$0xff]
      %v505 = vld [vmem:[#allocation2 + $0xb2] sm:$0xff]
      %v506 = vld [vmem:[#allocation2 + $0xc2] sm:$0xff]
      %v507 = vld [vmem:[#allocation2 + $0xca] sm:$0xff]
      %v508 = vld [vmem:[#allocation2 + $0xda] sm:$0xff]
      %v509 = vld [vmem:[#allocation2 + $0xe2] sm:$0xff]
      %v510 = vld [vmem:[#allocation2 + $0xf2] sm:$0xff]
      %v511 = vld [vmem:[#allocation2 + $0xfa] sm:$0xff]
      %v512 = vld [vmem:[#allocation2 + $0x10a] sm:$0xff]
      %v513 = vld [vmem:[#allocation2 + $0x112] sm:$0xff]
      %v514 = vld [vmem:[#allocation2 + $0x122] sm:$0xff]
      %v515 = vld [vmem:[#allocation2 + $0x12a] sm:$0xff]
      %v516 = vld [vmem:[#allocation2 + $0x13a] sm:$0xff]
      %v517 = vld [vmem:[#allocation2 + $0x142] sm:$0xff]
      %v518 = vld [vmem:[#allocation2 + $0x152] sm:$0xff]
      %v519 = vld [vmem:[#allocation2 + $0x15a] sm:$0xff]
      %v520 = vld [vmem:[#allocation2 + $0x16a] sm:$0xff]
      %v521 = vld [vmem:[#allocation2 + $0x172] sm:$0xff]
      %v522 = vld [vmem:[%s393] sm:$0xff]
      %v523 = vld [vmem:[%s393 + $0x8] sm:$0xff]
      %v524 = vld [vmem:[%s393 + $0x18] sm:$0xff]
      %v525 = vld [vmem:[%s393 + $0x20] sm:$0xff]
      %v526 = vld [vmem:[%s393 + $0x30] sm:$0xff]
      %v527 = vld [vmem:[%s393 + $0x38] sm:$0xff]
      %v528 = vld [vmem:[%s393 + $0x48] sm:$0xff]
      %v529 = vld [vmem:[%s393 + $0x50] sm:$0xff]
      %v530 = vld [vmem:[%s393 + $0x60] sm:$0xff]
      %v531 = vld [vmem:[%s393 + $0x68] sm:$0xff]
      %v532 = vld [vmem:[%s393 + $0x78] sm:$0xff]
      %v533 = vld [vmem:[%s393 + $0x80] sm:$0xff]
      %v534 = vld [vmem:[%s393 + $0x90] sm:$0xff]
      %v535 = vld [vmem:[%s393 + $0x98] sm:$0xff]
      %v536 = vld [vmem:[%s393 + $0xa8] sm:$0xff]
      %v537 = vld [vmem:[%s393 + $0xb0] sm:$0xff]
      %v538 = vld [vmem:[%s393 + $0xc0] sm:$0xff]
      %v539 = vld [vmem:[%s393 + $0xc8] sm:$0xff]
      %v540 = vld [vmem:[%s393 + $0xd8] sm:$0xff]
      %v541 = vld [vmem:[%s393 + $0xe0] sm:$0xff]
      %v542 = vld [vmem:[%s393 + $0xf0] sm:$0xff]
      %v543 = vld [vmem:[%s393 + $0xf8] sm:$0xff]
      %v544 = vld [vmem:[%s393 + $0x108] sm:$0xff]
      %v545 = vld [vmem:[%s393 + $0x110] sm:$0xff]
      %v546 = vld [vmem:[%s393 + $0x120] sm:$0xff]
      %v547 = vld [vmem:[%s393 + $0x128] sm:$0xff]
      %v548 = vld [vmem:[%s393 + $0x138] sm:$0xff]
      %v549 = vld [vmem:[%s393 + $0x140] sm:$0xff]
      %v550 = vld [vmem:[%s393 + $0x150] sm:$0xff]
      %v551 = vld [vmem:[%s393 + $0x158] sm:$0xff]
      %v552 = vld [vmem:[%s393 + $0x168] sm:$0xff]
      %v553 = vld [vmem:[%s393 + $0x170] sm:$0xff]
      %v554 = vld [vmem:[%s393 + $0x1] sm:$0xff]
      %v555 = vld [vmem:[%s393 + $0x9] sm:$0xff]
      %v556 = vld [vmem:[%s393 + $0x19] sm:$0xff]
      %v557 = vld [vmem:[%s393 + $0x21] sm:$0xff]
      %v558 = vld [vmem:[%s393 + $0x31] sm:$0xff]
      %v559 = vld [vmem:[%s393 + $0x39] sm:$0xff]
      %v560 = vld [vmem:[%s393 + $0x49] sm:$0xff]
      %v561 = vld [vmem:[%s393 + $0x51] sm:$0xff]
      %v562 = vld [vmem:[%s393 + $0x61] sm:$0xff]
      %v563 = vld [vmem:[%s393 + $0x69] sm:$0xff]
      %v564 = vld [vmem:[%s393 + $0x79] sm:$0xff]
      %v565 = vld [vmem:[%s393 + $0x81] sm:$0xff]
      %v566 = vld [vmem:[%s393 + $0x91] sm:$0xff]
      %v567 = vld [vmem:[%s393 + $0x99] sm:$0xff]
      %v568 = vld [vmem:[%s393 + $0xa9] sm:$0xff]
      %v569 = vld [vmem:[%s393 + $0xb1] sm:$0xff]
      %v570 = vld [vmem:[%s393 + $0xc1] sm:$0xff]
      %v571 = vld [vmem:[%s393 + $0xc9] sm:$0xff]
      %v572 = vld [vmem:[%s393 + $0xd9] sm:$0xff]
      %v573 = vld [vmem:[%s393 + $0xe1] sm:$0xff]
      %v574 = vld [vmem:[%s393 + $0xf1] sm:$0xff]
      %v575 = vld [vmem:[%s393 + $0xf9] sm:$0xff]
      %v576 = vld [vmem:[%s393 + $0x109] sm:$0xff]
      %v577 = vld [vmem:[%s393 + $0x111] sm:$0xff]
      %v578 = vld [vmem:[%s393 + $0x121] sm:$0xff]
      %v579 = vld [vmem:[%s393 + $0x129] sm:$0xff]
      %v580 = vld [vmem:[%s393 + $0x139] sm:$0xff]
      %v581 = vld [vmem:[%s393 + $0x141] sm:$0xff]
      %v582 = vld [vmem:[%s393 + $0x151] sm:$0xff]
      %v583 = vld [vmem:[%s393 + $0x159] sm:$0xff]
      %v584 = vld [vmem:[%s393 + $0x169] sm:$0xff]
      %v585 = vld [vmem:[%s393 + $0x171] sm:$0xff]
      %v586 = vld [vmem:[%s393 + $0x2] sm:$0xff]
      %v587 = vld [vmem:[%s393 + $0xa] sm:$0xff]
      %v588 = vld [vmem:[%s393 + $0x1a] sm:$0xff]
      %v589 = vld [vmem:[%s393 + $0x22] sm:$0xff]
      %v590 = vld [vmem:[%s393 + $0x32] sm:$0xff]
      %v591 = vld [vmem:[%s393 + $0x3a] sm:$0xff]
      %v592 = vld [vmem:[%s393 + $0x4a] sm:$0xff]
      %v593 = vld [vmem:[%s393 + $0x52] sm:$0xff]
      %v594 = vld [vmem:[%s393 + $0x62] sm:$0xff]
      %v595 = vld [vmem:[%s393 + $0x6a] sm:$0xff]
      %v596 = vld [vmem:[%s393 + $0x7a] sm:$0xff]
      %v597 = vld [vmem:[%s393 + $0x82] sm:$0xff]
      %v598 = vld [vmem:[%s393 + $0x92] sm:$0xff]
      %v599 = vld [vmem:[%s393 + $0x9a] sm:$0xff]
      %v600 = vld [vmem:[%s393 + $0xaa] sm:$0xff]
      %v601 = vld [vmem:[%s393 + $0xb2] sm:$0xff]
      %v602 = vld [vmem:[%s393 + $0xc2] sm:$0xff]
      %v603 = vld [vmem:[%s393 + $0xca] sm:$0xff]
      %v604 = vld [vmem:[%s393 + $0xda] sm:$0xff]
      %v605 = vld [vmem:[%s393 + $0xe2] sm:$0xff]
      %v606 = vld [vmem:[%s393 + $0xf2] sm:$0xff]
      %v607 = vld [vmem:[%s393 + $0xfa] sm:$0xff]
      %v608 = vld [vmem:[%s393 + $0x10a] sm:$0xff]
      %v609 = vld [vmem:[%s393 + $0x112] sm:$0xff]
      %v610 = vld [vmem:[%s393 + $0x122] sm:$0xff]
      %v611 = vld [vmem:[%s393 + $0x12a] sm:$0xff]
      %v612 = vld [vmem:[%s393 + $0x13a] sm:$0xff]
      %v613 = vld [vmem:[%s393 + $0x142] sm:$0xff]
      %v614 = vld [vmem:[%s393 + $0x152] sm:$0xff]
      %v615 = vld [vmem:[%s393 + $0x15a] sm:$0xff]
      %v616 = vld [vmem:[%s393 + $0x16a] sm:$0xff]
      %v617 = vld [vmem:[%s393 + $0x172] sm:$0xff]
      %s618 = scalar_lea.vmem [#allocation2], 48
      %v619 = vld [vmem:[%s618] sm:$0xff]
      %v620 = vld [vmem:[%s618 + $0x8] sm:$0xff]
      %v621 = vld [vmem:[%s618 + $0x18] sm:$0xff]
      %v622 = vld [vmem:[%s618 + $0x20] sm:$0xff]
      %v623 = vld [vmem:[%s618 + $0x30] sm:$0xff]
      %v624 = vld [vmem:[%s618 + $0x38] sm:$0xff]
      %v625 = vld [vmem:[%s618 + $0x48] sm:$0xff]
      %v626 = vld [vmem:[%s618 + $0x50] sm:$0xff]
      %v627 = vld [vmem:[%s618 + $0x60] sm:$0xff]
      %v628 = vld [vmem:[%s618 + $0x68] sm:$0xff]
      %v629 = vld [vmem:[%s618 + $0x78] sm:$0xff]
      %v630 = vld [vmem:[%s618 + $0x80] sm:$0xff]
      %v631 = vld [vmem:[%s618 + $0x90] sm:$0xff]
      %v632 = vld [vmem:[%s618 + $0x98] sm:$0xff]
      %v633 = vld [vmem:[%s618 + $0xa8] sm:$0xff]
      %v634 = vld [vmem:[%s618 + $0xb0] sm:$0xff]
      %v635 = vld [vmem:[%s618 + $0xc0] sm:$0xff]
      %v636 = vld [vmem:[%s618 + $0xc8] sm:$0xff]
      %v637 = vld [vmem:[%s618 + $0xd8] sm:$0xff]
      %v638 = vld [vmem:[%s618 + $0xe0] sm:$0xff]
      %v639 = vld [vmem:[%s618 + $0xf0] sm:$0xff]
      %v640 = vld [vmem:[%s618 + $0xf8] sm:$0xff]
      %v641 = vld [vmem:[%s618 + $0x108] sm:$0xff]
      %v642 = vld [vmem:[%s618 + $0x110] sm:$0xff]
      %v643 = vld [vmem:[%s618 + $0x120] sm:$0xff]
      %v644 = vld [vmem:[%s618 + $0x128] sm:$0xff]
      %v645 = vld [vmem:[%s618 + $0x138] sm:$0xff]
      %v646 = vld [vmem:[%s618 + $0x140] sm:$0xff]
      %v647 = vld [vmem:[%s618 + $0x150] sm:$0xff]
      %v648 = vld [vmem:[%s618 + $0x158] sm:$0xff]
      %v649 = vld [vmem:[%s618 + $0x168] sm:$0xff]
      %v650 = vld [vmem:[%s618 + $0x170] sm:$0xff]
      %v651 = vld [vmem:[%s618 + $0x1] sm:$0xff]
      %v652 = vld [vmem:[%s618 + $0x9] sm:$0xff]
      %v653 = vld [vmem:[%s618 + $0x19] sm:$0xff]
      %v654 = vld [vmem:[%s618 + $0x21] sm:$0xff]
      %v655 = vld [vmem:[%s618 + $0x31] sm:$0xff]
      %v656 = vld [vmem:[%s618 + $0x39] sm:$0xff]
      %v657 = vld [vmem:[%s618 + $0x49] sm:$0xff]
      %v658 = vld [vmem:[%s618 + $0x51] sm:$0xff]
      %v659 = vld [vmem:[%s618 + $0x61] sm:$0xff]
      %v660 = vld [vmem:[%s618 + $0x69] sm:$0xff]
      %v661 = vld [vmem:[%s618 + $0x79] sm:$0xff]
      %v662 = vld [vmem:[%s618 + $0x81] sm:$0xff]
      %v663 = vld [vmem:[%s618 + $0x91] sm:$0xff]
      %v664 = vld [vmem:[%s618 + $0x99] sm:$0xff]
      %v665 = vld [vmem:[%s618 + $0xa9] sm:$0xff]
      %v666 = vld [vmem:[%s618 + $0xb1] sm:$0xff]
      %v667 = vld [vmem:[%s618 + $0xc1] sm:$0xff]
      %v668 = vld [vmem:[%s618 + $0xc9] sm:$0xff]
      %v669 = vld [vmem:[%s618 + $0xd9] sm:$0xff]
      %v670 = vld [vmem:[%s618 + $0xe1] sm:$0xff]
      %v671 = vld [vmem:[%s618 + $0xf1] sm:$0xff]
      %v672 = vld [vmem:[%s618 + $0xf9] sm:$0xff]
      %v673 = vld [vmem:[%s618 + $0x109] sm:$0xff]
      %v674 = vld [vmem:[%s618 + $0x111] sm:$0xff]
      %v675 = vld [vmem:[%s618 + $0x121] sm:$0xff]
      %v676 = vld [vmem:[%s618 + $0x129] sm:$0xff]
      %v677 = vld [vmem:[%s618 + $0x139] sm:$0xff]
      %v678 = vld [vmem:[%s618 + $0x141] sm:$0xff]
      %v679 = vld [vmem:[%s618 + $0x151] sm:$0xff]
      %v680 = vld [vmem:[%s618 + $0x159] sm:$0xff]
      %v681 = vld [vmem:[%s618 + $0x169] sm:$0xff]
      %v682 = vld [vmem:[%s618 + $0x171] sm:$0xff]
      %v683 = vld [vmem:[%s618 + $0x2] sm:$0xff]
      %v684 = vld [vmem:[%s618 + $0xa] sm:$0xff]
      %v685 = vld [vmem:[%s618 + $0x1a] sm:$0xff]
      %v686 = vld [vmem:[%s618 + $0x22] sm:$0xff]
      %v687 = vld [vmem:[%s618 + $0x32] sm:$0xff]
      %v688 = vld [vmem:[%s618 + $0x3a] sm:$0xff]
      %v689 = vld [vmem:[%s618 + $0x4a] sm:$0xff]
      %v690 = vld [vmem:[%s618 + $0x52] sm:$0xff]
      %v691 = vld [vmem:[%s618 + $0x62] sm:$0xff]
      %v692 = vld [vmem:[%s618 + $0x6a] sm:$0xff]
      %v693 = vld [vmem:[%s618 + $0x7a] sm:$0xff]
      %v694 = vld [vmem:[%s618 + $0x82] sm:$0xff]
      %v695 = vld [vmem:[%s618 + $0x92] sm:$0xff]
      %v696 = vld [vmem:[%s618 + $0x9a] sm:$0xff]
      %v697 = vld [vmem:[%s618 + $0xaa] sm:$0xff]
      %v698 = vld [vmem:[%s618 + $0xb2] sm:$0xff]
      %v699 = vld [vmem:[%s618 + $0xc2] sm:$0xff]
      %v700 = vld [vmem:[%s618 + $0xca] sm:$0xff]
      %v701 = vld [vmem:[%s618 + $0xda] sm:$0xff]
      %v702 = vld [vmem:[%s618 + $0xe2] sm:$0xff]
      %v703 = vld [vmem:[%s618 + $0xf2] sm:$0xff]
      %v704 = vld [vmem:[%s618 + $0xfa] sm:$0xff]
      %v705 = vld [vmem:[%s618 + $0x10a] sm:$0xff]
      %v706 = vld [vmem:[%s618 + $0x112] sm:$0xff]
      %v707 = vld [vmem:[%s618 + $0x122] sm:$0xff]
      %v708 = vld [vmem:[%s618 + $0x12a] sm:$0xff]
      %v709 = vld [vmem:[%s618 + $0x13a] sm:$0xff]
      %v710 = vld [vmem:[%s618 + $0x142] sm:$0xff]
      %v711 = vld [vmem:[%s618 + $0x152] sm:$0xff]
      %v712 = vld [vmem:[%s618 + $0x15a] sm:$0xff]
      %v713 = vld [vmem:[%s618 + $0x16a] sm:$0xff]
      %v714 = vld [vmem:[%s618 + $0x172] sm:$0xff]
      %747 = vrot.lane.b32.xlu0 %v458, 8
      %v748 = vpop.permute.xlu0 %747
      %749 = vrot.lane.b32.xlu0 %v459, 8
      %v750 = vpop.permute.xlu0 %749
      %751 = vrot.lane.b32.xlu0 %v460, 8
      %v752 = vpop.permute.xlu0 %751
      %753 = vrot.lane.b32.xlu0 %v461, 8
      %v754 = vpop.permute.xlu0 %753
      %755 = vrot.lane.b32.xlu0 %v462, 8
      %v756 = vpop.permute.xlu0 %755
      %757 = vrot.lane.b32.xlu0 %v463, 8
      %v758 = vpop.permute.xlu0 %757
      %759 = vrot.lane.b32.xlu0 %v464, 8
      %v760 = vpop.permute.xlu0 %759
      %761 = vrot.lane.b32.xlu0 %v465, 8
      %v762 = vpop.permute.xlu0 %761
      %763 = vrot.lane.b32.xlu0 %v466, 8
      %v764 = vpop.permute.xlu0 %763
      %765 = vrot.lane.b32.xlu0 %v467, 8
      %v766 = vpop.permute.xlu0 %765
      %767 = vrot.lane.b32.xlu0 %v468, 8
      %v768 = vpop.permute.xlu0 %767
      %769 = vrot.lane.b32.xlu0 %v469, 8
      %v770 = vpop.permute.xlu0 %769
      %771 = vrot.lane.b32.xlu0 %v470, 8
      %v772 = vpop.permute.xlu0 %771
      %773 = vrot.lane.b32.xlu0 %v471, 8
      %v774 = vpop.permute.xlu0 %773
      %775 = vrot.lane.b32.xlu0 %v472, 8
      %v776 = vpop.permute.xlu0 %775
      %777 = vrot.lane.b32.xlu0 %v473, 8
      %v778 = vpop.permute.xlu0 %777
      %779 = vrot.lane.b32.xlu0 %v474, 8
      %v780 = vpop.permute.xlu0 %779
      %781 = vrot.lane.b32.xlu0 %v475, 8
      %v782 = vpop.permute.xlu0 %781
      %783 = vrot.lane.b32.xlu0 %v476, 8
      %v784 = vpop.permute.xlu0 %783
      %785 = vrot.lane.b32.xlu0 %v477, 8
      %v786 = vpop.permute.xlu0 %785
      %787 = vrot.lane.b32.xlu0 %v478, 8
      %v788 = vpop.permute.xlu0 %787
      %789 = vrot.lane.b32.xlu0 %v479, 8
      %v790 = vpop.permute.xlu0 %789
      %791 = vrot.lane.b32.xlu0 %v480, 8
      %v792 = vpop.permute.xlu0 %791
      %793 = vrot.lane.b32.xlu0 %v481, 8
      %v794 = vpop.permute.xlu0 %793
      %795 = vrot.lane.b32.xlu0 %v482, 8
      %v796 = vpop.permute.xlu0 %795
      %797 = vrot.lane.b32.xlu0 %v483, 8
      %v798 = vpop.permute.xlu0 %797
      %799 = vrot.lane.b32.xlu0 %v484, 8
      %v800 = vpop.permute.xlu0 %799
      %801 = vrot.lane.b32.xlu0 %v485, 8
      %v802 = vpop.permute.xlu0 %801
      %803 = vrot.lane.b32.xlu0 %v486, 8
      %v804 = vpop.permute.xlu0 %803
      %805 = vrot.lane.b32.xlu0 %v487, 8
      %v806 = vpop.permute.xlu0 %805
      %807 = vrot.lane.b32.xlu0 %v488, 8
      %v808 = vpop.permute.xlu0 %807
      %809 = vrot.lane.b32.xlu0 %v489, 8
      %v810 = vpop.permute.xlu0 %809
      %875 = vrot.lane.b32.xlu0 %v490, 16
      %v876 = vpop.permute.xlu0 %875
      %877 = vrot.lane.b32.xlu0 %v491, 16
      %v878 = vpop.permute.xlu0 %877
      %879 = vrot.lane.b32.xlu0 %v492, 16
      %v880 = vpop.permute.xlu0 %879
      %881 = vrot.lane.b32.xlu0 %v493, 16
      %v882 = vpop.permute.xlu0 %881
      %883 = vrot.lane.b32.xlu0 %v494, 16
      %v884 = vpop.permute.xlu0 %883
      %885 = vrot.lane.b32.xlu0 %v495, 16
      %v886 = vpop.permute.xlu0 %885
      %887 = vrot.lane.b32.xlu0 %v496, 16
      %v888 = vpop.permute.xlu0 %887
      %889 = vrot.lane.b32.xlu0 %v497, 16
      %v890 = vpop.permute.xlu0 %889
      %891 = vrot.lane.b32.xlu0 %v498, 16
      %v892 = vpop.permute.xlu0 %891
      %893 = vrot.lane.b32.xlu0 %v499, 16
      %v894 = vpop.permute.xlu0 %893
      %895 = vrot.lane.b32.xlu0 %v500, 16
      %v896 = vpop.permute.xlu0 %895
      %897 = vrot.lane.b32.xlu0 %v501, 16
      %v898 = vpop.permute.xlu0 %897
      %899 = vrot.lane.b32.xlu0 %v502, 16
      %v900 = vpop.permute.xlu0 %899
      %901 = vrot.lane.b32.xlu0 %v503, 16
      %v902 = vpop.permute.xlu0 %901
      %903 = vrot.lane.b32.xlu0 %v504, 16
      %v904 = vpop.permute.xlu0 %903
      %905 = vrot.lane.b32.xlu0 %v505, 16
      %v906 = vpop.permute.xlu0 %905
      %907 = vrot.lane.b32.xlu0 %v506, 16
      %v908 = vpop.permute.xlu0 %907
      %909 = vrot.lane.b32.xlu0 %v507, 16
      %v910 = vpop.permute.xlu0 %909
      %911 = vrot.lane.b32.xlu0 %v508, 16
      %v912 = vpop.permute.xlu0 %911
      %913 = vrot.lane.b32.xlu0 %v509, 16
      %v914 = vpop.permute.xlu0 %913
      %915 = vrot.lane.b32.xlu0 %v510, 16
      %v916 = vpop.permute.xlu0 %915
      %917 = vrot.lane.b32.xlu0 %v511, 16
      %v918 = vpop.permute.xlu0 %917
      %919 = vrot.lane.b32.xlu0 %v512, 16
      %v920 = vpop.permute.xlu0 %919
      %921 = vrot.lane.b32.xlu0 %v513, 16
      %v922 = vpop.permute.xlu0 %921
      %923 = vrot.lane.b32.xlu0 %v514, 16
      %v924 = vpop.permute.xlu0 %923
      %925 = vrot.lane.b32.xlu0 %v515, 16
      %v926 = vpop.permute.xlu0 %925
      %927 = vrot.lane.b32.xlu0 %v516, 16
      %v928 = vpop.permute.xlu0 %927
      %929 = vrot.lane.b32.xlu0 %v517, 16
      %v930 = vpop.permute.xlu0 %929
      %931 = vrot.lane.b32.xlu0 %v518, 16
      %v932 = vpop.permute.xlu0 %931
      %933 = vrot.lane.b32.xlu0 %v519, 16
      %v934 = vpop.permute.xlu0 %933
      %935 = vrot.lane.b32.xlu0 %v520, 16
      %v936 = vpop.permute.xlu0 %935
      %937 = vrot.lane.b32.xlu0 %v521, 16
      %v938 = vpop.permute.xlu0 %937
      %1003 = vrot.lane.b32.xlu0 %v522, 24
      %v1004 = vpop.permute.xlu0 %1003
      %1005 = vrot.lane.b32.xlu0 %v523, 24
      %v1006 = vpop.permute.xlu0 %1005
      %1007 = vrot.lane.b32.xlu0 %v524, 24
      %v1008 = vpop.permute.xlu0 %1007
      %1009 = vrot.lane.b32.xlu0 %v525, 24
      %v1010 = vpop.permute.xlu0 %1009
      %1011 = vrot.lane.b32.xlu0 %v526, 24
      %v1012 = vpop.permute.xlu0 %1011
      %1013 = vrot.lane.b32.xlu0 %v527, 24
      %v1014 = vpop.permute.xlu0 %1013
      %1015 = vrot.lane.b32.xlu0 %v528, 24
      %v1016 = vpop.permute.xlu0 %1015
      %1017 = vrot.lane.b32.xlu0 %v529, 24
      %v1018 = vpop.permute.xlu0 %1017
      %1019 = vrot.lane.b32.xlu0 %v530, 24
      %v1020 = vpop.permute.xlu0 %1019
      %1021 = vrot.lane.b32.xlu0 %v531, 24
      %v1022 = vpop.permute.xlu0 %1021
      %1023 = vrot.lane.b32.xlu0 %v532, 24
      %v1024 = vpop.permute.xlu0 %1023
      %1025 = vrot.lane.b32.xlu0 %v533, 24
      %v1026 = vpop.permute.xlu0 %1025
      %1027 = vrot.lane.b32.xlu0 %v534, 24
      %v1028 = vpop.permute.xlu0 %1027
      %1029 = vrot.lane.b32.xlu0 %v535, 24
      %v1030 = vpop.permute.xlu0 %1029
      %1031 = vrot.lane.b32.xlu0 %v536, 24
      %v1032 = vpop.permute.xlu0 %1031
      %1033 = vrot.lane.b32.xlu0 %v537, 24
      %v1034 = vpop.permute.xlu0 %1033
      %1035 = vrot.lane.b32.xlu0 %v538, 24
      %v1036 = vpop.permute.xlu0 %1035
      %1037 = vrot.lane.b32.xlu0 %v539, 24
      %v1038 = vpop.permute.xlu0 %1037
      %1039 = vrot.lane.b32.xlu0 %v540, 24
      %v1040 = vpop.permute.xlu0 %1039
      %1041 = vrot.lane.b32.xlu0 %v541, 24
      %v1042 = vpop.permute.xlu0 %1041
      %1043 = vrot.lane.b32.xlu0 %v542, 24
      %v1044 = vpop.permute.xlu0 %1043
      %1045 = vrot.lane.b32.xlu0 %v543, 24
      %v1046 = vpop.permute.xlu0 %1045
      %1047 = vrot.lane.b32.xlu0 %v544, 24
      %v1048 = vpop.permute.xlu0 %1047
      %1049 = vrot.lane.b32.xlu0 %v545, 24
      %v1050 = vpop.permute.xlu0 %1049
      %1051 = vrot.lane.b32.xlu0 %v546, 24
      %v1052 = vpop.permute.xlu0 %1051
      %1053 = vrot.lane.b32.xlu0 %v547, 24
      %v1054 = vpop.permute.xlu0 %1053
      %1055 = vrot.lane.b32.xlu0 %v548, 24
      %v1056 = vpop.permute.xlu0 %1055
      %1057 = vrot.lane.b32.xlu0 %v549, 24
      %v1058 = vpop.permute.xlu0 %1057
      %1059 = vrot.lane.b32.xlu0 %v550, 24
      %v1060 = vpop.permute.xlu0 %1059
      %1061 = vrot.lane.b32.xlu0 %v551, 24
      %v1062 = vpop.permute.xlu0 %1061
      %1063 = vrot.lane.b32.xlu0 %v552, 24
      %v1064 = vpop.permute.xlu0 %1063
      %1065 = vrot.lane.b32.xlu0 %v553, 24
      %v1066 = vpop.permute.xlu0 %1065
      %1131 = vrot.lane.b32.xlu0 %v554, 32
      %v1132 = vpop.permute.xlu0 %1131
      %1133 = vrot.lane.b32.xlu0 %v555, 32
      %v1134 = vpop.permute.xlu0 %1133
      %1135 = vrot.lane.b32.xlu0 %v556, 32
      %v1136 = vpop.permute.xlu0 %1135
      %1137 = vrot.lane.b32.xlu0 %v557, 32
      %v1138 = vpop.permute.xlu0 %1137
      %1139 = vrot.lane.b32.xlu0 %v558, 32
      %v1140 = vpop.permute.xlu0 %1139
      %1141 = vrot.lane.b32.xlu0 %v559, 32
      %v1142 = vpop.permute.xlu0 %1141
      %1143 = vrot.lane.b32.xlu0 %v560, 32
      %v1144 = vpop.permute.xlu0 %1143
      %1145 = vrot.lane.b32.xlu0 %v561, 32
      %v1146 = vpop.permute.xlu0 %1145
      %1147 = vrot.lane.b32.xlu0 %v562, 32
      %v1148 = vpop.permute.xlu0 %1147
      %1149 = vrot.lane.b32.xlu0 %v563, 32
      %v1150 = vpop.permute.xlu0 %1149
      %1151 = vrot.lane.b32.xlu0 %v564, 32
      %v1152 = vpop.permute.xlu0 %1151
      %1153 = vrot.lane.b32.xlu0 %v565, 32
      %v1154 = vpop.permute.xlu0 %1153
      %1155 = vrot.lane.b32.xlu0 %v566, 32
      %v1156 = vpop.permute.xlu0 %1155
      %1157 = vrot.lane.b32.xlu0 %v567, 32
      %v1158 = vpop.permute.xlu0 %1157
      %1159 = vrot.lane.b32.xlu0 %v568, 32
      %v1160 = vpop.permute.xlu0 %1159
      %1161 = vrot.lane.b32.xlu0 %v569, 32
      %v1162 = vpop.permute.xlu0 %1161
      %1163 = vrot.lane.b32.xlu0 %v570, 32
      %v1164 = vpop.permute.xlu0 %1163
      %1165 = vrot.lane.b32.xlu0 %v571, 32
      %v1166 = vpop.permute.xlu0 %1165
      %1167 = vrot.lane.b32.xlu0 %v572, 32
      %v1168 = vpop.permute.xlu0 %1167
      %1169 = vrot.lane.b32.xlu0 %v573, 32
      %v1170 = vpop.permute.xlu0 %1169
      %1171 = vrot.lane.b32.xlu0 %v574, 32
      %v1172 = vpop.permute.xlu0 %1171
      %1173 = vrot.lane.b32.xlu0 %v575, 32
      %v1174 = vpop.permute.xlu0 %1173
      %1175 = vrot.lane.b32.xlu0 %v576, 32
      %v1176 = vpop.permute.xlu0 %1175
      %1177 = vrot.lane.b32.xlu0 %v577, 32
      %v1178 = vpop.permute.xlu0 %1177
      %1179 = vrot.lane.b32.xlu0 %v578, 32
      %v1180 = vpop.permute.xlu0 %1179
      %1181 = vrot.lane.b32.xlu0 %v579, 32
      %v1182 = vpop.permute.xlu0 %1181
      %1183 = vrot.lane.b32.xlu0 %v580, 32
      %v1184 = vpop.permute.xlu0 %1183
      %1185 = vrot.lane.b32.xlu0 %v581, 32
      %v1186 = vpop.permute.xlu0 %1185
      %1187 = vrot.lane.b32.xlu0 %v582, 32
      %v1188 = vpop.permute.xlu0 %1187
      %1189 = vrot.lane.b32.xlu0 %v583, 32
      %v1190 = vpop.permute.xlu0 %1189
      %1191 = vrot.lane.b32.xlu0 %v584, 32
      %v1192 = vpop.permute.xlu0 %1191
      %1193 = vrot.lane.b32.xlu0 %v585, 32
      %v1194 = vpop.permute.xlu0 %1193
      %1259 = vrot.lane.b32.xlu0 %v586, 40
      %v1260 = vpop.permute.xlu0 %1259
      %1261 = vrot.lane.b32.xlu0 %v587, 40
      %v1262 = vpop.permute.xlu0 %1261
      %1263 = vrot.lane.b32.xlu0 %v588, 40
      %v1264 = vpop.permute.xlu0 %1263
      %1265 = vrot.lane.b32.xlu0 %v589, 40
      %v1266 = vpop.permute.xlu0 %1265
      %1267 = vrot.lane.b32.xlu0 %v590, 40
      %v1268 = vpop.permute.xlu0 %1267
      %1269 = vrot.lane.b32.xlu0 %v591, 40
      %v1270 = vpop.permute.xlu0 %1269
      %1271 = vrot.lane.b32.xlu0 %v592, 40
      %v1272 = vpop.permute.xlu0 %1271
      %1273 = vrot.lane.b32.xlu0 %v593, 40
      %v1274 = vpop.permute.xlu0 %1273
      %1275 = vrot.lane.b32.xlu0 %v594, 40
      %v1276 = vpop.permute.xlu0 %1275
      %1277 = vrot.lane.b32.xlu0 %v595, 40
      %v1278 = vpop.permute.xlu0 %1277
      %1279 = vrot.lane.b32.xlu0 %v596, 40
      %v1280 = vpop.permute.xlu0 %1279
      %1281 = vrot.lane.b32.xlu0 %v597, 40
      %v1282 = vpop.permute.xlu0 %1281
      %1283 = vrot.lane.b32.xlu0 %v598, 40
      %v1284 = vpop.permute.xlu0 %1283
      %1285 = vrot.lane.b32.xlu0 %v599, 40
      %v1286 = vpop.permute.xlu0 %1285
      %1287 = vrot.lane.b32.xlu0 %v600, 40
      %v1288 = vpop.permute.xlu0 %1287
      %1289 = vrot.lane.b32.xlu0 %v601, 40
      %v1290 = vpop.permute.xlu0 %1289
      %1291 = vrot.lane.b32.xlu0 %v602, 40
      %v1292 = vpop.permute.xlu0 %1291
      %1293 = vrot.lane.b32.xlu0 %v603, 40
      %v1294 = vpop.permute.xlu0 %1293
      %1295 = vrot.lane.b32.xlu0 %v604, 40
      %v1296 = vpop.permute.xlu0 %1295
      %1297 = vrot.lane.b32.xlu0 %v605, 40
      %v1298 = vpop.permute.xlu0 %1297
      %1299 = vrot.lane.b32.xlu0 %v606, 40
      %v1300 = vpop.permute.xlu0 %1299
      %1301 = vrot.lane.b32.xlu0 %v607, 40
      %v1302 = vpop.permute.xlu0 %1301
      %1303 = vrot.lane.b32.xlu0 %v608, 40
      %v1304 = vpop.permute.xlu0 %1303
      %1305 = vrot.lane.b32.xlu0 %v609, 40
      %v1306 = vpop.permute.xlu0 %1305
      %1307 = vrot.lane.b32.xlu0 %v610, 40
      %v1308 = vpop.permute.xlu0 %1307
      %1309 = vrot.lane.b32.xlu0 %v611, 40
      %v1310 = vpop.permute.xlu0 %1309
      %1311 = vrot.lane.b32.xlu0 %v612, 40
      %v1312 = vpop.permute.xlu0 %1311
      %1313 = vrot.lane.b32.xlu0 %v613, 40
      %v1314 = vpop.permute.xlu0 %1313
      %1315 = vrot.lane.b32.xlu0 %v614, 40
      %v1316 = vpop.permute.xlu0 %1315
      %1317 = vrot.lane.b32.xlu0 %v615, 40
      %v1318 = vpop.permute.xlu0 %1317
      %1319 = vrot.lane.b32.xlu0 %v616, 40
      %v1320 = vpop.permute.xlu0 %1319
      %1321 = vrot.lane.b32.xlu0 %v617, 40
      %v1322 = vpop.permute.xlu0 %1321
      %1387 = vrot.lane.b32.xlu0 %v619, 48
      %v1388 = vpop.permute.xlu0 %1387
      %1389 = vrot.lane.b32.xlu0 %v620, 48
      %v1390 = vpop.permute.xlu0 %1389
      %1391 = vrot.lane.b32.xlu0 %v621, 48
      %v1392 = vpop.permute.xlu0 %1391
      %1393 = vrot.lane.b32.xlu0 %v622, 48
      %v1394 = vpop.permute.xlu0 %1393
      %1395 = vrot.lane.b32.xlu0 %v623, 48
      %v1396 = vpop.permute.xlu0 %1395
      %1397 = vrot.lane.b32.xlu0 %v624, 48
      %v1398 = vpop.permute.xlu0 %1397
      %1399 = vrot.lane.b32.xlu0 %v625, 48
      %v1400 = vpop.permute.xlu0 %1399
      %1401 = vrot.lane.b32.xlu0 %v626, 48
      %v1402 = vpop.permute.xlu0 %1401
      %1403 = vrot.lane.b32.xlu0 %v627, 48
      %v1404 = vpop.permute.xlu0 %1403
      %1405 = vrot.lane.b32.xlu0 %v628, 48
      %v1406 = vpop.permute.xlu0 %1405
      %1407 = vrot.lane.b32.xlu0 %v629, 48
      %v1408 = vpop.permute.xlu0 %1407
      %1409 = vrot.lane.b32.xlu0 %v630, 48
      %v1410 = vpop.permute.xlu0 %1409
      %1411 = vrot.lane.b32.xlu0 %v631, 48
      %v1412 = vpop.permute.xlu0 %1411
      %1413 = vrot.lane.b32.xlu0 %v632, 48
      %v1414 = vpop.permute.xlu0 %1413
      %1415 = vrot.lane.b32.xlu0 %v633, 48
      %v1416 = vpop.permute.xlu0 %1415
      %1417 = vrot.lane.b32.xlu0 %v634, 48
      %v1418 = vpop.permute.xlu0 %1417
      %1419 = vrot.lane.b32.xlu0 %v635, 48
      %v1420 = vpop.permute.xlu0 %1419
      %1421 = vrot.lane.b32.xlu0 %v636, 48
      %v1422 = vpop.permute.xlu0 %1421
      %1423 = vrot.lane.b32.xlu0 %v637, 48
      %v1424 = vpop.permute.xlu0 %1423
      %1425 = vrot.lane.b32.xlu0 %v638, 48
      %v1426 = vpop.permute.xlu0 %1425
      %1427 = vrot.lane.b32.xlu0 %v639, 48
      %v1428 = vpop.permute.xlu0 %1427
      %1429 = vrot.lane.b32.xlu0 %v640, 48
      %v1430 = vpop.permute.xlu0 %1429
      %1431 = vrot.lane.b32.xlu0 %v641, 48
      %v1432 = vpop.permute.xlu0 %1431
      %1433 = vrot.lane.b32.xlu0 %v642, 48
      %v1434 = vpop.permute.xlu0 %1433
      %1435 = vrot.lane.b32.xlu0 %v643, 48
      %v1436 = vpop.permute.xlu0 %1435
      %1437 = vrot.lane.b32.xlu0 %v644, 48
      %v1438 = vpop.permute.xlu0 %1437
      %1439 = vrot.lane.b32.xlu0 %v645, 48
      %v1440 = vpop.permute.xlu0 %1439
      %1441 = vrot.lane.b32.xlu0 %v646, 48
      %v1442 = vpop.permute.xlu0 %1441
      %1443 = vrot.lane.b32.xlu0 %v647, 48
      %v1444 = vpop.permute.xlu0 %1443
      %1445 = vrot.lane.b32.xlu0 %v648, 48
      %v1446 = vpop.permute.xlu0 %1445
      %1447 = vrot.lane.b32.xlu0 %v649, 48
      %v1448 = vpop.permute.xlu0 %1447
      %1449 = vrot.lane.b32.xlu0 %v650, 48
      %v1450 = vpop.permute.xlu0 %1449
      %1515 = vrot.lane.b32.xlu0 %v651, 56
      %v1516 = vpop.permute.xlu0 %1515
      %1517 = vrot.lane.b32.xlu0 %v652, 56
      %v1518 = vpop.permute.xlu0 %1517
      %1519 = vrot.lane.b32.xlu0 %v653, 56
      %v1520 = vpop.permute.xlu0 %1519
      %1521 = vrot.lane.b32.xlu0 %v654, 56
      %v1522 = vpop.permute.xlu0 %1521
      %1523 = vrot.lane.b32.xlu0 %v655, 56
      %v1524 = vpop.permute.xlu0 %1523
      %1525 = vrot.lane.b32.xlu0 %v656, 56
      %v1526 = vpop.permute.xlu0 %1525
      %1527 = vrot.lane.b32.xlu0 %v657, 56
      %v1528 = vpop.permute.xlu0 %1527
      %1529 = vrot.lane.b32.xlu0 %v658, 56
      %v1530 = vpop.permute.xlu0 %1529
      %1531 = vrot.lane.b32.xlu0 %v659, 56
      %v1532 = vpop.permute.xlu0 %1531
      %1533 = vrot.lane.b32.xlu0 %v660, 56
      %v1534 = vpop.permute.xlu0 %1533
      %1535 = vrot.lane.b32.xlu0 %v661, 56
      %v1536 = vpop.permute.xlu0 %1535
      %1537 = vrot.lane.b32.xlu0 %v662, 56
      %v1538 = vpop.permute.xlu0 %1537
      %1539 = vrot.lane.b32.xlu0 %v663, 56
      %v1540 = vpop.permute.xlu0 %1539
      %1541 = vrot.lane.b32.xlu0 %v664, 56
      %v1542 = vpop.permute.xlu0 %1541
      %1543 = vrot.lane.b32.xlu0 %v665, 56
      %v1544 = vpop.permute.xlu0 %1543
      %1545 = vrot.lane.b32.xlu0 %v666, 56
      %v1546 = vpop.permute.xlu0 %1545
      %1547 = vrot.lane.b32.xlu0 %v667, 56
      %v1548 = vpop.permute.xlu0 %1547
      %1549 = vrot.lane.b32.xlu0 %v668, 56
      %v1550 = vpop.permute.xlu0 %1549
      %1551 = vrot.lane.b32.xlu0 %v669, 56
      %v1552 = vpop.permute.xlu0 %1551
      %1553 = vrot.lane.b32.xlu0 %v670, 56
      %v1554 = vpop.permute.xlu0 %1553
      %1555 = vrot.lane.b32.xlu0 %v671, 56
      %v1556 = vpop.permute.xlu0 %1555
      %1557 = vrot.lane.b32.xlu0 %v672, 56
      %v1558 = vpop.permute.xlu0 %1557
      %1559 = vrot.lane.b32.xlu0 %v673, 56
      %v1560 = vpop.permute.xlu0 %1559
      %1561 = vrot.lane.b32.xlu0 %v674, 56
      %v1562 = vpop.permute.xlu0 %1561
      %1563 = vrot.lane.b32.xlu0 %v675, 56
      %v1564 = vpop.permute.xlu0 %1563
      %1565 = vrot.lane.b32.xlu0 %v676, 56
      %v1566 = vpop.permute.xlu0 %1565
      %1567 = vrot.lane.b32.xlu0 %v677, 56
      %v1568 = vpop.permute.xlu0 %1567
      %1569 = vrot.lane.b32.xlu0 %v678, 56
      %v1570 = vpop.permute.xlu0 %1569
      %1571 = vrot.lane.b32.xlu0 %v679, 56
      %v1572 = vpop.permute.xlu0 %1571
      %1573 = vrot.lane.b32.xlu0 %v680, 56
      %v1574 = vpop.permute.xlu0 %1573
      %1575 = vrot.lane.b32.xlu0 %v681, 56
      %v1576 = vpop.permute.xlu0 %1575
      %1577 = vrot.lane.b32.xlu0 %v682, 56
      %v1578 = vpop.permute.xlu0 %1577
      %1643 = vrot.lane.b32.xlu0 %v683, 64
      %v1644 = vpop.permute.xlu0 %1643
      %1645 = vrot.lane.b32.xlu0 %v684, 64
      %v1646 = vpop.permute.xlu0 %1645
      %1647 = vrot.lane.b32.xlu0 %v685, 64
      %v1648 = vpop.permute.xlu0 %1647
      %1649 = vrot.lane.b32.xlu0 %v686, 64
      %v1650 = vpop.permute.xlu0 %1649
      %1651 = vrot.lane.b32.xlu0 %v687, 64
      %v1652 = vpop.permute.xlu0 %1651
      %1653 = vrot.lane.b32.xlu0 %v688, 64
      %v1654 = vpop.permute.xlu0 %1653
      %1655 = vrot.lane.b32.xlu0 %v689, 64
      %v1656 = vpop.permute.xlu0 %1655
      %1657 = vrot.lane.b32.xlu0 %v690, 64
      %v1658 = vpop.permute.xlu0 %1657
      %1659 = vrot.lane.b32.xlu0 %v691, 64
      %v1660 = vpop.permute.xlu0 %1659
      %1661 = vrot.lane.b32.xlu0 %v692, 64
      %v1662 = vpop.permute.xlu0 %1661
      %1663 = vrot.lane.b32.xlu0 %v693, 64
      %v1664 = vpop.permute.xlu0 %1663
      %1665 = vrot.lane.b32.xlu0 %v694, 64
      %v1666 = vpop.permute.xlu0 %1665
      %1667 = vrot.lane.b32.xlu0 %v695, 64
      %v1668 = vpop.permute.xlu0 %1667
      %1669 = vrot.lane.b32.xlu0 %v696, 64
      %v1670 = vpop.permute.xlu0 %1669
      %1671 = vrot.lane.b32.xlu0 %v697, 64
      %v1672 = vpop.permute.xlu0 %1671
      %1673 = vrot.lane.b32.xlu0 %v698, 64
      %v1674 = vpop.permute.xlu0 %1673
      %1675 = vrot.lane.b32.xlu0 %v699, 64
      %v1676 = vpop.permute.xlu0 %1675
      %1677 = vrot.lane.b32.xlu0 %v700, 64
      %v1678 = vpop.permute.xlu0 %1677
      %1679 = vrot.lane.b32.xlu0 %v701, 64
      %v1680 = vpop.permute.xlu0 %1679
      %1681 = vrot.lane.b32.xlu0 %v702, 64
      %v1682 = vpop.permute.xlu0 %1681
      %1683 = vrot.lane.b32.xlu0 %v703, 64
      %v1684 = vpop.permute.xlu0 %1683
      %1685 = vrot.lane.b32.xlu0 %v704, 64
      %v1686 = vpop.permute.xlu0 %1685
      %1687 = vrot.lane.b32.xlu0 %v705, 64
      %v1688 = vpop.permute.xlu0 %1687
      %1689 = vrot.lane.b32.xlu0 %v706, 64
      %v1690 = vpop.permute.xlu0 %1689
      %1691 = vrot.lane.b32.xlu0 %v707, 64
      %v1692 = vpop.permute.xlu0 %1691
      %1693 = vrot.lane.b32.xlu0 %v708, 64
      %v1694 = vpop.permute.xlu0 %1693
      %1695 = vrot.lane.b32.xlu0 %v709, 64
      %v1696 = vpop.permute.xlu0 %1695
      %1697 = vrot.lane.b32.xlu0 %v710, 64
      %v1698 = vpop.permute.xlu0 %1697
      %1699 = vrot.lane.b32.xlu0 %v711, 64
      %v1700 = vpop.permute.xlu0 %1699
      %1701 = vrot.lane.b32.xlu0 %v712, 64
      %v1702 = vpop.permute.xlu0 %1701
      %1703 = vrot.lane.b32.xlu0 %v713, 64
      %v1704 = vpop.permute.xlu0 %1703
      %1705 = vrot.lane.b32.xlu0 %v714, 64
      %v1706 = vpop.permute.xlu0 %1705
      %v1739 = vsel %vm347, %v426, %v748
      %v1740 = vsel %vm347, %v427, %v750
      %v1741 = vsel %vm347, %v428, %v752
      %v1742 = vsel %vm347, %v429, %v754
      %v1743 = vsel %vm347, %v430, %v756
      %v1744 = vsel %vm347, %v431, %v758
      %v1745 = vsel %vm347, %v432, %v760
      %v1746 = vsel %vm347, %v433, %v762
      %v1747 = vsel %vm347, %v434, %v764
      %v1748 = vsel %vm347, %v435, %v766
      %v1749 = vsel %vm347, %v436, %v768
      %v1750 = vsel %vm347, %v437, %v770
      %v1751 = vsel %vm347, %v438, %v772
      %v1752 = vsel %vm347, %v439, %v774
      %v1753 = vsel %vm347, %v440, %v776
      %v1754 = vsel %vm347, %v441, %v778
      %v1755 = vsel %vm347, %v442, %v780
      %v1756 = vsel %vm347, %v443, %v782
      %v1757 = vsel %vm347, %v444, %v784
      %v1758 = vsel %vm347, %v445, %v786
      %v1759 = vsel %vm347, %v446, %v788
      %v1760 = vsel %vm347, %v447, %v790
      %v1761 = vsel %vm347, %v448, %v792
      %v1762 = vsel %vm347, %v449, %v794
      %v1763 = vsel %vm347, %v450, %v796
      %v1764 = vsel %vm347, %v451, %v798
      %v1765 = vsel %vm347, %v452, %v800
      %v1766 = vsel %vm347, %v453, %v802
      %v1767 = vsel %vm347, %v454, %v804
      %v1768 = vsel %vm347, %v455, %v806
      %v1769 = vsel %vm347, %v456, %v808
      %v1770 = vsel %vm347, %v457, %v810
      %vm1771 = vcmask 130048
      %v1772 = vsel %vm1771, %v1739, %v876
      %v1773 = vsel %vm1771, %v1740, %v878
      %v1774 = vsel %vm1771, %v1741, %v880
      %v1775 = vsel %vm1771, %v1742, %v882
      %v1776 = vsel %vm1771, %v1743, %v884
      %v1777 = vsel %vm1771, %v1744, %v886
      %v1778 = vsel %vm1771, %v1745, %v888
      %v1779 = vsel %vm1771, %v1746, %v890
      %v1780 = vsel %vm1771, %v1747, %v892
      %v1781 = vsel %vm1771, %v1748, %v894
      %v1782 = vsel %vm1771, %v1749, %v896
      %v1783 = vsel %vm1771, %v1750, %v898
      %v1784 = vsel %vm1771, %v1751, %v900
      %v1785 = vsel %vm1771, %v1752, %v902
      %v1786 = vsel %vm1771, %v1753, %v904
      %v1787 = vsel %vm1771, %v1754, %v906
      %v1788 = vsel %vm1771, %v1755, %v908
      %v1789 = vsel %vm1771, %v1756, %v910
      %v1790 = vsel %vm1771, %v1757, %v912
      %v1791 = vsel %vm1771, %v1758, %v914
      %v1792 = vsel %vm1771, %v1759, %v916
      %v1793 = vsel %vm1771, %v1760, %v918
      %v1794 = vsel %vm1771, %v1761, %v920
      %v1795 = vsel %vm1771, %v1762, %v922
      %v1796 = vsel %vm1771, %v1763, %v924
      %v1797 = vsel %vm1771, %v1764, %v926
      %v1798 = vsel %vm1771, %v1765, %v928
      %v1799 = vsel %vm1771, %v1766, %v930
      %v1800 = vsel %vm1771, %v1767, %v932
      %v1801 = vsel %vm1771, %v1768, %v934
      %v1802 = vsel %vm1771, %v1769, %v936
      %v1803 = vsel %vm1771, %v1770, %v938
      %vm1804 = vcmask 195584
      %v1805 = vsel %vm1804, %v1772, %v1004
      %v1806 = vsel %vm1804, %v1773, %v1006
      %v1807 = vsel %vm1804, %v1774, %v1008
      %v1808 = vsel %vm1804, %v1775, %v1010
      %v1809 = vsel %vm1804, %v1776, %v1012
      %v1810 = vsel %vm1804, %v1777, %v1014
      %v1811 = vsel %vm1804, %v1778, %v1016
      %v1812 = vsel %vm1804, %v1779, %v1018
      %v1813 = vsel %vm1804, %v1780, %v1020
      %v1814 = vsel %vm1804, %v1781, %v1022
      %v1815 = vsel %vm1804, %v1782, %v1024
      %v1816 = vsel %vm1804, %v1783, %v1026
      %v1817 = vsel %vm1804, %v1784, %v1028
      %v1818 = vsel %vm1804, %v1785, %v1030
      %v1819 = vsel %vm1804, %v1786, %v1032
      %v1820 = vsel %vm1804, %v1787, %v1034
      %v1821 = vsel %vm1804, %v1788, %v1036
      %v1822 = vsel %vm1804, %v1789, %v1038
      %v1823 = vsel %vm1804, %v1790, %v1040
      %v1824 = vsel %vm1804, %v1791, %v1042
      %v1825 = vsel %vm1804, %v1792, %v1044
      %v1826 = vsel %vm1804, %v1793, %v1046
      %v1827 = vsel %vm1804, %v1794, %v1048
      %v1828 = vsel %vm1804, %v1795, %v1050
      %v1829 = vsel %vm1804, %v1796, %v1052
      %v1830 = vsel %vm1804, %v1797, %v1054
      %v1831 = vsel %vm1804, %v1798, %v1056
      %v1832 = vsel %vm1804, %v1799, %v1058
      %v1833 = vsel %vm1804, %v1800, %v1060
      %v1834 = vsel %vm1804, %v1801, %v1062
      %v1835 = vsel %vm1804, %v1802, %v1064
      %v1836 = vsel %vm1804, %v1803, %v1066
      %vm1837 = vcmask 261120
      %v1838 = vsel %vm1837, %v1805, %v1132
      %v1839 = vsel %vm1837, %v1806, %v1134
      %v1840 = vsel %vm1837, %v1807, %v1136
      %v1841 = vsel %vm1837, %v1808, %v1138
      %v1842 = vsel %vm1837, %v1809, %v1140
      %v1843 = vsel %vm1837, %v1810, %v1142
      %v1844 = vsel %vm1837, %v1811, %v1144
      %v1845 = vsel %vm1837, %v1812, %v1146
      %v1846 = vsel %vm1837, %v1813, %v1148
      %v1847 = vsel %vm1837, %v1814, %v1150
      %v1848 = vsel %vm1837, %v1815, %v1152
      %v1849 = vsel %vm1837, %v1816, %v1154
      %v1850 = vsel %vm1837, %v1817, %v1156
      %v1851 = vsel %vm1837, %v1818, %v1158
      %v1852 = vsel %vm1837, %v1819, %v1160
      %v1853 = vsel %vm1837, %v1820, %v1162
      %v1854 = vsel %vm1837, %v1821, %v1164
      %v1855 = vsel %vm1837, %v1822, %v1166
      %v1856 = vsel %vm1837, %v1823, %v1168
      %v1857 = vsel %vm1837, %v1824, %v1170
      %v1858 = vsel %vm1837, %v1825, %v1172
      %v1859 = vsel %vm1837, %v1826, %v1174
      %v1860 = vsel %vm1837, %v1827, %v1176
      %v1861 = vsel %vm1837, %v1828, %v1178
      %v1862 = vsel %vm1837, %v1829, %v1180
      %v1863 = vsel %vm1837, %v1830, %v1182
      %v1864 = vsel %vm1837, %v1831, %v1184
      %v1865 = vsel %vm1837, %v1832, %v1186
      %v1866 = vsel %vm1837, %v1833, %v1188
      %v1867 = vsel %vm1837, %v1834, %v1190
      %v1868 = vsel %vm1837, %v1835, %v1192
      %v1869 = vsel %vm1837, %v1836, %v1194
      %vm1870 = vcmask 326656
      %v1871 = vsel %vm1870, %v1838, %v1260
      %v1872 = vsel %vm1870, %v1839, %v1262
      %v1873 = vsel %vm1870, %v1840, %v1264
      %v1874 = vsel %vm1870, %v1841, %v1266
      %v1875 = vsel %vm1870, %v1842, %v1268
      %v1876 = vsel %vm1870, %v1843, %v1270
      %v1877 = vsel %vm1870, %v1844, %v1272
      %v1878 = vsel %vm1870, %v1845, %v1274
      %v1879 = vsel %vm1870, %v1846, %v1276
      %v1880 = vsel %vm1870, %v1847, %v1278
      %v1881 = vsel %vm1870, %v1848, %v1280
      %v1882 = vsel %vm1870, %v1849, %v1282
      %v1883 = vsel %vm1870, %v1850, %v1284
      %v1884 = vsel %vm1870, %v1851, %v1286
      %v1885 = vsel %vm1870, %v1852, %v1288
      %v1886 = vsel %vm1870, %v1853, %v1290
      %v1887 = vsel %vm1870, %v1854, %v1292
      %v1888 = vsel %vm1870, %v1855, %v1294
      %v1889 = vsel %vm1870, %v1856, %v1296
      %v1890 = vsel %vm1870, %v1857, %v1298
      %v1891 = vsel %vm1870, %v1858, %v1300
      %v1892 = vsel %vm1870, %v1859, %v1302
      %v1893 = vsel %vm1870, %v1860, %v1304
      %v1894 = vsel %vm1870, %v1861, %v1306
      %v1895 = vsel %vm1870, %v1862, %v1308
      %v1896 = vsel %vm1870, %v1863, %v1310
      %v1897 = vsel %vm1870, %v1864, %v1312
      %v1898 = vsel %vm1870, %v1865, %v1314
      %v1899 = vsel %vm1870, %v1866, %v1316
      %v1900 = vsel %vm1870, %v1867, %v1318
      %v1901 = vsel %vm1870, %v1868, %v1320
      %v1902 = vsel %vm1870, %v1869, %v1322
      %vm1903 = vcmask 392192
      %v1904 = vsel %vm1903, %v1871, %v1388
      %v1905 = vsel %vm1903, %v1872, %v1390
      %v1906 = vsel %vm1903, %v1873, %v1392
      %v1907 = vsel %vm1903, %v1874, %v1394
      %v1908 = vsel %vm1903, %v1875, %v1396
      %v1909 = vsel %vm1903, %v1876, %v1398
      %v1910 = vsel %vm1903, %v1877, %v1400
      %v1911 = vsel %vm1903, %v1878, %v1402
      %v1912 = vsel %vm1903, %v1879, %v1404
      %v1913 = vsel %vm1903, %v1880, %v1406
      %v1914 = vsel %vm1903, %v1881, %v1408
      %v1915 = vsel %vm1903, %v1882, %v1410
      %v1916 = vsel %vm1903, %v1883, %v1412
      %v1917 = vsel %vm1903, %v1884, %v1414
      %v1918 = vsel %vm1903, %v1885, %v1416
      %v1919 = vsel %vm1903, %v1886, %v1418
      %v1920 = vsel %vm1903, %v1887, %v1420
      %v1921 = vsel %vm1903, %v1888, %v1422
      %v1922 = vsel %vm1903, %v1889, %v1424
      %v1923 = vsel %vm1903, %v1890, %v1426
      %v1924 = vsel %vm1903, %v1891, %v1428
      %v1925 = vsel %vm1903, %v1892, %v1430
      %v1926 = vsel %vm1903, %v1893, %v1432
      %v1927 = vsel %vm1903, %v1894, %v1434
      %v1928 = vsel %vm1903, %v1895, %v1436
      %v1929 = vsel %vm1903, %v1896, %v1438
      %v1930 = vsel %vm1903, %v1897, %v1440
      %v1931 = vsel %vm1903, %v1898, %v1442
      %v1932 = vsel %vm1903, %v1899, %v1444
      %v1933 = vsel %vm1903, %v1900, %v1446
      %v1934 = vsel %vm1903, %v1901, %v1448
      %v1935 = vsel %vm1903, %v1902, %v1450
      %vm1936 = vcmask 457728
      %v1937 = vsel %vm1936, %v1904, %v1516
      %v1938 = vsel %vm1936, %v1905, %v1518
      %v1939 = vsel %vm1936, %v1906, %v1520
      %v1940 = vsel %vm1936, %v1907, %v1522
      %v1941 = vsel %vm1936, %v1908, %v1524
      %v1942 = vsel %vm1936, %v1909, %v1526
      %v1943 = vsel %vm1936, %v1910, %v1528
      %v1944 = vsel %vm1936, %v1911, %v1530
      %v1945 = vsel %vm1936, %v1912, %v1532
      %v1946 = vsel %vm1936, %v1913, %v1534
      %v1947 = vsel %vm1936, %v1914, %v1536
      %v1948 = vsel %vm1936, %v1915, %v1538
      %v1949 = vsel %vm1936, %v1916, %v1540
      %v1950 = vsel %vm1936, %v1917, %v1542
      %v1951 = vsel %vm1936, %v1918, %v1544
      %v1952 = vsel %vm1936, %v1919, %v1546
      %v1953 = vsel %vm1936, %v1920, %v1548
      %v1954 = vsel %vm1936, %v1921, %v1550
      %v1955 = vsel %vm1936, %v1922, %v1552
      %v1956 = vsel %vm1936, %v1923, %v1554
      %v1957 = vsel %vm1936, %v1924, %v1556
      %v1958 = vsel %vm1936, %v1925, %v1558
      %v1959 = vsel %vm1936, %v1926, %v1560
      %v1960 = vsel %vm1936, %v1927, %v1562
      %v1961 = vsel %vm1936, %v1928, %v1564
      %v1962 = vsel %vm1936, %v1929, %v1566
      %v1963 = vsel %vm1936, %v1930, %v1568
      %v1964 = vsel %vm1936, %v1931, %v1570
      %v1965 = vsel %vm1936, %v1932, %v1572
      %v1966 = vsel %vm1936, %v1933, %v1574
      %v1967 = vsel %vm1936, %v1934, %v1576
      %v1968 = vsel %vm1936, %v1935, %v1578
      %vm1969 = vcmask 523264
      %v1970 = vsel %vm1969, %v1937, %v1644
      %v1971 = vsel %vm1969, %v1938, %v1646
      %v1972 = vsel %vm1969, %v1939, %v1648
      %v1973 = vsel %vm1969, %v1940, %v1650
      %v1974 = vsel %vm1969, %v1941, %v1652
      %v1975 = vsel %vm1969, %v1942, %v1654
      %v1976 = vsel %vm1969, %v1943, %v1656
      %v1977 = vsel %vm1969, %v1944, %v1658
      %v1978 = vsel %vm1969, %v1945, %v1660
      %v1979 = vsel %vm1969, %v1946, %v1662
      %v1980 = vsel %vm1969, %v1947, %v1664
      %v1981 = vsel %vm1969, %v1948, %v1666
      %v1982 = vsel %vm1969, %v1949, %v1668
      %v1983 = vsel %vm1969, %v1950, %v1670
      %v1984 = vsel %vm1969, %v1951, %v1672
      %v1985 = vsel %vm1969, %v1952, %v1674
      %v1986 = vsel %vm1969, %v1953, %v1676
      %v1987 = vsel %vm1969, %v1954, %v1678
      %v1988 = vsel %vm1969, %v1955, %v1680
      %v1989 = vsel %vm1969, %v1956, %v1682
      %v1990 = vsel %vm1969, %v1957, %v1684
      %v1991 = vsel %vm1969, %v1958, %v1686
      %v1992 = vsel %vm1969, %v1959, %v1688
      %v1993 = vsel %vm1969, %v1960, %v1690
      %v1994 = vsel %vm1969, %v1961, %v1692
      %v1995 = vsel %vm1969, %v1962, %v1694
      %v1996 = vsel %vm1969, %v1963, %v1696
      %v1997 = vsel %vm1969, %v1964, %v1698
      %v1998 = vsel %vm1969, %v1965, %v1700
      %v1999 = vsel %vm1969, %v1966, %v1702
      %v2000 = vsel %vm1969, %v1967, %v1704
      %v2001 = vsel %vm1969, %v1968, %v1706
      %v2002 = vld [vmem:[%s2] sm:$0xff]
      %v2003 = vld [vmem:[%s2 + $0x8] sm:$0xff]
      %v2004 = vld [vmem:[%s2 + $0x10] sm:$0xff]
      %v2005 = vld [vmem:[%s2 + $0x18] sm:$0xff]
      %v2006 = vld [vmem:[%s2 + $0x20] sm:$0xff]
      %v2007 = vld [vmem:[%s2 + $0x28] sm:$0xff]
      %v2008 = vld [vmem:[%s2 + $0x30] sm:$0xff]
      %v2009 = vld [vmem:[%s2 + $0x38] sm:$0xff]
      %v2010 = vld [vmem:[%s2 + $0x40] sm:$0xff]
      %vm2011 = vcmask 588800
      %v2013 = vsel %vm2011, %v1970, 0
      %v2016 = vsel %vm2011, %v1971, 0
      %v2019 = vsel %vm2011, %v1972, 0
      %v2022 = vsel %vm2011, %v1973, 0
      %v2025 = vsel %vm2011, %v1974, 0
      %v2028 = vsel %vm2011, %v1975, 0
      %v2031 = vsel %vm2011, %v1976, 0
      %v2034 = vsel %vm2011, %v1977, 0
      %v2037 = vsel %vm2011, %v1978, 0
      %v2040 = vsel %vm2011, %v1979, 0
      %v2043 = vsel %vm2011, %v1980, 0
      %v2046 = vsel %vm2011, %v1981, 0
      %v2049 = vsel %vm2011, %v1982, 0
      %v2052 = vsel %vm2011, %v1983, 0
      %v2055 = vsel %vm2011, %v1984, 0
      %v2058 = vsel %vm2011, %v1985, 0
      %v2061 = vsel %vm2011, %v1986, 0
      %v2064 = vsel %vm2011, %v1987, 0
      %v2067 = vsel %vm2011, %v1988, 0
      %v2070 = vsel %vm2011, %v1989, 0
      %v2073 = vsel %vm2011, %v1990, 0
      %v2076 = vsel %vm2011, %v1991, 0
      %v2079 = vsel %vm2011, %v1992, 0
      %v2082 = vsel %vm2011, %v1993, 0
      %v2085 = vsel %vm2011, %v1994, 0
      %v2088 = vsel %vm2011, %v1995, 0
      %v2091 = vsel %vm2011, %v1996, 0
      %v2094 = vsel %vm2011, %v1997, 0
      %v2097 = vsel %vm2011, %v1998, 0
      %v2100 = vsel %vm2011, %v1999, 0
      %v2103 = vsel %vm2011, %v2000, 0
      %v2106 = vsel %vm2011, %v2001, 0
      %2108 = vmatprep.subr.mxu0 0.0
      %2109 = vmatpush1.msra.mxu0 %v2002
      %2110 = vmatprep.subr.mxu0 0.0
      %2111 = vmatpush1.msra.mxu0 %v2003
      %2112 = vmatprep.subr.mxu0 0.0
      %2113 = vmatpush1.msra.mxu0 %v2004
      %2114 = vmatprep.subr.mxu0 0.0
      %2115 = vmatpush1.msra.mxu0 %v2005
      %2116 = vmatprep.subr.mxu0 0.0
      %2117 = vmatpush1.msra.mxu0 %v2006
      %2118 = vmatprep.subr.mxu0 0.0
      %2119 = vmatpush1.msra.mxu0 %v2007
      %2120 = vmatprep.subr.mxu0 0.0
      %2121 = vmatpush1.msra.mxu0 %v2008
      %2122 = vmatprep.subr.mxu0 0.0
      %2123 = vmatpush1.msra.mxu0 %v2009
      %2124 = vmatprep.subr.mxu0 0.0
      %2125 = vmatpush1.msra.mxu0 %v2010
      %2126 = vmatprep.subr.mxu0 0.0
      %2127 = vmatpush1.msra.mxu0 0.0
      %2128 = vmatprep.subr.mxu0 0.0
      %2129 = vmatpush1.msra.mxu0 0.0
      %2130 = vmatprep.subr.mxu0 0.0
      %2131 = vmatpush1.msra.mxu0 0.0
      %2132 = vmatprep.subr.mxu0 0.0
      %2133 = vmatpush1.msra.mxu0 0.0
      %2134 = vmatprep.subr.mxu0 0.0
      %2135 = vmatpush1.msra.mxu0 0.0
      %2136 = vmatprep.subr.mxu0 0.0
      %2137 = vmatpush1.msra.mxu0 0.0
      %2138 = vmatprep.subr.mxu0 0.0
      %2139 = vmatpush1.msra.mxu0 0.0
      %2140 = vmatprep.subr.mxu0 0.0
      %2141 = vmatpush1.msra.mxu0 0.0
      %2142 = vmatprep.subr.mxu0 0.0
      %2143 = vmatpush1.msra.mxu0 0.0
      %2144 = vmatprep.subr.mxu0 0.0
      %2145 = vmatpush1.msra.mxu0 0.0
      %2146 = vmatprep.subr.mxu0 0.0
      %2147 = vmatpush1.msra.mxu0 0.0
      %2148 = vmatprep.subr.mxu0 0.0
      %2149 = vmatpush1.msra.mxu0 0.0
      %2150 = vmatprep.subr.mxu0 0.0
      %2151 = vmatpush1.msra.mxu0 0.0
      %2152 = vmatprep.subr.mxu0 0.0
      %2153 = vmatpush1.msra.mxu0 0.0
      %2154 = vmatprep.subr.mxu0 0.0
      %2155 = vmatpush1.msra.mxu0 0.0
      %2156 = vmatprep.subr.mxu0 0.0
      %2157 = vmatpush1.msra.mxu0 0.0
      %2158 = vmatprep.subr.mxu0 0.0
      %2159 = vmatpush1.msra.mxu0 0.0
      %2160 = vmatprep.subr.mxu0 0.0
      %2161 = vmatpush1.msra.mxu0 0.0
      %2162 = vmatprep.subr.mxu0 0.0
      %2163 = vmatpush1.msra.mxu0 0.0
      %2164 = vmatprep.subr.mxu0 0.0
      %2165 = vmatpush1.msra.mxu0 0.0
      %2166 = vmatprep.subr.mxu0 0.0
      %2167 = vmatpush1.msra.mxu0 0.0
      %2168 = vmatprep.subr.mxu0 0.0
      %2169 = vmatpush1.msra.mxu0 0.0
      %2170 = vmatprep.subr.mxu0 0.0
      %2171 = vmatpush1.msra.mxu0 0.0
      %2172 = vmatprep.mubr.f32.mxu0 0.0
      %2173 = vmatmul.mubr.f32.gmra.mrb[0].mxu0 %v2013
      %v2174 = vpop.f32.mrb[0].mxu0
      %v2175 = vadd.f32 0.0, %v2174
      %v2176 = vpop.f32.mrb[0].mxu0
      %2177 = vmatprep.mubr.f32.mxu0 0.0
      %2178 = vmatmul.mubr.f32.gmra.mrb[0].mxu0 %v2016
      %v2179 = vpop.f32.mrb[0].mxu0
      %v2180 = vadd.f32 0.0, %v2179
      %v2181 = vpop.f32.mrb[0].mxu0
      %2182 = vmatprep.mubr.f32.mxu0 0.0
      %2183 = vmatmul.mubr.f32.gmra.mrb[0].mxu0 %v2019
      %v2184 = vpop.f32.mrb[0].mxu0
      %v2185 = vadd.f32 0.0, %v2184
      %v2186 = vpop.f32.mrb[0].mxu0
      %2187 = vmatprep.mubr.f32.mxu0 0.0
      %2188 = vmatmul.mubr.f32.gmra.mrb[0].mxu0 %v2022
      %v2189 = vpop.f32.mrb[0].mxu0
      %v2190 = vadd.f32 0.0, %v2189
      %v2191 = vpop.f32.mrb[0].mxu0
      %2192 = vmatprep.mubr.f32.mxu0 0.0
      %2193 = vmatmul.mubr.f32.gmra.mrb[0].mxu0 %v2025
      %v2194 = vpop.f32.mrb[0].mxu0
      %v2195 = vadd.f32 0.0, %v2194
      %v2196 = vpop.f32.mrb[0].mxu0
      %2197 = vmatprep.mubr.f32.mxu0 0.0
      %2198 = vmatmul.mubr.f32.gmra.mrb[0].mxu0 %v2028
      %v2199 = vpop.f32.mrb[0].mxu0
      %v2200 = vadd.f32 0.0, %v2199
      %v2201 = vpop.f32.mrb[0].mxu0
      %2202 = vmatprep.mubr.f32.mxu0 0.0
      %2203 = vmatmul.mubr.f32.gmra.mrb[0].mxu0 %v2031
      %v2204 = vpop.f32.mrb[0].mxu0
      %v2205 = vadd.f32 0.0, %v2204
      %v2206 = vpop.f32.mrb[0].mxu0
      %2207 = vmatprep.mubr.f32.mxu0 0.0
      %2208 = vmatmul.mubr.f32.gmra.mrb[0].mxu0 %v2034
      %v2209 = vpop.f32.mrb[0].mxu0
      %v2210 = vadd.f32 0.0, %v2209
      %v2211 = vpop.f32.mrb[0].mxu0
      %2212 = vmatprep.mubr.f32.mxu0 0.0
      %2213 = vmatmul.mubr.f32.gmra.mrb[0].mxu0 %v2037
      %v2214 = vpop.f32.mrb[0].mxu0
      %v2215 = vadd.f32 0.0, %v2214
      %v2216 = vpop.f32.mrb[0].mxu0
      %2217 = vmatprep.mubr.f32.mxu0 0.0
      %2218 = vmatmul.mubr.f32.gmra.mrb[0].mxu0 %v2040
      %v2219 = vpop.f32.mrb[0].mxu0
      %v2220 = vadd.f32 0.0, %v2219
      %v2221 = vpop.f32.mrb[0].mxu0
      %2222 = vmatprep.mubr.f32.mxu0 0.0
      %2223 = vmatmul.mubr.f32.gmra.mrb[0].mxu0 %v2043
      %v2224 = vpop.f32.mrb[0].mxu0
      %v2225 = vadd.f32 0.0, %v2224
      %v2226 = vpop.f32.mrb[0].mxu0
      %2227 = vmatprep.mubr.f32.mxu0 0.0
      %2228 = vmatmul.mubr.f32.gmra.mrb[0].mxu0 %v2046
      %v2229 = vpop.f32.mrb[0].mxu0
      %v2230 = vadd.f32 0.0, %v2229
      %v2231 = vpop.f32.mrb[0].mxu0
      %2232 = vmatprep.mubr.f32.mxu0 0.0
      %2233 = vmatmul.mubr.f32.gmra.mrb[0].mxu0 %v2049
      %v2234 = vpop.f32.mrb[0].mxu0
      %v2235 = vadd.f32 0.0, %v2234
      %v2236 = vpop.f32.mrb[0].mxu0
      %2237 = vmatprep.mubr.f32.mxu0 0.0
      %2238 = vmatmul.mubr.f32.gmra.mrb[0].mxu0 %v2052
      %v2239 = vpop.f32.mrb[0].mxu0
      %v2240 = vadd.f32 0.0, %v2239
      %v2241 = vpop.f32.mrb[0].mxu0
      %2242 = vmatprep.mubr.f32.mxu0 0.0
      %2243 = vmatmul.mubr.f32.gmra.mrb[0].mxu0 %v2055
      %v2244 = vpop.f32.mrb[0].mxu0
      %v2245 = vadd.f32 0.0, %v2244
      %v2246 = vpop.f32.mrb[0].mxu0
      %2247 = vmatprep.mubr.f32.mxu0 0.0
      %2248 = vmatmul.mubr.f32.gmra.mrb[0].mxu0 %v2058
      %v2249 = vpop.f32.mrb[0].mxu0
      %v2250 = vadd.f32 0.0, %v2249
      %v2251 = vpop.f32.mrb[0].mxu0
      %2252 = vmatprep.mubr.f32.mxu0 0.0
      %2253 = vmatmul.mubr.f32.gmra.mrb[0].mxu0 %v2061
      %v2254 = vpop.f32.mrb[0].mxu0
      %v2255 = vadd.f32 0.0, %v2254
      %v2256 = vpop.f32.mrb[0].mxu0
      %2257 = vmatprep.mubr.f32.mxu0 0.0
      %2258 = vmatmul.mubr.f32.gmra.mrb[0].mxu0 %v2064
      %v2259 = vpop.f32.mrb[0].mxu0
      %v2260 = vadd.f32 0.0, %v2259
      %v2261 = vpop.f32.mrb[0].mxu0
      %2262 = vmatprep.mubr.f32.mxu0 0.0
      %2263 = vmatmul.mubr.f32.gmra.mrb[0].mxu0 %v2067
      %v2264 = vpop.f32.mrb[0].mxu0
      %v2265 = vadd.f32 0.0, %v2264
      %v2266 = vpop.f32.mrb[0].mxu0
      %2267 = vmatprep.mubr.f32.mxu0 0.0
      %2268 = vmatmul.mubr.f32.gmra.mrb[0].mxu0 %v2070
      %v2269 = vpop.f32.mrb[0].mxu0
      %v2270 = vadd.f32 0.0, %v2269
      %v2271 = vpop.f32.mrb[0].mxu0
      %2272 = vmatprep.mubr.f32.mxu0 0.0
      %2273 = vmatmul.mubr.f32.gmra.mrb[0].mxu0 %v2073
      %v2274 = vpop.f32.mrb[0].mxu0
      %v2275 = vadd.f32 0.0, %v2274
      %v2276 = vpop.f32.mrb[0].mxu0
      %2277 = vmatprep.mubr.f32.mxu0 0.0
      %2278 = vmatmul.mubr.f32.gmra.mrb[0].mxu0 %v2076
      %v2279 = vpop.f32.mrb[0].mxu0
      %v2280 = vadd.f32 0.0, %v2279
      %v2281 = vpop.f32.mrb[0].mxu0
      %2282 = vmatprep.mubr.f32.mxu0 0.0
      %2283 = vmatmul.mubr.f32.gmra.mrb[0].mxu0 %v2079
      %v2284 = vpop.f32.mrb[0].mxu0
      %v2285 = vadd.f32 0.0, %v2284
      %v2286 = vpop.f32.mrb[0].mxu0
      %2287 = vmatprep.mubr.f32.mxu0 0.0
      %2288 = vmatmul.mubr.f32.gmra.mrb[0].mxu0 %v2082
      %v2289 = vpop.f32.mrb[0].mxu0
      %v2290 = vadd.f32 0.0, %v2289
      %v2291 = vpop.f32.mrb[0].mxu0
      %2292 = vmatprep.mubr.f32.mxu0 0.0
      %2293 = vmatmul.mubr.f32.gmra.mrb[0].mxu0 %v2085
      %v2294 = vpop.f32.mrb[0].mxu0
      %v2295 = vadd.f32 0.0, %v2294
      %v2296 = vpop.f32.mrb[0].mxu0
      %2297 = vmatprep.mubr.f32.mxu0 0.0
      %2298 = vmatmul.mubr.f32.gmra.mrb[0].mxu0 %v2088
      %v2299 = vpop.f32.mrb[0].mxu0
      %v2300 = vadd.f32 0.0, %v2299
      %v2301 = vpop.f32.mrb[0].mxu0
      %2302 = vmatprep.mubr.f32.mxu0 0.0
      %2303 = vmatmul.mubr.f32.gmra.mrb[0].mxu0 %v2091
      %v2304 = vpop.f32.mrb[0].mxu0
      %v2305 = vadd.f32 0.0, %v2304
      %v2306 = vpop.f32.mrb[0].mxu0
      %2307 = vmatprep.mubr.f32.mxu0 0.0
      %2308 = vmatmul.mubr.f32.gmra.mrb[0].mxu0 %v2094
      %v2309 = vpop.f32.mrb[0].mxu0
      %v2310 = vadd.f32 0.0, %v2309
      %v2311 = vpop.f32.mrb[0].mxu0
      %2312 = vmatprep.mubr.f32.mxu0 0.0
      %2313 = vmatmul.mubr.f32.gmra.mrb[0].mxu0 %v2097
      %v2314 = vpop.f32.mrb[0].mxu0
      %v2315 = vadd.f32 0.0, %v2314
      %v2316 = vpop.f32.mrb[0].mxu0
      %2317 = vmatprep.mubr.f32.mxu0 0.0
      %2318 = vmatmul.mubr.f32.gmra.mrb[0].mxu0 %v2100
      %v2319 = vpop.f32.mrb[0].mxu0
      %v2320 = vadd.f32 0.0, %v2319
      %v2321 = vpop.f32.mrb[0].mxu0
      %2322 = vmatprep.mubr.f32.mxu0 0.0
      %2323 = vmatmul.mubr.f32.gmra.mrb[0].mxu0 %v2103
      %v2324 = vpop.f32.mrb[0].mxu0
      %v2325 = vadd.f32 0.0, %v2324
      %v2326 = vpop.f32.mrb[0].mxu0
      %2327 = vmatprep.mubr.f32.mxu0 0.0
      %2328 = vmatmul.mubr.f32.gmra.mrb[0].mxu0 %v2106
      %v2329 = vpop.f32.mrb[0].mxu0
      %v2330 = vadd.f32 0.0, %v2329
      %v2331 = vpop.f32.mrb[0].mxu0
      %2332 = vdwg.mxu0
      %2333 = vst.msk [vmem:[%s204] sm:$0xff] %vm347, %v2175
      %2334 = vst.msk [vmem:[%s204 + $0x8] sm:$0xff] %vm347, %v2180
      %2335 = vst.msk [vmem:[%s204 + $0x10] sm:$0xff] %vm347, %v2185
      %2336 = vst.msk [vmem:[%s204 + $0x18] sm:$0xff] %vm347, %v2190
      %2337 = vst.msk [vmem:[%s204 + $0x20] sm:$0xff] %vm347, %v2195
      %2338 = vst.msk [vmem:[%s204 + $0x28] sm:$0xff] %vm347, %v2200
      %2339 = vst.msk [vmem:[%s204 + $0x30] sm:$0xff] %vm347, %v2205
      %2340 = vst.msk [vmem:[%s204 + $0x38] sm:$0xff] %vm347, %v2210
      %2341 = vst.msk [vmem:[%s204 + $0x40] sm:$0xff] %vm347, %v2215
      %2342 = vst.msk [vmem:[%s204 + $0x48] sm:$0xff] %vm347, %v2220
      %2343 = vst.msk [vmem:[%s204 + $0x50] sm:$0xff] %vm347, %v2225
      %2344 = vst.msk [vmem:[%s204 + $0x58] sm:$0xff] %vm347, %v2230
      %2345 = vst.msk [vmem:[%s204 + $0x60] sm:$0xff] %vm347, %v2235
      %2346 = vst.msk [vmem:[%s204 + $0x68] sm:$0xff] %vm347, %v2240
      %2347 = vst.msk [vmem:[%s204 + $0x70] sm:$0xff] %vm347, %v2245
      %2348 = vst.msk [vmem:[%s204 + $0x78] sm:$0xff] %vm347, %v2250
      %2349 = vst.msk [vmem:[%s204 + $0x80] sm:$0xff] %vm347, %v2255
      %2350 = vst.msk [vmem:[%s204 + $0x88] sm:$0xff] %vm347, %v2260
      %2351 = vst.msk [vmem:[%s204 + $0x90] sm:$0xff] %vm347, %v2265
      %2352 = vst.msk [vmem:[%s204 + $0x98] sm:$0xff] %vm347, %v2270
      %2353 = vst.msk [vmem:[%s204 + $0xa0] sm:$0xff] %vm347, %v2275
      %2354 = vst.msk [vmem:[%s204 + $0xa8] sm:$0xff] %vm347, %v2280
      %2355 = vst.msk [vmem:[%s204 + $0xb0] sm:$0xff] %vm347, %v2285
      %2356 = vst.msk [vmem:[%s204 + $0xb8] sm:$0xff] %vm347, %v2290
      %2357 = vst.msk [vmem:[%s204 + $0xc0] sm:$0xff] %vm347, %v2295
      %2358 = vst.msk [vmem:[%s204 + $0xc8] sm:$0xff] %vm347, %v2300
      %2359 = vst.msk [vmem:[%s204 + $0xd0] sm:$0xff] %vm347, %v2305
      %2360 = vst.msk [vmem:[%s204 + $0xd8] sm:$0xff] %vm347, %v2310
      %2361 = vst.msk [vmem:[%s204 + $0xe0] sm:$0xff] %vm347, %v2315
      %2362 = vst.msk [vmem:[%s204 + $0xe8] sm:$0xff] %vm347, %v2320
      %2363 = vst.msk [vmem:[%s204 + $0xf0] sm:$0xff] %vm347, %v2325
      %2364 = vst.msk [vmem:[%s204 + $0xf8] sm:$0xff] %vm347, %v2330
      %v2365 = vsel %vm347, %v2175, 0.0
      %v2366 = vsel %vm347, %v2180, 0.0
      %v2367 = vadd.f32 %v2365, %v2366
      %v2368 = vsel %vm347, %v2185, 0.0
      %v2369 = vadd.f32 %v2367, %v2368
      %v2370 = vsel %vm347, %v2190, 0.0
      %v2371 = vadd.f32 %v2369, %v2370
      %v2372 = vsel %vm347, %v2195, 0.0
      %v2373 = vadd.f32 %v2371, %v2372
      %v2374 = vsel %vm347, %v2200, 0.0
      %v2375 = vadd.f32 %v2373, %v2374
      %v2376 = vsel %vm347, %v2205, 0.0
      %v2377 = vadd.f32 %v2375, %v2376
      %v2378 = vsel %vm347, %v2210, 0.0
      %v2379 = vadd.f32 %v2377, %v2378
      %v2380 = vsel %vm347, %v2215, 0.0
      %v2381 = vadd.f32 %v2379, %v2380
      %v2382 = vsel %vm347, %v2220, 0.0
      %v2383 = vadd.f32 %v2381, %v2382
      %v2384 = vsel %vm347, %v2225, 0.0
      %v2385 = vadd.f32 %v2383, %v2384
      %v2386 = vsel %vm347, %v2230, 0.0
      %v2387 = vadd.f32 %v2385, %v2386
      %v2388 = vsel %vm347, %v2235, 0.0
      %v2389 = vadd.f32 %v2387, %v2388
      %v2390 = vsel %vm347, %v2240, 0.0
      %v2391 = vadd.f32 %v2389, %v2390
      %v2392 = vsel %vm347, %v2245, 0.0
      %v2393 = vadd.f32 %v2391, %v2392
      %v2394 = vsel %vm347, %v2250, 0.0
      %v2395 = vadd.f32 %v2393, %v2394
      %v2396 = vsel %vm347, %v2255, 0.0
      %v2397 = vadd.f32 %v2395, %v2396
      %v2398 = vsel %vm347, %v2260, 0.0
      %v2399 = vadd.f32 %v2397, %v2398
      %v2400 = vsel %vm347, %v2265, 0.0
      %v2401 = vadd.f32 %v2399, %v2400
      %v2402 = vsel %vm347, %v2270, 0.0
      %v2403 = vadd.f32 %v2401, %v2402
      %v2404 = vsel %vm347, %v2275, 0.0
      %v2405 = vadd.f32 %v2403, %v2404
      %v2406 = vsel %vm347, %v2280, 0.0
      %v2407 = vadd.f32 %v2405, %v2406
      %v2408 = vsel %vm347, %v2285, 0.0
      %v2409 = vadd.f32 %v2407, %v2408
      %v2410 = vsel %vm347, %v2290, 0.0
      %v2411 = vadd.f32 %v2409, %v2410
      %v2412 = vsel %vm347, %v2295, 0.0
      %v2413 = vadd.f32 %v2411, %v2412
      %v2414 = vsel %vm347, %v2300, 0.0
      %v2415 = vadd.f32 %v2413, %v2414
      %v2416 = vsel %vm347, %v2305, 0.0
      %v2417 = vadd.f32 %v2415, %v2416
      %v2418 = vsel %vm347, %v2310, 0.0
      %v2419 = vadd.f32 %v2417, %v2418
      %v2420 = vsel %vm347, %v2315, 0.0
      %v2421 = vadd.f32 %v2419, %v2420
      %v2422 = vsel %vm347, %v2320, 0.0
      %v2423 = vadd.f32 %v2421, %v2422
      %v2424 = vsel %vm347, %v2325, 0.0
      %v2425 = vadd.f32 %v2423, %v2424
      %v2426 = vsel %vm347, %v2330, 0.0
      %v2427 = vadd.f32 %v2425, %v2426
      %v2428 = vrot.slane %v2427, 4
      %v2429 = vadd.f32 %v2427, %v2428
      %v2430 = vrot.slane %v2429, 2
      %v2431 = vadd.f32 %v2429, %v2430
      %v2432 = vrot.slane %v2431, 1
      %v2433 = vadd.f32 %v2431, %v2432
      %2434 = vst.msk [vmem:[%s208] sm:$0x1] %vm356, %v2433
      %v2435 = vmul.f32 %v2175, %v2175
      %v2436 = vmul.f32 %v2180, %v2180
      %v2437 = vmul.f32 %v2185, %v2185
      %v2438 = vmul.f32 %v2190, %v2190
      %v2439 = vmul.f32 %v2195, %v2195
      %v2440 = vmul.f32 %v2200, %v2200
      %v2441 = vmul.f32 %v2205, %v2205
      %v2442 = vmul.f32 %v2210, %v2210
      %v2443 = vmul.f32 %v2215, %v2215
      %v2444 = vmul.f32 %v2220, %v2220
      %v2445 = vmul.f32 %v2225, %v2225
      %v2446 = vmul.f32 %v2230, %v2230
      %v2447 = vmul.f32 %v2235, %v2235
      %v2448 = vmul.f32 %v2240, %v2240
      %v2449 = vmul.f32 %v2245, %v2245
      %v2450 = vmul.f32 %v2250, %v2250
      %v2451 = vmul.f32 %v2255, %v2255
      %v2452 = vmul.f32 %v2260, %v2260
      %v2453 = vmul.f32 %v2265, %v2265
      %v2454 = vmul.f32 %v2270, %v2270
      %v2455 = vmul.f32 %v2275, %v2275
      %v2456 = vmul.f32 %v2280, %v2280
      %v2457 = vmul.f32 %v2285, %v2285
      %v2458 = vmul.f32 %v2290, %v2290
      %v2459 = vmul.f32 %v2295, %v2295
      %v2460 = vmul.f32 %v2300, %v2300
      %v2461 = vmul.f32 %v2305, %v2305
      %v2462 = vmul.f32 %v2310, %v2310
      %v2463 = vmul.f32 %v2315, %v2315
      %v2464 = vmul.f32 %v2320, %v2320
      %v2465 = vmul.f32 %v2325, %v2325
      %v2466 = vmul.f32 %v2330, %v2330
      %v2467 = vsel %vm347, %v2435, 0.0
      %v2468 = vsel %vm347, %v2436, 0.0
      %v2469 = vadd.f32 %v2467, %v2468
      %v2470 = vsel %vm347, %v2437, 0.0
      %v2471 = vadd.f32 %v2469, %v2470
      %v2472 = vsel %vm347, %v2438, 0.0
      %v2473 = vadd.f32 %v2471, %v2472
      %v2474 = vsel %vm347, %v2439, 0.0
      %v2475 = vadd.f32 %v2473, %v2474
      %v2476 = vsel %vm347, %v2440, 0.0
      %v2477 = vadd.f32 %v2475, %v2476
      %v2478 = vsel %vm347, %v2441, 0.0
      %v2479 = vadd.f32 %v2477, %v2478
      %v2480 = vsel %vm347, %v2442, 0.0
      %v2481 = vadd.f32 %v2479, %v2480
      %v2482 = vsel %vm347, %v2443, 0.0
      %v2483 = vadd.f32 %v2481, %v2482
      %v2484 = vsel %vm347, %v2444, 0.0
      %v2485 = vadd.f32 %v2483, %v2484
      %v2486 = vsel %vm347, %v2445, 0.0
      %v2487 = vadd.f32 %v2485, %v2486
      %v2488 = vsel %vm347, %v2446, 0.0
      %v2489 = vadd.f32 %v2487, %v2488
      %v2490 = vsel %vm347, %v2447, 0.0
      %v2491 = vadd.f32 %v2489, %v2490
      %v2492 = vsel %vm347, %v2448, 0.0
      %v2493 = vadd.f32 %v2491, %v2492
      %v2494 = vsel %vm347, %v2449, 0.0
      %v2495 = vadd.f32 %v2493, %v2494
      %v2496 = vsel %vm347, %v2450, 0.0
      %v2497 = vadd.f32 %v2495, %v2496
      %v2498 = vsel %vm347, %v2451, 0.0
      %v2499 = vadd.f32 %v2497, %v2498
      %v2500 = vsel %vm347, %v2452, 0.0
      %v2501 = vadd.f32 %v2499, %v2500
      %v2502 = vsel %vm347, %v2453, 0.0
      %v2503 = vadd.f32 %v2501, %v2502
      %v2504 = vsel %vm347, %v2454, 0.0
      %v2505 = vadd.f32 %v2503, %v2504
      %v2506 = vsel %vm347, %v2455, 0.0
      %v2507 = vadd.f32 %v2505, %v2506
      %v2508 = vsel %vm347, %v2456, 0.0
      %v2509 = vadd.f32 %v2507, %v2508
      %v2510 = vsel %vm347, %v2457, 0.0
      %v2511 = vadd.f32 %v2509, %v2510
      %v2512 = vsel %vm347, %v2458, 0.0
      %v2513 = vadd.f32 %v2511, %v2512
      %v2514 = vsel %vm347, %v2459, 0.0
      %v2515 = vadd.f32 %v2513, %v2514
      %v2516 = vsel %vm347, %v2460, 0.0
      %v2517 = vadd.f32 %v2515, %v2516
      %v2518 = vsel %vm347, %v2461, 0.0
      %v2519 = vadd.f32 %v2517, %v2518
      %v2520 = vsel %vm347, %v2462, 0.0
      %v2521 = vadd.f32 %v2519, %v2520
      %v2522 = vsel %vm347, %v2463, 0.0
      %v2523 = vadd.f32 %v2521, %v2522
      %v2524 = vsel %vm347, %v2464, 0.0
      %v2525 = vadd.f32 %v2523, %v2524
      %v2526 = vsel %vm347, %v2465, 0.0
      %v2527 = vadd.f32 %v2525, %v2526
      %v2528 = vsel %vm347, %v2466, 0.0
      %v2529 = vadd.f32 %v2527, %v2528
      %v2530 = vrot.slane %v2529, 4
      %v2531 = vadd.f32 %v2529, %v2530
      %v2532 = vrot.slane %v2531, 2
      %v2533 = vadd.f32 %v2531, %v2532
      %v2534 = vrot.slane %v2533, 1
      %v2535 = vadd.f32 %v2533, %v2534
      %2536 = vst.msk [vmem:[%s208 + $0x1] sm:$0x1] %vm356, %v2535
      %p2537 = scmp.lt.s32.totalorder %s16, 1
      %s2538 = scalar_select %p2537, %s16, 1
      %s2539 = smul.addr %s2538, 32
      %s2540 = smul.addr %s2539, 8
      %s2541 = scalar_lea.vmem %s3, %s2540
      %p2542 = scmp.lt.s32.totalorder %s16, 1
      %s2543 = scalar_select %p2542, %s16, 1
      %s2544 = smul.addr %s2543, 2
      %s2545 = scalar_lea.vmem %s4, %s2544
      // Predicated region
      $region33: #{basic_block_forward.4} parent=31 // pred_check
        %p2546 = pneg %p102
      $region34: #{basic_block_forward.4} parent=31 // pred_check_branch
        %2548 = sbr.rel (%p2546) target = $region36
      $region35: #{basic_block_forward.4} parent=31 // pred_region
        _
      $region36: #{basic_block_forward.4} parent=31 // pred_fallthru
        _
      // Predicated region
      $region37: #{basic_block_forward.4} parent=31 // pred_check
        %p2549 = pneg %p128
      $region38: #{basic_block_forward.4} parent=31 // pred_check_branch
        %2551 = sbr.rel (%p2549) target = $region40
      $region39: #{basic_block_forward.4} parent=31 // pred_region
        _
      $region40: #{basic_block_forward.4} parent=31 // pred_fallthru
        _
    $region32: #{basic_block_forward.4} parent=5 // pred_fallthru
      _
    %p2552 = scmp.le.s32.totalorder 2, %s11
    // Predicated region
    $region41: #{basic_block_forward.4} parent=5 // pred_check
      %p2553 = pneg %p2552
    $region42: #{basic_block_forward.4} parent=5 // pred_check_branch
      %2555 = sbr.rel (%p2553) target = $region44
    $region43: #{basic_block_forward.4} parent=5 // pred_region
      %s2556 = ssub.s32 %s11, 2
      // Predicated region
      $region45: #{basic_block_forward.4} parent=43 // pred_check
        %p2557 = pneg %p108
      $region46: #{basic_block_forward.4} parent=43 // pred_check_branch
        %2559 = sbr.rel (%p2557) target = $region48
      $region47: #{basic_block_forward.4} parent=43 // pred_region
        %p2560 = scmp.lt.s32.totalorder %s17, 1
        %s2561 = scalar_select %p2560, %s17, 1
        %s2562 = smul.addr %s2561, 32
        %s2563 = smul.addr %s2562, 8
        %s2564 = scalar_lea.vmem %s3, %s2563
      $region48: #{basic_block_forward.4} parent=43 // pred_fallthru
        _
      // Predicated region
      $region49: #{basic_block_forward.4} parent=43 // pred_check
        %p2565 = pneg %p134
      $region50: #{basic_block_forward.4} parent=43 // pred_check_branch
        %2567 = sbr.rel (%p2565) target = $region52
      $region51: #{basic_block_forward.4} parent=43 // pred_region
        %p2568 = scmp.lt.s32.totalorder %s17, 1
        %s2569 = scalar_select %p2568, %s17, 1
        %s2570 = smul.addr %s2569, 2
        %s2571 = scalar_lea.vmem %s4, %s2570
      $region52: #{basic_block_forward.4} parent=43 // pred_fallthru
        _
    $region44: #{basic_block_forward.4} parent=5 // pred_fallthru
      _
  $region6: #{basic_block_forward.4} parent=0 // loop_footer
    %s15 = sadd.s32 1, %s11
  $region7: #{basic_block_forward.4} parent=0 // loop_footer_branch
    %10 = sbr.rel target = $region3
  $region8: #{basic_block_forward.4} parent=0 // loop_exit
    _

</llo_original>
